<compile_context>
chip_gen: v6e
topology: v6e:2x2x1
jax: 0.10.0
libtpu: 0.0.40
codegen_flags: <defaults>
</compile_context>

<pallas_src>
import functools

import jax
import jax.numpy as jnp
from jax.experimental import pallas as pl
from jax.experimental.pallas import tpu as pltpu


_WPAD = 8  # left margin of the halo buffer, keeps the interior store sublane-aligned


# ----------------------------- fused Pallas kernel -------------------------- #

def _make_bottleneck_kernel(H, W, CH, use_sel):
    """Whole bottleneck for one image; everything stays in VMEM."""
    HW = H * W

    def kernel(*refs):
        if use_sel:
            (x_ref, sel_ref, w1_ref, b1_ref, w2_ref, b2_ref,
             w3_ref, b3_ref, wd_ref, bd_ref, o_ref, pad_ref) = refs
        else:
            (x_ref, w1_ref, b1_ref, w2_ref, b2_ref,
             w3_ref, b3_ref, wd_ref, bd_ref, o_ref, pad_ref) = refs
            sel_ref = None

        x2d = x_ref[0]                                    # (H*W, Cin), channels in lanes

        # conv1 (1x1) + bn1 (BN scale folded into w1 columns, shift added here).
        out1 = jnp.dot(x2d, w1_ref[...],
                       preferred_element_type=jnp.float32) + b1_ref[...]

        # conv2 (3x3, padding=1), computed at stride 1 as 9 accumulating MXU taps
        # over a zero-padded VMEM tile.  The interior store at column _WPAD is
        # sublane-aligned; tap reads are shifted contiguous windows.
        pad_ref[...] = jnp.zeros_like(pad_ref)
        pad_ref[1:H + 1, _WPAD:_WPAD + W, :] = out1.reshape(H, W, CH)
        acc2 = jnp.zeros((HW, CH), jnp.float32)
        for kh in range(3):
            for kw in range(3):
                col0 = _WPAD - 1 + kw
                patch = pad_ref[kh:kh + H, col0:col0 + W, :].reshape(HW, CH)
                acc2 = acc2 + jnp.dot(patch, w2_ref[kh * 3 + kw],
                                      preferred_element_type=jnp.float32)
        acc2 = acc2 + b2_ref[...]

        # Stride-s spatial subsampling of the conv2 output AND of the identity
        # input, as a one-hot matmul on the idle MXU (no strided loads, no XLA
        # strided-slice materialisation).
        if use_sel:
            sel = sel_ref[...]                            # (Ho*Wo, H*W), one-hot rows
            acc2 = jnp.dot(sel, acc2, preferred_element_type=jnp.float32)
            xs2d = jnp.dot(sel, x2d, preferred_element_type=jnp.float32)
        else:
            xs2d = x2d

        # conv3 (1x1) + bn3, downsample 1x1 + bn (or identity via W=I), add, ReLU.
        out3 = jnp.dot(acc2, w3_ref[...],
                       preferred_element_type=jnp.float32) + b3_ref[...]
        ident = jnp.dot(xs2d, wd_ref[...],
                        preferred_element_type=jnp.float32) + bd_ref[...]
        o_ref[0] = jnp.maximum(out3 + ident, 0.0)

    return kernel


# ------------------------------ JAX wrapper --------------------------------- #

def _fold_bn_into_weight(w2d, conv_bias, bn, eps):
    """Fold conv bias + inference BN into (column-scaled weight, shift)."""
    gamma, beta, mean, var = bn
    s = gamma / jnp.sqrt(var + eps)                           # (Cout,)
    w_f = (w2d * s[None, :]).astype(jnp.float32)
    shift = ((conv_bias - mean) * s + beta).reshape(1, -1).astype(jnp.float32)
    return w_f, shift


def residual_block_forward(x_nchw, params, stride):
    """ResidualBlock.forward (use_se=False, se_block=False); BN in inference mode."""
    eps = 1e-4                                    # _bn(...) uses eps=0.0001 in the module
    N, CIN, H, W = x_nchw.shape
    CH = params["w1"].shape[0]                    # out_channel // expansion
    COUT = params["w3"].shape[0]
    Ho = (H + 2 - 3) // stride + 1
    Wo = (W + 2 - 3) // stride + 1
    HW, P = H * W, Ho * Wo
    down_sample = (stride != 1) or (CIN != COUT)
    use_sel = stride != 1

    # NCHW -> (N, H*W, Cin): pixel-major rows, channels in lanes (boundary glue only).
    x = jnp.transpose(x_nchw, (0, 2, 3, 1)).reshape(N, HW, CIN).astype(jnp.float32)

    # Fold conv bias + BN into the weights once (constant fold, not per-call work).
    w1f, b1f = _fold_bn_into_weight(params["w1"][:, :, 0, 0].T, params["b1"],
                                    params["bn1"], eps)
    w2_2d = jnp.transpose(params["w2"], (2, 3, 1, 0)).reshape(9 * CH, CH)
    w2f, b2f = _fold_bn_into_weight(w2_2d, params["b2"], params["bn2"], eps)
    w2f = w2f.reshape(9, CH, CH)                  # tap-major: (kh*3+kw, Cin, Cout)
    w3f, b3f = _fold_bn_into_weight(params["w3"][:, :, 0, 0].T, params["b3"],
                                    params["bn3"], eps)
    if down_sample:
        wdf, bdf = _fold_bn_into_weight(params["wd"][:, :, 0, 0].T, params["bd"],
                                        params["bnd"], eps)
    else:  # identity path (Cin == Cout): expressed as x @ I + 0 so the kernel is uniform
        wdf = jnp.eye(COUT, dtype=jnp.float32)
        bdf = jnp.zeros((1, COUT), jnp.float32)

    args = [x]
    in_specs = [pl.BlockSpec((1, HW, CIN), lambda i: (i, 0, 0))]
    if use_sel:
        rows = jnp.arange(P)
        src = (rows // Wo) * stride * W + (rows % Wo) * stride
        sel = jax.nn.one_hot(src, HW, dtype=jnp.float32)      # (Ho*Wo, H*W)
        args.append(sel)
        in_specs.append(pl.BlockSpec((P, HW), lambda i: (0, 0)))
    args += [w1f, b1f, w2f, b2f, w3f, b3f, wdf, bdf]
    in_specs += [
        pl.BlockSpec((CIN, CH), lambda i: (0, 0)),
        pl.BlockSpec((1, CH), lambda i: (0, 0)),
        pl.BlockSpec((9, CH, CH), lambda i: (0, 0, 0)),
        pl.BlockSpec((1, CH), lambda i: (0, 0)),
        pl.BlockSpec((CH, COUT), lambda i: (0, 0)),
        pl.BlockSpec((1, COUT), lambda i: (0, 0)),
        pl.BlockSpec((CIN, COUT), lambda i: (0, 0)),
        pl.BlockSpec((1, COUT), lambda i: (0, 0)),
    ]

    out = pl.pallas_call(
        _make_bottleneck_kernel(H, W, CH, use_sel),
        out_shape=jax.ShapeDtypeStruct((N, P, COUT), jnp.float32),
        grid=(N,),
        in_specs=in_specs,
        out_specs=pl.BlockSpec((1, P, COUT), lambda i: (i, 0, 0)),
        scratch_shapes=[pltpu.VMEM((H + 2, W + 2 * _WPAD, CH), jnp.float32)],
        compiler_params=pltpu.CompilerParams(
            dimension_semantics=("parallel",)),
    )(*args)

    return jnp.transpose(out.reshape(N, Ho, Wo, COUT), (0, 3, 1, 2))  # back to NCHW


# ------------------------ pure-JAX reference (check) ------------------------ #

def _ref_conv(x, w, b, stride, pad):
    y = jax.lax.conv_general_dilated(
        x, w, window_strides=(stride, stride),
        padding=[(pad, pad), (pad, pad)],
        dimension_numbers=("NCHW", "OIHW", "NCHW"))
    return y + b[None, :, None, None]


def _ref_bn(x, gamma, beta, mean, var, eps=1e-4):
    inv = gamma / jnp.sqrt(var + eps)
    return (x - mean[None, :, None, None]) * inv[None, :, None, None] + beta[None, :, None, None]


def ref_forward(x, p, stride):
    identity = x
    out = _ref_bn(_ref_conv(x, p["w1"], p["b1"], 1, 0), *p["bn1"])
    out = _ref_bn(_ref_conv(out, p["w2"], p["b2"], stride, 1), *p["bn2"])
    out = _ref_bn(_ref_conv(out, p["w3"], p["b3"], 1, 0), *p["bn3"])
    if stride != 1 or x.shape[1] != p["w3"].shape[0]:
        identity = _ref_bn(_ref_conv(x, p["wd"], p["bd"], stride, 0), *p["bnd"])
    return jnp.maximum(out + identity, 0.0)


# --------------------------------- main ------------------------------------ #

def make_params(key, in_channel, out_channel):
    channel = out_channel // 4
    ks = jax.random.split(key, 16)

    def bn_params(k, c):
        k1, k2, k3, k4 = jax.random.split(k, 4)
        gamma = jax.random.uniform(k1, (c,), minval=0.5, maxval=1.5)
        beta = 0.1 * jax.random.normal(k2, (c,))
        mean = 0.1 * jax.random.normal(k3, (c,))
        var = jax.random.uniform(k4, (c,), minval=0.5, maxval=1.5)
        return (gamma, beta, mean, var)

    p = {
        "w1": 0.05 * jax.random.normal(ks[0], (channel, in_channel, 1, 1)),
        "b1": 0.05 * jax.random.normal(ks[1], (channel,)),
        "bn1": bn_params(ks[2], channel),
        "w2": 0.05 * jax.random.normal(ks[3], (channel, channel, 3, 3)),
        "b2": 0.05 * jax.random.normal(ks[4], (channel,)),
        "bn2": bn_params(ks[5], channel),
        "w3": 0.05 * jax.random.normal(ks[6], (out_channel, channel, 1, 1)),
        "b3": 0.05 * jax.random.normal(ks[7], (out_channel,)),
        "bn3": bn_params(ks[8], out_channel),
        "wd": 0.05 * jax.random.normal(ks[9], (out_channel, in_channel, 1, 1)),
        "bd": 0.05 * jax.random.normal(ks[10], (out_channel,)),
        "bnd": bn_params(ks[11], out_channel),
    }
    return jax.tree_util.tree_map(lambda a: a.astype(jnp.float32), p)


if __name__ == "__main__":
    # ResNet-50 bottleneck: in_channel=8, out_channel=32 (expansion 4), stride=2
    N, CIN, H, W = 2, 8, 16, 16
    COUT, STRIDE = 32, 2

    key = jax.random.PRNGKey(0)
    kx, kp = jax.random.split(key)
    x = jax.random.normal(kx, (N, CIN, H, W), dtype=jnp.float32)   # PyTorch NCHW input
    params = make_params(kp, CIN, COUT)

    fwd = jax.jit(functools.partial(residual_block_forward, stride=STRIDE))
    out = jax.block_until_ready(fwd(x, params))

    ref = jax.block_until_ready(ref_forward(x, params, STRIDE))
    assert out.shape == (N, COUT, H // STRIDE, W // STRIDE), out.shape
    assert jnp.allclose(out, ref, rtol=1e-4, atol=1e-4), float(jnp.max(jnp.abs(out - ref)))

    print("KERNEL_OK")
</pallas_src>

<mosaic_0001>
module attributes {stable_mosaic.version = 11 : i64} {
  func.func @kernel(%arg0: i32, %arg1: memref<1x256x8xf32, #tpu.memory_space<vmem>>, %arg2: memref<64x256xf32, #tpu.memory_space<vmem>>, %arg3: memref<8x8xf32, #tpu.memory_space<vmem>>, %arg4: memref<1x8xf32, #tpu.memory_space<vmem>>, %arg5: memref<9x8x8xf32, #tpu.memory_space<vmem>>, %arg6: memref<1x8xf32, #tpu.memory_space<vmem>>, %arg7: memref<8x32xf32, #tpu.memory_space<vmem>>, %arg8: memref<1x32xf32, #tpu.memory_space<vmem>>, %arg9: memref<8x32xf32, #tpu.memory_space<vmem>>, %arg10: memref<1x32xf32, #tpu.memory_space<vmem>>, %arg11: memref<1x64x32xf32, #tpu.memory_space<vmem>>, %arg12: memref<18x32x8xf32, #tpu.memory_space<vmem>>) attributes {dimension_semantics = [#tpu.dimension_semantics<parallel>], iteration_bounds = array<i64: 2>, scalar_prefetch = 0 : i64, scratch_operands = 1 : i64, tpu.core_type = #tpu.core_type<tc>, window_params = [{transform_indices = @transform_0, window_bounds = array<i64: 1, 256, 8>}, {pipeline_mode = #tpu.pipeline_mode<synchronous>, transform_indices = @transform_1, window_bounds = array<i64: 64, 256>}, {pipeline_mode = #tpu.pipeline_mode<synchronous>, transform_indices = @transform_2, window_bounds = array<i64: 8, 8>}, {pipeline_mode = #tpu.pipeline_mode<synchronous>, transform_indices = @transform_3, window_bounds = array<i64: 1, 8>}, {pipeline_mode = #tpu.pipeline_mode<synchronous>, transform_indices = @transform_4, window_bounds = array<i64: 9, 8, 8>}, {pipeline_mode = #tpu.pipeline_mode<synchronous>, transform_indices = @transform_5, window_bounds = array<i64: 1, 8>}, {pipeline_mode = #tpu.pipeline_mode<synchronous>, transform_indices = @transform_6, window_bounds = array<i64: 8, 32>}, {pipeline_mode = #tpu.pipeline_mode<synchronous>, transform_indices = @transform_7, window_bounds = array<i64: 1, 32>}, {pipeline_mode = #tpu.pipeline_mode<synchronous>, transform_indices = @transform_8, window_bounds = array<i64: 8, 32>}, {pipeline_mode = #tpu.pipeline_mode<synchronous>, transform_indices = @transform_9, window_bounds = array<i64: 1, 32>}, {transform_indices = @transform_10, window_bounds = array<i64: 1, 64, 32>}]} {
    %c0 = arith.constant 0 : index
    %c0_0 = arith.constant 0 : index
    %c0_1 = arith.constant 0 : index
    %0 = vector.load %arg1[%c0, %c0_0, %c0_1] : memref<1x256x8xf32, #tpu.memory_space<vmem>>, vector<1x256x8xf32>
    %1 = vector.shape_cast %0 : vector<1x256x8xf32> to vector<256x8xf32>
    %c0_2 = arith.constant 0 : index
    %c0_3 = arith.constant 0 : index
    %2 = vector.load %arg3[%c0_2, %c0_3] : memref<8x8xf32, #tpu.memory_space<vmem>>, vector<8x8xf32>
    %cst = arith.constant dense<0.000000e+00> : vector<256x8xf32>
    %3 = tpu.matmul %1, %2, %cst {dimension_numbers = #tpu.dot_dimension_numbers<[1], [0], [0], [1], [0, 0, 1, 1], [], []>} : vector<256x8xf32>, vector<8x8xf32>, vector<256x8xf32> -> vector<256x8xf32>
    %c0_4 = arith.constant 0 : index
    %c0_5 = arith.constant 0 : index
    %4 = vector.load %arg4[%c0_4, %c0_5] : memref<1x8xf32, #tpu.memory_space<vmem>>, vector<1x8xf32>
    %5 = vector.broadcast %4 : vector<1x8xf32> to vector<256x8xf32>
    %6 = arith.addf %3, %5 : vector<256x8xf32>
    %cst_6 = arith.constant 0.000000e+00 : f32
    %7 = vector.broadcast %cst_6 : f32 to vector<18x32x8xf32>
    %c0_7 = arith.constant 0 : index
    %c0_8 = arith.constant 0 : index
    %c0_9 = arith.constant 0 : index
    %8 = vector.load %arg12[%c0_7, %c0_8, %c0_9] : memref<18x32x8xf32, #tpu.memory_space<vmem>>, vector<18x32x8xf32>
    tpu.vector_store %arg12[%c0_7, %c0_8, %c0_9], %7 {strides = array<i32>} : memref<18x32x8xf32, #tpu.memory_space<vmem>>, vector<18x32x8xf32>,
    %9 = vector.shape_cast %6 : vector<256x8xf32> to vector<16x16x8xf32>
    %c1 = arith.constant 1 : index
    %c8 = arith.constant 8 : index
    %c0_10 = arith.constant 0 : index
    %10 = vector.load %arg12[%c1, %c8, %c0_10] : memref<18x32x8xf32, #tpu.memory_space<vmem>>, vector<16x16x8xf32>
    tpu.vector_store %arg12[%c1, %c8, %c0_10], %9 {strides = array<i32>} : memref<18x32x8xf32, #tpu.memory_space<vmem>>, vector<16x16x8xf32>,
    %cst_11 = arith.constant 0.000000e+00 : f32
    %11 = vector.broadcast %cst_11 : f32 to vector<256x8xf32>
    %c0_12 = arith.constant 0 : index
    %c7 = arith.constant 7 : index
    %c0_13 = arith.constant 0 : index
    %12 = vector.load %arg12[%c0_12, %c7, %c0_13] : memref<18x32x8xf32, #tpu.memory_space<vmem>>, vector<16x16x8xf32>
    %13 = vector.shape_cast %12 : vector<16x16x8xf32> to vector<256x8xf32>
    %c0_14 = arith.constant 0 : index
    %c0_15 = arith.constant 0 : index
    %c0_16 = arith.constant 0 : index
    %14 = vector.load %arg5[%c0_14, %c0_15, %c0_16] : memref<9x8x8xf32, #tpu.memory_space<vmem>>, vector<1x8x8xf32>
    %15 = vector.shape_cast %14 : vector<1x8x8xf32> to vector<8x8xf32>
    %cst_17 = arith.constant dense<0.000000e+00> : vector<256x8xf32>
    %16 = tpu.matmul %13, %15, %cst_17 {dimension_numbers = #tpu.dot_dimension_numbers<[1], [0], [0], [1], [0, 0, 1, 1], [], []>} : vector<256x8xf32>, vector<8x8xf32>, vector<256x8xf32> -> vector<256x8xf32>
    %17 = arith.addf %11, %16 : vector<256x8xf32>
    %c0_18 = arith.constant 0 : index
    %c8_19 = arith.constant 8 : index
    %c0_20 = arith.constant 0 : index
    %18 = vector.load %arg12[%c0_18, %c8_19, %c0_20] : memref<18x32x8xf32, #tpu.memory_space<vmem>>, vector<16x16x8xf32>
    %19 = vector.shape_cast %18 : vector<16x16x8xf32> to vector<256x8xf32>
    %c1_21 = arith.constant 1 : index
    %c0_22 = arith.constant 0 : index
    %c0_23 = arith.constant 0 : index
    %20 = vector.load %arg5[%c1_21, %c0_22, %c0_23] : memref<9x8x8xf32, #tpu.memory_space<vmem>>, vector<1x8x8xf32>
    %21 = vector.shape_cast %20 : vector<1x8x8xf32> to vector<8x8xf32>
    %cst_24 = arith.constant dense<0.000000e+00> : vector<256x8xf32>
    %22 = tpu.matmul %19, %21, %cst_24 {dimension_numbers = #tpu.dot_dimension_numbers<[1], [0], [0], [1], [0, 0, 1, 1], [], []>} : vector<256x8xf32>, vector<8x8xf32>, vector<256x8xf32> -> vector<256x8xf32>
    %23 = arith.addf %17, %22 : vector<256x8xf32>
    %c0_25 = arith.constant 0 : index
    %c9 = arith.constant 9 : index
    %c0_26 = arith.constant 0 : index
    %24 = vector.load %arg12[%c0_25, %c9, %c0_26] : memref<18x32x8xf32, #tpu.memory_space<vmem>>, vector<16x16x8xf32>
    %25 = vector.shape_cast %24 : vector<16x16x8xf32> to vector<256x8xf32>
    %c2 = arith.constant 2 : index
    %c0_27 = arith.constant 0 : index
    %c0_28 = arith.constant 0 : index
    %26 = vector.load %arg5[%c2, %c0_27, %c0_28] : memref<9x8x8xf32, #tpu.memory_space<vmem>>, vector<1x8x8xf32>
    %27 = vector.shape_cast %26 : vector<1x8x8xf32> to vector<8x8xf32>
    %cst_29 = arith.constant dense<0.000000e+00> : vector<256x8xf32>
    %28 = tpu.matmul %25, %27, %cst_29 {dimension_numbers = #tpu.dot_dimension_numbers<[1], [0], [0], [1], [0, 0, 1, 1], [], []>} : vector<256x8xf32>, vector<8x8xf32>, vector<256x8xf32> -> vector<256x8xf32>
    %29 = arith.addf %23, %28 : vector<256x8xf32>
    %c1_30 = arith.constant 1 : index
    %c7_31 = arith.constant 7 : index
    %c0_32 = arith.constant 0 : index
    %30 = vector.load %arg12[%c1_30, %c7_31, %c0_32] : memref<18x32x8xf32, #tpu.memory_space<vmem>>, vector<16x16x8xf32>
    %31 = vector.shape_cast %30 : vector<16x16x8xf32> to vector<256x8xf32>
    %c3 = arith.constant 3 : index
    %c0_33 = arith.constant 0 : index
    %c0_34 = arith.constant 0 : index
    %32 = vector.load %arg5[%c3, %c0_33, %c0_34] : memref<9x8x8xf32, #tpu.memory_space<vmem>>, vector<1x8x8xf32>
    %33 = vector.shape_cast %32 : vector<1x8x8xf32> to vector<8x8xf32>
    %cst_35 = arith.constant dense<0.000000e+00> : vector<256x8xf32>
    %34 = tpu.matmul %31, %33, %cst_35 {dimension_numbers = #tpu.dot_dimension_numbers<[1], [0], [0], [1], [0, 0, 1, 1], [], []>} : vector<256x8xf32>, vector<8x8xf32>, vector<256x8xf32> -> vector<256x8xf32>
    %35 = arith.addf %29, %34 : vector<256x8xf32>
    %c1_36 = arith.constant 1 : index
    %c8_37 = arith.constant 8 : index
    %c0_38 = arith.constant 0 : index
    %36 = vector.load %arg12[%c1_36, %c8_37, %c0_38] : memref<18x32x8xf32, #tpu.memory_space<vmem>>, vector<16x16x8xf32>
    %37 = vector.shape_cast %36 : vector<16x16x8xf32> to vector<256x8xf32>
    %c4 = arith.constant 4 : index
    %c0_39 = arith.constant 0 : index
    %c0_40 = arith.constant 0 : index
    %38 = vector.load %arg5[%c4, %c0_39, %c0_40] : memref<9x8x8xf32, #tpu.memory_space<vmem>>, vector<1x8x8xf32>
    %39 = vector.shape_cast %38 : vector<1x8x8xf32> to vector<8x8xf32>
    %cst_41 = arith.constant dense<0.000000e+00> : vector<256x8xf32>
    %40 = tpu.matmul %37, %39, %cst_41 {dimension_numbers = #tpu.dot_dimension_numbers<[1], [0], [0], [1], [0, 0, 1, 1], [], []>} : vector<256x8xf32>, vector<8x8xf32>, vector<256x8xf32> -> vector<256x8xf32>
    %41 = arith.addf %35, %40 : vector<256x8xf32>
    %c1_42 = arith.constant 1 : index
    %c9_43 = arith.constant 9 : index
    %c0_44 = arith.constant 0 : index
    %42 = vector.load %arg12[%c1_42, %c9_43, %c0_44] : memref<18x32x8xf32, #tpu.memory_space<vmem>>, vector<16x16x8xf32>
    %43 = vector.shape_cast %42 : vector<16x16x8xf32> to vector<256x8xf32>
    %c5 = arith.constant 5 : index
    %c0_45 = arith.constant 0 : index
    %c0_46 = arith.constant 0 : index
    %44 = vector.load %arg5[%c5, %c0_45, %c0_46] : memref<9x8x8xf32, #tpu.memory_space<vmem>>, vector<1x8x8xf32>
    %45 = vector.shape_cast %44 : vector<1x8x8xf32> to vector<8x8xf32>
    %cst_47 = arith.constant dense<0.000000e+00> : vector<256x8xf32>
    %46 = tpu.matmul %43, %45, %cst_47 {dimension_numbers = #tpu.dot_dimension_numbers<[1], [0], [0], [1], [0, 0, 1, 1], [], []>} : vector<256x8xf32>, vector<8x8xf32>, vector<256x8xf32> -> vector<256x8xf32>
    %47 = arith.addf %41, %46 : vector<256x8xf32>
    %c2_48 = arith.constant 2 : index
    %c7_49 = arith.constant 7 : index
    %c0_50 = arith.constant 0 : index
    %48 = vector.load %arg12[%c2_48, %c7_49, %c0_50] : memref<18x32x8xf32, #tpu.memory_space<vmem>>, vector<16x16x8xf32>
    %49 = vector.shape_cast %48 : vector<16x16x8xf32> to vector<256x8xf32>
    %c6 = arith.constant 6 : index
    %c0_51 = arith.constant 0 : index
    %c0_52 = arith.constant 0 : index
    %50 = vector.load %arg5[%c6, %c0_51, %c0_52] : memref<9x8x8xf32, #tpu.memory_space<vmem>>, vector<1x8x8xf32>
    %51 = vector.shape_cast %50 : vector<1x8x8xf32> to vector<8x8xf32>
    %cst_53 = arith.constant dense<0.000000e+00> : vector<256x8xf32>
    %52 = tpu.matmul %49, %51, %cst_53 {dimension_numbers = #tpu.dot_dimension_numbers<[1], [0], [0], [1], [0, 0, 1, 1], [], []>} : vector<256x8xf32>, vector<8x8xf32>, vector<256x8xf32> -> vector<256x8xf32>
    %53 = arith.addf %47, %52 : vector<256x8xf32>
    %c2_54 = arith.constant 2 : index
    %c8_55 = arith.constant 8 : index
    %c0_56 = arith.constant 0 : index
    %54 = vector.load %arg12[%c2_54, %c8_55, %c0_56] : memref<18x32x8xf32, #tpu.memory_space<vmem>>, vector<16x16x8xf32>
    %55 = vector.shape_cast %54 : vector<16x16x8xf32> to vector<256x8xf32>
    %c7_57 = arith.constant 7 : index
    %c0_58 = arith.constant 0 : index
    %c0_59 = arith.constant 0 : index
    %56 = vector.load %arg5[%c7_57, %c0_58, %c0_59] : memref<9x8x8xf32, #tpu.memory_space<vmem>>, vector<1x8x8xf32>
    %57 = vector.shape_cast %56 : vector<1x8x8xf32> to vector<8x8xf32>
    %cst_60 = arith.constant dense<0.000000e+00> : vector<256x8xf32>
    %58 = tpu.matmul %55, %57, %cst_60 {dimension_numbers = #tpu.dot_dimension_numbers<[1], [0], [0], [1], [0, 0, 1, 1], [], []>} : vector<256x8xf32>, vector<8x8xf32>, vector<256x8xf32> -> vector<256x8xf32>
    %59 = arith.addf %53, %58 : vector<256x8xf32>
    %c2_61 = arith.constant 2 : index
    %c9_62 = arith.constant 9 : index
    %c0_63 = arith.constant 0 : index
    %60 = vector.load %arg12[%c2_61, %c9_62, %c0_63] : memref<18x32x8xf32, #tpu.memory_space<vmem>>, vector<16x16x8xf32>
    %61 = vector.shape_cast %60 : vector<16x16x8xf32> to vector<256x8xf32>
    %c8_64 = arith.constant 8 : index
    %c0_65 = arith.constant 0 : index
    %c0_66 = arith.constant 0 : index
    %62 = vector.load %arg5[%c8_64, %c0_65, %c0_66] : memref<9x8x8xf32, #tpu.memory_space<vmem>>, vector<1x8x8xf32>
    %63 = vector.shape_cast %62 : vector<1x8x8xf32> to vector<8x8xf32>
    %cst_67 = arith.constant dense<0.000000e+00> : vector<256x8xf32>
    %64 = tpu.matmul %61, %63, %cst_67 {dimension_numbers = #tpu.dot_dimension_numbers<[1], [0], [0], [1], [0, 0, 1, 1], [], []>} : vector<256x8xf32>, vector<8x8xf32>, vector<256x8xf32> -> vector<256x8xf32>
    %65 = arith.addf %59, %64 : vector<256x8xf32>
    %c0_68 = arith.constant 0 : index
    %c0_69 = arith.constant 0 : index
    %66 = vector.load %arg6[%c0_68, %c0_69] : memref<1x8xf32, #tpu.memory_space<vmem>>, vector<1x8xf32>
    %67 = vector.broadcast %66 : vector<1x8xf32> to vector<256x8xf32>
    %68 = arith.addf %65, %67 : vector<256x8xf32>
    %c0_70 = arith.constant 0 : index
    %c0_71 = arith.constant 0 : index
    %69 = vector.load %arg2[%c0_70, %c0_71] : memref<64x256xf32, #tpu.memory_space<vmem>>, vector<64x256xf32>
    %cst_72 = arith.constant dense<0.000000e+00> : vector<64x8xf32>
    %70 = tpu.matmul %69, %68, %cst_72 {dimension_numbers = #tpu.dot_dimension_numbers<[1], [0], [0], [1], [0, 0, 1, 1], [], []>} : vector<64x256xf32>, vector<256x8xf32>, vector<64x8xf32> -> vector<64x8xf32>
    %cst_73 = arith.constant dense<0.000000e+00> : vector<64x8xf32>
    %71 = tpu.matmul %69, %1, %cst_73 {dimension_numbers = #tpu.dot_dimension_numbers<[1], [0], [0], [1], [0, 0, 1, 1], [], []>} : vector<64x256xf32>, vector<256x8xf32>, vector<64x8xf32> -> vector<64x8xf32>
    %c0_74 = arith.constant 0 : index
    %c0_75 = arith.constant 0 : index
    %72 = vector.load %arg7[%c0_74, %c0_75] : memref<8x32xf32, #tpu.memory_space<vmem>>, vector<8x32xf32>
    %cst_76 = arith.constant dense<0.000000e+00> : vector<64x32xf32>
    %73 = tpu.matmul %70, %72, %cst_76 {dimension_numbers = #tpu.dot_dimension_numbers<[1], [0], [0], [1], [0, 0, 1, 1], [], []>} : vector<64x8xf32>, vector<8x32xf32>, vector<64x32xf32> -> vector<64x32xf32>
    %c0_77 = arith.constant 0 : index
    %c0_78 = arith.constant 0 : index
    %74 = vector.load %arg8[%c0_77, %c0_78] : memref<1x32xf32, #tpu.memory_space<vmem>>, vector<1x32xf32>
    %75 = vector.broadcast %74 : vector<1x32xf32> to vector<64x32xf32>
    %76 = arith.addf %73, %75 : vector<64x32xf32>
    %c0_79 = arith.constant 0 : index
    %c0_80 = arith.constant 0 : index
    %77 = vector.load %arg9[%c0_79, %c0_80] : memref<8x32xf32, #tpu.memory_space<vmem>>, vector<8x32xf32>
    %cst_81 = arith.constant dense<0.000000e+00> : vector<64x32xf32>
    %78 = tpu.matmul %71, %77, %cst_81 {dimension_numbers = #tpu.dot_dimension_numbers<[1], [0], [0], [1], [0, 0, 1, 1], [], []>} : vector<64x8xf32>, vector<8x32xf32>, vector<64x32xf32> -> vector<64x32xf32>
    %c0_82 = arith.constant 0 : index
    %c0_83 = arith.constant 0 : index
    %79 = vector.load %arg10[%c0_82, %c0_83] : memref<1x32xf32, #tpu.memory_space<vmem>>, vector<1x32xf32>
    %80 = vector.broadcast %79 : vector<1x32xf32> to vector<64x32xf32>
    %81 = arith.addf %78, %80 : vector<64x32xf32>
    %82 = arith.addf %76, %81 : vector<64x32xf32>
    %cst_84 = arith.constant 0.000000e+00 : f32
    %83 = vector.broadcast %cst_84 : f32 to vector<64x32xf32>
    %84 = arith.maximumf %82, %83 : vector<64x32xf32>
    %c0_85 = arith.constant 0 : index
    %c0_86 = arith.constant 0 : index
    %c0_87 = arith.constant 0 : index
    %85 = vector.load %arg11[%c0_85, %c0_86, %c0_87] : memref<1x64x32xf32, #tpu.memory_space<vmem>>, vector<1x64x32xf32>
    %86 = vector.shape_cast %85 : vector<1x64x32xf32> to vector<64x32xf32>
    %87 = vector.shape_cast %84 : vector<64x32xf32> to vector<1x64x32xf32>
    tpu.vector_store %arg11[%c0_85, %c0_86, %c0_87], %87 {strides = array<i32>} : memref<1x64x32xf32, #tpu.memory_space<vmem>>, vector<1x64x32xf32>,
    return
  }
  func.func @transform_0(%arg0: i32) -> (i32, i32, i32) {
    %c0_i32 = arith.constant 0 : i32
    %c0_i32_0 = arith.constant 0 : i32
    %c0_i32_1 = arith.constant 0 : i32
    return %arg0, %c0_i32, %c0_i32_0 : i32, i32, i32
  }
  func.func @transform_1(%arg0: i32) -> (i32, i32) {
    %c0_i32 = arith.constant 0 : i32
    %c0_i32_0 = arith.constant 0 : i32
    %c0_i32_1 = arith.constant 0 : i32
    return %c0_i32, %c0_i32_0 : i32, i32
  }
  func.func @transform_2(%arg0: i32) -> (i32, i32) {
    %c0_i32 = arith.constant 0 : i32
    %c0_i32_0 = arith.constant 0 : i32
    %c0_i32_1 = arith.constant 0 : i32
    return %c0_i32, %c0_i32_0 : i32, i32
  }
  func.func @transform_3(%arg0: i32) -> (i32, i32) {
    %c0_i32 = arith.constant 0 : i32
    %c0_i32_0 = arith.constant 0 : i32
    %c0_i32_1 = arith.constant 0 : i32
    return %c0_i32, %c0_i32_0 : i32, i32
  }
  func.func @transform_4(%arg0: i32) -> (i32, i32, i32) {
    %c0_i32 = arith.constant 0 : i32
    %c0_i32_0 = arith.constant 0 : i32
    %c0_i32_1 = arith.constant 0 : i32
    %c0_i32_2 = arith.constant 0 : i32
    return %c0_i32, %c0_i32_0, %c0_i32_1 : i32, i32, i32
  }
  func.func @transform_5(%arg0: i32) -> (i32, i32) {
    %c0_i32 = arith.constant 0 : i32
    %c0_i32_0 = arith.constant 0 : i32
    %c0_i32_1 = arith.constant 0 : i32
    return %c0_i32, %c0_i32_0 : i32, i32
  }
  func.func @transform_6(%arg0: i32) -> (i32, i32) {
    %c0_i32 = arith.constant 0 : i32
    %c0_i32_0 = arith.constant 0 : i32
    %c0_i32_1 = arith.constant 0 : i32
    return %c0_i32, %c0_i32_0 : i32, i32
  }
  func.func @transform_7(%arg0: i32) -> (i32, i32) {
    %c0_i32 = arith.constant 0 : i32
    %c0_i32_0 = arith.constant 0 : i32
    %c0_i32_1 = arith.constant 0 : i32
    return %c0_i32, %c0_i32_0 : i32, i32
  }
  func.func @transform_8(%arg0: i32) -> (i32, i32) {
    %c0_i32 = arith.constant 0 : i32
    %c0_i32_0 = arith.constant 0 : i32
    %c0_i32_1 = arith.constant 0 : i32
    return %c0_i32, %c0_i32_0 : i32, i32
  }
  func.func @transform_9(%arg0: i32) -> (i32, i32) {
    %c0_i32 = arith.constant 0 : i32
    %c0_i32_0 = arith.constant 0 : i32
    %c0_i32_1 = arith.constant 0 : i32
    return %c0_i32, %c0_i32_0 : i32, i32
  }
  func.func @transform_10(%arg0: i32) -> (i32, i32, i32) {
    %c0_i32 = arith.constant 0 : i32
    %c0_i32_0 = arith.constant 0 : i32
    %c0_i32_1 = arith.constant 0 : i32
    return %arg0, %c0_i32, %c0_i32_0 : i32, i32, i32
  }
}

</mosaic_0001>

<llo_original>
// kernel: residual_block_forward.1
$region0: #{residual_block_forward.1}
  #allocation0 [shape = 'u32[]', space=smem, size = 0x4, offset = 0x4, fixed_abs, tag = 'smem constant byte address 0x4 - core index']
  #allocation1 [shape = 'u32[144,128]{1,0:T(1,128)}', space=vmem, size = 0x12000, scoped, tag = 'internal scratch']
  #allocation2 [shape = 'f32[18,32,8]{2,1,0:T(8,128)}', space=vmem, size = 0x48000, scoped, tag = 'scratch operand']
  %s0 = inlined_call_operand.vmem [shape: f32[2,256,8], index: 0, kind: input, shape index: {}]
  %s1 = inlined_call_operand.vmem [shape: f32[64,256], index: 1, kind: input, shape index: {}]
  %s2 = inlined_call_operand.vmem [shape: f32[8,8], index: 2, kind: input, shape index: {}]
  %s3 = inlined_call_operand.vmem [shape: f32[1,8], index: 3, kind: input, shape index: {}]
  %s4 = inlined_call_operand.vmem [shape: f32[9,8,8], index: 4, kind: input, shape index: {}]
  %s5 = inlined_call_operand.vmem [shape: f32[1,8], index: 5, kind: input, shape index: {}]
  %s6 = inlined_call_operand.vmem [shape: f32[8,32], index: 6, kind: input, shape index: {}]
  %s7 = inlined_call_operand.vmem [shape: f32[1,32], index: 7, kind: input, shape index: {}]
  %s8 = inlined_call_operand.vmem [shape: f32[8,32], index: 8, kind: input, shape index: {}]
  %s9 = inlined_call_operand.vmem [shape: f32[1,32], index: 9, kind: input, shape index: {}]
  %s10 = inlined_call_operand.hbm [shape: f32[2,64,32], index: 10, kind: output, shape index: {}]
  %s11 = sld [smem:[#allocation0]]
  $region73: #{residual_block_forward.1} parent=0
    _
  %s13 = ssub.s32 1, %s11
  %s14 = scalar_select 0, %s13, %s11
  $region1: #{residual_block_forward.1} parent=0
    #allocation3 [shape = 'u8[65536]{0}', space=vmem, size = 0x10000, scoped, tag = 'output window, operand 0']
    #allocation4 [shape = 's32[2]{0}', space=sflag, size = 0x8, scoped, tag = 'scoped memory for residual_block_forward.1']
    %15 = vsyncpa [#allocation4], 0
    %s16 = scalar_lea.sflag [#allocation4], 1
    %17 = vsyncpa %s16, 0
    loop: start=0, step=1, limit=4
    $region2: #{residual_block_forward.1} parent=1 // loop_pre_header
      _
    $region3: #{residual_block_forward.1} parent=1 // loop_header
      %s19 = sphi 0, %s23
      %p20 = scmp.ge.s32.totalorder %s19, 4
      %s29 = sphi 0, %s31
      %s32 = sphi 0, %s29
      %s33 = sphi 0, %s32
      %s49 = sphi 0, %s33
      %s53 = sphi 0, %s53
      %s55 = sphi 0, %s53
      %s56 = sphi 0, %s55
      %s70 = sphi 0, %s56
      %s74 = sphi 0, %s74
      %s76 = sphi 0, %s74
      %s77 = sphi 0, %s76
      %s91 = sphi 0, %s77
      %s95 = sphi 0, %s95
      %s97 = sphi 0, %s95
      %s98 = sphi 0, %s97
      %s112 = sphi 0, %s98
      %s116 = sphi 0, %s116
      %s118 = sphi 0, %s116
      %s119 = sphi 0, %s118
      %s133 = sphi 0, %s119
      %s137 = sphi 0, %s137
      %s139 = sphi 0, %s137
      %s140 = sphi 0, %s139
      %s154 = sphi 0, %s140
      %s158 = sphi 0, %s158
      %s160 = sphi 0, %s158
      %s161 = sphi 0, %s160
      %s175 = sphi 0, %s161
      %s179 = sphi 0, %s179
      %s181 = sphi 0, %s179
      %s182 = sphi 0, %s181
      %s196 = sphi 0, %s182
      %s200 = sphi 0, %s200
      %s202 = sphi 0, %s200
      %s203 = sphi 0, %s202
      %s217 = sphi 0, %s203
      %s221 = sphi 0, %s221
      %s223 = sphi 0, %s221
      %s224 = sphi 0, %s223
      %s238 = sphi 0, %s224
      %s244 = sphi 0, %s246
      %s247 = sphi 0, %s244
      %s248 = sphi 0, %s247
      %s264 = sphi 0, %s248
    $region4: #{residual_block_forward.1} parent=1 // loop_header_branch
      %22 = sbr.rel (%p20) target = $region8
    $region5: #{residual_block_forward.1} parent=1 // loop_body
      %s24 = ssub.s32 %s19, 1
      %s25 = ssub.s32 %s19, 2
      %s26 = sadd.s32 %s19, 1
      %s27 = ssub.s32 %s19, %s26
      %p28 = scmp.eq.s32.totalorder %s27, 0
      %s30 = sadd.s32 %s29, 1
      %s31 = scalar_select %p28, %s29, %s30
      %p34 = pneg %p28
      %p35 = scmp.eq.s32.totalorder %s19, 1
      %p36 = por %p34, %p35
      %p37 = scmp.ne.s32.totalorder %s29, %s32
      %p38 = scmp.eq.s32.totalorder %s19, 0
      %p39 = por %p37, %p38
      %p40 = scmp.ne.s32.totalorder %s29, %s32
      %p41 = scmp.eq.s32.totalorder %s24, 1
      %p42 = por %p40, %p41
      %p43 = scmp.ne.s32.totalorder %s32, %s33
      %p44 = scmp.eq.s32.totalorder %s24, 0
      %p45 = por %p43, %p44
      %p46 = scmp.ne.s32.totalorder %s32, %s33
      %p47 = scmp.eq.s32.totalorder %s25, 1
      %p48 = por %p46, %p47
      %p50 = scmp.ne.s32.totalorder %s33, %s49
      %p51 = scmp.eq.s32.totalorder %s25, 0
      %p52 = por %p50, %p51
      %s54 = sadd.s32 %s53, 1
      %p57 = scmp.eq.s32.totalorder %s19, 1
      %p58 = scmp.ne.s32.totalorder %s53, %s55
      %p59 = scmp.eq.s32.totalorder %s19, 0
      %p60 = por %p58, %p59
      %p61 = scmp.ne.s32.totalorder %s53, %s55
      %p62 = scmp.eq.s32.totalorder %s24, 1
      %p63 = por %p61, %p62
      %p64 = scmp.ne.s32.totalorder %s55, %s56
      %p65 = scmp.eq.s32.totalorder %s24, 0
      %p66 = por %p64, %p65
      %p67 = scmp.ne.s32.totalorder %s55, %s56
      %p68 = scmp.eq.s32.totalorder %s25, 1
      %p69 = por %p67, %p68
      %p71 = scmp.ne.s32.totalorder %s56, %s70
      %p72 = scmp.eq.s32.totalorder %s25, 0
      %p73 = por %p71, %p72
      %s75 = sadd.s32 %s74, 1
      %p78 = scmp.eq.s32.totalorder %s19, 1
      %p79 = scmp.ne.s32.totalorder %s74, %s76
      %p80 = scmp.eq.s32.totalorder %s19, 0
      %p81 = por %p79, %p80
      %p82 = scmp.ne.s32.totalorder %s74, %s76
      %p83 = scmp.eq.s32.totalorder %s24, 1
      %p84 = por %p82, %p83
      %p85 = scmp.ne.s32.totalorder %s76, %s77
      %p86 = scmp.eq.s32.totalorder %s24, 0
      %p87 = por %p85, %p86
      %p88 = scmp.ne.s32.totalorder %s76, %s77
      %p89 = scmp.eq.s32.totalorder %s25, 1
      %p90 = por %p88, %p89
      %p92 = scmp.ne.s32.totalorder %s77, %s91
      %p93 = scmp.eq.s32.totalorder %s25, 0
      %p94 = por %p92, %p93
      %s96 = sadd.s32 %s95, 1
      %p99 = scmp.eq.s32.totalorder %s19, 1
      %p100 = scmp.ne.s32.totalorder %s95, %s97
      %p101 = scmp.eq.s32.totalorder %s19, 0
      %p102 = por %p100, %p101
      %p103 = scmp.ne.s32.totalorder %s95, %s97
      %p104 = scmp.eq.s32.totalorder %s24, 1
      %p105 = por %p103, %p104
      %p106 = scmp.ne.s32.totalorder %s97, %s98
      %p107 = scmp.eq.s32.totalorder %s24, 0
      %p108 = por %p106, %p107
      %p109 = scmp.ne.s32.totalorder %s97, %s98
      %p110 = scmp.eq.s32.totalorder %s25, 1
      %p111 = por %p109, %p110
      %p113 = scmp.ne.s32.totalorder %s98, %s112
      %p114 = scmp.eq.s32.totalorder %s25, 0
      %p115 = por %p113, %p114
      %s117 = sadd.s32 %s116, 1
      %p120 = scmp.eq.s32.totalorder %s19, 1
      %p121 = scmp.ne.s32.totalorder %s116, %s118
      %p122 = scmp.eq.s32.totalorder %s19, 0
      %p123 = por %p121, %p122
      %p124 = scmp.ne.s32.totalorder %s116, %s118
      %p125 = scmp.eq.s32.totalorder %s24, 1
      %p126 = por %p124, %p125
      %p127 = scmp.ne.s32.totalorder %s118, %s119
      %p128 = scmp.eq.s32.totalorder %s24, 0
      %p129 = por %p127, %p128
      %p130 = scmp.ne.s32.totalorder %s118, %s119
      %p131 = scmp.eq.s32.totalorder %s25, 1
      %p132 = por %p130, %p131
      %p134 = scmp.ne.s32.totalorder %s119, %s133
      %p135 = scmp.eq.s32.totalorder %s25, 0
      %p136 = por %p134, %p135
      %s138 = sadd.s32 %s137, 1
      %p141 = scmp.eq.s32.totalorder %s19, 1
      %p142 = scmp.ne.s32.totalorder %s137, %s139
      %p143 = scmp.eq.s32.totalorder %s19, 0
      %p144 = por %p142, %p143
      %p145 = scmp.ne.s32.totalorder %s137, %s139
      %p146 = scmp.eq.s32.totalorder %s24, 1
      %p147 = por %p145, %p146
      %p148 = scmp.ne.s32.totalorder %s139, %s140
      %p149 = scmp.eq.s32.totalorder %s24, 0
      %p150 = por %p148, %p149
      %p151 = scmp.ne.s32.totalorder %s139, %s140
      %p152 = scmp.eq.s32.totalorder %s25, 1
      %p153 = por %p151, %p152
      %p155 = scmp.ne.s32.totalorder %s140, %s154
      %p156 = scmp.eq.s32.totalorder %s25, 0
      %p157 = por %p155, %p156
      %s159 = sadd.s32 %s158, 1
      %p162 = scmp.eq.s32.totalorder %s19, 1
      %p163 = scmp.ne.s32.totalorder %s158, %s160
      %p164 = scmp.eq.s32.totalorder %s19, 0
      %p165 = por %p163, %p164
      %p166 = scmp.ne.s32.totalorder %s158, %s160
      %p167 = scmp.eq.s32.totalorder %s24, 1
      %p168 = por %p166, %p167
      %p169 = scmp.ne.s32.totalorder %s160, %s161
      %p170 = scmp.eq.s32.totalorder %s24, 0
      %p171 = por %p169, %p170
      %p172 = scmp.ne.s32.totalorder %s160, %s161
      %p173 = scmp.eq.s32.totalorder %s25, 1
      %p174 = por %p172, %p173
      %p176 = scmp.ne.s32.totalorder %s161, %s175
      %p177 = scmp.eq.s32.totalorder %s25, 0
      %p178 = por %p176, %p177
      %s180 = sadd.s32 %s179, 1
      %p183 = scmp.eq.s32.totalorder %s19, 1
      %p184 = scmp.ne.s32.totalorder %s179, %s181
      %p185 = scmp.eq.s32.totalorder %s19, 0
      %p186 = por %p184, %p185
      %p187 = scmp.ne.s32.totalorder %s179, %s181
      %p188 = scmp.eq.s32.totalorder %s24, 1
      %p189 = por %p187, %p188
      %p190 = scmp.ne.s32.totalorder %s181, %s182
      %p191 = scmp.eq.s32.totalorder %s24, 0
      %p192 = por %p190, %p191
      %p193 = scmp.ne.s32.totalorder %s181, %s182
      %p194 = scmp.eq.s32.totalorder %s25, 1
      %p195 = por %p193, %p194
      %p197 = scmp.ne.s32.totalorder %s182, %s196
      %p198 = scmp.eq.s32.totalorder %s25, 0
      %p199 = por %p197, %p198
      %s201 = sadd.s32 %s200, 1
      %p204 = scmp.eq.s32.totalorder %s19, 1
      %p205 = scmp.ne.s32.totalorder %s200, %s202
      %p206 = scmp.eq.s32.totalorder %s19, 0
      %p207 = por %p205, %p206
      %p208 = scmp.ne.s32.totalorder %s200, %s202
      %p209 = scmp.eq.s32.totalorder %s24, 1
      %p210 = por %p208, %p209
      %p211 = scmp.ne.s32.totalorder %s202, %s203
      %p212 = scmp.eq.s32.totalorder %s24, 0
      %p213 = por %p211, %p212
      %p214 = scmp.ne.s32.totalorder %s202, %s203
      %p215 = scmp.eq.s32.totalorder %s25, 1
      %p216 = por %p214, %p215
      %p218 = scmp.ne.s32.totalorder %s203, %s217
      %p219 = scmp.eq.s32.totalorder %s25, 0
      %p220 = por %p218, %p219
      %s222 = sadd.s32 %s221, 1
      %p225 = scmp.eq.s32.totalorder %s19, 1
      %p226 = scmp.ne.s32.totalorder %s221, %s223
      %p227 = scmp.eq.s32.totalorder %s19, 0
      %p228 = por %p226, %p227
      %p229 = scmp.ne.s32.totalorder %s221, %s223
      %p230 = scmp.eq.s32.totalorder %s24, 1
      %p231 = por %p229, %p230
      %p232 = scmp.ne.s32.totalorder %s223, %s224
      %p233 = scmp.eq.s32.totalorder %s24, 0
      %p234 = por %p232, %p233
      %p235 = scmp.ne.s32.totalorder %s223, %s224
      %p236 = scmp.eq.s32.totalorder %s25, 1
      %p237 = por %p235, %p236
      %p239 = scmp.ne.s32.totalorder %s224, %s238
      %p240 = scmp.eq.s32.totalorder %s25, 0
      %p241 = por %p239, %p240
      %s242 = ssub.s32 %s19, %s26
      %p243 = scmp.eq.s32.totalorder %s242, 0
      %s245 = sadd.s32 %s244, 1
      %s246 = scalar_select %p243, %s244, %s245
      %p249 = pneg %p243
      %p250 = scmp.eq.s32.totalorder %s19, 1
      %p251 = por %p249, %p250
      %p252 = scmp.ne.s32.totalorder %s244, %s247
      %p253 = scmp.eq.s32.totalorder %s19, 0
      %p254 = por %p252, %p253
      %p255 = scmp.ne.s32.totalorder %s244, %s247
      %p256 = scmp.eq.s32.totalorder %s24, 1
      %p257 = por %p255, %p256
      %p258 = scmp.ne.s32.totalorder %s247, %s248
      %p259 = scmp.eq.s32.totalorder %s24, 0
      %p260 = por %p258, %p259
      %p261 = scmp.ne.s32.totalorder %s247, %s248
      %p262 = scmp.eq.s32.totalorder %s25, 1
      %p263 = por %p261, %p262
      %p265 = scmp.ne.s32.totalorder %s248, %s264
      %p266 = scmp.eq.s32.totalorder %s25, 0
      %p267 = por %p265, %p266
      %p268 = scmp.le.s32.totalorder 1, %s19
      %p269 = scmp.lt.s32.totalorder %s19, 3
      %p270 = pnand %p268, %p269
      %p271 = pneg %p270
      // Predicated region
      $region9: #{residual_block_forward.1} parent=5 // pred_check
        _
      $region10: #{residual_block_forward.1} parent=5 // pred_check_branch
        %273 = sbr.rel (%p270) target = $region12
      $region11: #{residual_block_forward.1} parent=5 // pred_region
        %s274 = ssub.s32 %s19, 1
        // Predicated region
        $region13: #{residual_block_forward.1} parent=11 // pred_check
          %p275 = pneg %p66
        $region14: #{residual_block_forward.1} parent=11 // pred_check_branch
          %277 = sbr.rel (%p275) target = $region16
        $region15: #{residual_block_forward.1} parent=11 // pred_region
          _
        $region16: #{residual_block_forward.1} parent=11 // pred_fallthru
          _
        // Predicated region
        $region17: #{residual_block_forward.1} parent=11 // pred_check
          %p278 = pneg %p87
        $region18: #{residual_block_forward.1} parent=11 // pred_check_branch
          %280 = sbr.rel (%p278) target = $region20
        $region19: #{residual_block_forward.1} parent=11 // pred_region
          _
        $region20: #{residual_block_forward.1} parent=11 // pred_fallthru
          _
        // Predicated region
        $region21: #{residual_block_forward.1} parent=11 // pred_check
          %p281 = pneg %p108
        $region22: #{residual_block_forward.1} parent=11 // pred_check_branch
          %283 = sbr.rel (%p281) target = $region24
        $region23: #{residual_block_forward.1} parent=11 // pred_region
          _
        $region24: #{residual_block_forward.1} parent=11 // pred_fallthru
          _
        // Predicated region
        $region25: #{residual_block_forward.1} parent=11 // pred_check
          %p284 = pneg %p129
        $region26: #{residual_block_forward.1} parent=11 // pred_check_branch
          %286 = sbr.rel (%p284) target = $region28
        $region27: #{residual_block_forward.1} parent=11 // pred_region
          _
        $region28: #{residual_block_forward.1} parent=11 // pred_fallthru
          _
        // Predicated region
        $region29: #{residual_block_forward.1} parent=11 // pred_check
          %p287 = pneg %p150
        $region30: #{residual_block_forward.1} parent=11 // pred_check_branch
          %289 = sbr.rel (%p287) target = $region32
        $region31: #{residual_block_forward.1} parent=11 // pred_region
          _
        $region32: #{residual_block_forward.1} parent=11 // pred_fallthru
          _
        // Predicated region
        $region33: #{residual_block_forward.1} parent=11 // pred_check
          %p290 = pneg %p171
        $region34: #{residual_block_forward.1} parent=11 // pred_check_branch
          %292 = sbr.rel (%p290) target = $region36
        $region35: #{residual_block_forward.1} parent=11 // pred_region
          _
        $region36: #{residual_block_forward.1} parent=11 // pred_fallthru
          _
        // Predicated region
        $region37: #{residual_block_forward.1} parent=11 // pred_check
          %p293 = pneg %p192
        $region38: #{residual_block_forward.1} parent=11 // pred_check_branch
          %295 = sbr.rel (%p293) target = $region40
        $region39: #{residual_block_forward.1} parent=11 // pred_region
          _
        $region40: #{residual_block_forward.1} parent=11 // pred_fallthru
          _
        // Predicated region
        $region41: #{residual_block_forward.1} parent=11 // pred_check
          %p296 = pneg %p213
        $region42: #{residual_block_forward.1} parent=11 // pred_check_branch
          %298 = sbr.rel (%p296) target = $region44
        $region43: #{residual_block_forward.1} parent=11 // pred_region
          _
        $region44: #{residual_block_forward.1} parent=11 // pred_fallthru
          _
        // Predicated region
        $region45: #{residual_block_forward.1} parent=11 // pred_check
          %p299 = pneg %p234
        $region46: #{residual_block_forward.1} parent=11 // pred_check_branch
          %301 = sbr.rel (%p299) target = $region48
        $region47: #{residual_block_forward.1} parent=11 // pred_region
          _
        $region48: #{residual_block_forward.1} parent=11 // pred_fallthru
          _
      $region12: #{residual_block_forward.1} parent=5 // pred_fallthru
        _
      %p302 = scmp.lt.s32.totalorder %s19, 2
      // Predicated region
      $region49: #{residual_block_forward.1} parent=5 // pred_check
        %p303 = pneg %p302
      $region50: #{residual_block_forward.1} parent=5 // pred_check_branch
        %305 = sbr.rel (%p303) target = $region52
      $region51: #{residual_block_forward.1} parent=5 // pred_region
        // Predicated region
        $region53: #{residual_block_forward.1} parent=51 // pred_check
          %p306 = pneg %p39
        $region54: #{residual_block_forward.1} parent=51 // pred_check_branch
          %308 = sbr.rel (%p306) target = $region56
        $region55: #{residual_block_forward.1} parent=51 // pred_region
          %p309 = scmp.lt.s32.totalorder %s19, 1
          %s310 = scalar_select %p309, %s19, 1
          %s311 = smul.addr %s310, 32
          %s312 = smul.addr %s311, 8
          %s313 = scalar_lea.vmem %s0, %s312
        $region56: #{residual_block_forward.1} parent=51 // pred_fallthru
          _
      $region52: #{residual_block_forward.1} parent=5 // pred_fallthru
        _
      %p314 = scmp.le.s32.totalorder 1, %s19
      %p315 = scmp.lt.s32.totalorder %s19, 3
      %p316 = pnand %p314, %p315
      %p317 = pneg %p316
      // Predicated region
      $region57: #{residual_block_forward.1} parent=5 // pred_check
        _
      $region58: #{residual_block_forward.1} parent=5 // pred_check_branch
        %319 = sbr.rel (%p316) target = $region60
      $region59: #{residual_block_forward.1} parent=5 // pred_region
        %s320 = ssub.s32 %s19, 1
        %p321 = scmp.lt.s32.totalorder %s24, 1
        %s322 = scalar_select %p321, %s24, 1
        %s323 = smul.addr %s322, 32
        %s324 = smul.addr %s323, 8
        %s325 = scalar_lea.vmem %s0, %s324
        %p326 = pneg %p45
        %p327 = pneg %p42
        %p328 = pneg %p66
        %p329 = pneg %p63
        %p330 = pneg %p87
        %p331 = pneg %p84
        %p332 = pneg %p108
        %p333 = pneg %p105
        %p334 = pneg %p129
        %p335 = pneg %p126
        %p336 = pneg %p150
        %p337 = pneg %p147
        %p338 = pneg %p171
        %p339 = pneg %p168
        %p340 = pneg %p192
        %p341 = pneg %p189
        %p342 = pneg %p213
        %p343 = pneg %p210
        %p344 = pneg %p234
        %p345 = pneg %p231
        %p346 = pneg %p260
        %p347 = pneg %p257
        %s348 = sand.u32 %s247, 1
        %s349 = scalar_lea.sflag [#allocation4], %s348
        %s350 = sand.u32 %s247, 1
        %s351 = smul.addr %s350, 64
        %s352 = scalar_lea.vmem [#allocation3], %s351
        %p353 = scmp.lt.s32.totalorder %s24, 1
        %s354 = scalar_select %p353, %s24, 1
        %s355 = smul.addr %s354, 32
        %s356 = smul.addr %s355, 8
        %s357 = scalar_lea.vmem %s0, %s356
        %v358 = vld [vmem:[%s357] sm:$0xff]
        %v359 = vld [vmem:[%s357 + $0x8] sm:$0xff]
        %v360 = vld [vmem:[%s357 + $0x10] sm:$0xff]
        %v361 = vld [vmem:[%s357 + $0x18] sm:$0xff]
        %v362 = vld [vmem:[%s357 + $0x20] sm:$0xff]
        %v363 = vld [vmem:[%s357 + $0x28] sm:$0xff]
        %v364 = vld [vmem:[%s357 + $0x30] sm:$0xff]
        %v365 = vld [vmem:[%s357 + $0x38] sm:$0xff]
        %v366 = vld [vmem:[%s357 + $0x40] sm:$0xff]
        %v367 = vld [vmem:[%s357 + $0x48] sm:$0xff]
        %v368 = vld [vmem:[%s357 + $0x50] sm:$0xff]
        %v369 = vld [vmem:[%s357 + $0x58] sm:$0xff]
        %v370 = vld [vmem:[%s357 + $0x60] sm:$0xff]
        %v371 = vld [vmem:[%s357 + $0x68] sm:$0xff]
        %v372 = vld [vmem:[%s357 + $0x70] sm:$0xff]
        %v373 = vld [vmem:[%s357 + $0x78] sm:$0xff]
        %v374 = vld [vmem:[%s357 + $0x80] sm:$0xff]
        %v375 = vld [vmem:[%s357 + $0x88] sm:$0xff]
        %v376 = vld [vmem:[%s357 + $0x90] sm:$0xff]
        %v377 = vld [vmem:[%s357 + $0x98] sm:$0xff]
        %v378 = vld [vmem:[%s357 + $0xa0] sm:$0xff]
        %v379 = vld [vmem:[%s357 + $0xa8] sm:$0xff]
        %v380 = vld [vmem:[%s357 + $0xb0] sm:$0xff]
        %v381 = vld [vmem:[%s357 + $0xb8] sm:$0xff]
        %v382 = vld [vmem:[%s357 + $0xc0] sm:$0xff]
        %v383 = vld [vmem:[%s357 + $0xc8] sm:$0xff]
        %v384 = vld [vmem:[%s357 + $0xd0] sm:$0xff]
        %v385 = vld [vmem:[%s357 + $0xd8] sm:$0xff]
        %v386 = vld [vmem:[%s357 + $0xe0] sm:$0xff]
        %v387 = vld [vmem:[%s357 + $0xe8] sm:$0xff]
        %v388 = vld [vmem:[%s357 + $0xf0] sm:$0xff]
        %v389 = vld [vmem:[%s357 + $0xf8] sm:$0xff]
        %v390 = vld [vmem:[%s2] sm:$0xff]
        %v391 = vld [vmem:[%s3] sm:$0x1]
        %v393 = vlaneseq
        %v394 = vshrl.u32 %v393, 7
        %v395 = vsub.s32 0, %v394
        %v396 = vrot.slane %v391, %v395
        %vm398 = vcmask 64512
        %v400 = vsel %vm398, %v358, 0
        %v403 = vsel %vm398, %v359, 0
        %v406 = vsel %vm398, %v360, 0
        %v409 = vsel %vm398, %v361, 0
        %v412 = vsel %vm398, %v362, 0
        %v415 = vsel %vm398, %v363, 0
        %v418 = vsel %vm398, %v364, 0
        %v421 = vsel %vm398, %v365, 0
        %v424 = vsel %vm398, %v366, 0
        %v427 = vsel %vm398, %v367, 0
        %v430 = vsel %vm398, %v368, 0
        %v433 = vsel %vm398, %v369, 0
        %v436 = vsel %vm398, %v370, 0
        %v439 = vsel %vm398, %v371, 0
        %v442 = vsel %vm398, %v372, 0
        %v445 = vsel %vm398, %v373, 0
        %v448 = vsel %vm398, %v374, 0
        %v451 = vsel %vm398, %v375, 0
        %v454 = vsel %vm398, %v376, 0
        %v457 = vsel %vm398, %v377, 0
        %v460 = vsel %vm398, %v378, 0
        %v463 = vsel %vm398, %v379, 0
        %v466 = vsel %vm398, %v380, 0
        %v469 = vsel %vm398, %v381, 0
        %v472 = vsel %vm398, %v382, 0
        %v475 = vsel %vm398, %v383, 0
        %v478 = vsel %vm398, %v384, 0
        %v481 = vsel %vm398, %v385, 0
        %v484 = vsel %vm398, %v386, 0
        %v487 = vsel %vm398, %v387, 0
        %v490 = vsel %vm398, %v388, 0
        %v493 = vsel %vm398, %v389, 0
        %495 = vmatprep.subr.mxu0 0.0
        %496 = vmatpush1.msra.mxu0 0.0
        %497 = vmatprep.subr.mxu0 0.0
        %498 = vmatpush1.msra.mxu0 0.0
        %499 = vmatprep.subr.mxu0 0.0
        %500 = vmatpush1.msra.mxu0 0.0
        %501 = vmatprep.subr.mxu0 0.0
        %502 = vmatpush1.msra.mxu0 0.0
        %503 = vmatprep.subr.mxu0 0.0
        %504 = vmatpush1.msra.mxu0 0.0
        %505 = vmatprep.subr.mxu0 0.0
        %506 = vmatpush1.msra.mxu0 0.0
        %507 = vmatprep.subr.mxu0 0.0
        %508 = vmatpush1.msra.mxu0 0.0
        %509 = vmatprep.subr.mxu0 0.0
        %510 = vmatpush1.msra.mxu0 0.0
        %511 = vmatprep.subr.mxu0 0.0
        %512 = vmatpush1.msra.mxu0 0.0
        %513 = vmatprep.subr.mxu0 0.0
        %514 = vmatpush1.msra.mxu0 0.0
        %515 = vmatprep.subr.mxu0 0.0
        %516 = vmatpush1.msra.mxu0 0.0
        %517 = vmatprep.subr.mxu0 0.0
        %518 = vmatpush1.msra.mxu0 0.0
        %519 = vmatprep.subr.mxu0 0.0
        %520 = vmatpush1.msra.mxu0 0.0
        %521 = vmatprep.subr.mxu0 0.0
        %522 = vmatpush1.msra.mxu0 0.0
        %523 = vmatprep.subr.mxu0 0.0
        %524 = vmatpush1.msra.mxu0 0.0
        %525 = vmatprep.subr.mxu0 0.0
        %526 = vmatpush1.msra.mxu0 %v390
        %527 = vmatprep.subr.mxu0 0.0
        %528 = vmatpush2.msra.mxu0 0.0
        %529 = vmatprep.subr.mxu0 0.0
        %530 = vmatpush2.msra.mxu0 0.0
        %531 = vmatprep.subr.mxu0 0.0
        %532 = vmatpush2.msra.mxu0 0.0
        %533 = vmatprep.subr.mxu0 0.0
        %534 = vmatpush2.msra.mxu0 0.0
        %535 = vmatprep.subr.mxu0 0.0
        %536 = vmatpush2.msra.mxu0 0.0
        %537 = vmatprep.subr.mxu0 0.0
        %538 = vmatpush2.msra.mxu0 0.0
        %539 = vmatprep.subr.mxu0 0.0
        %540 = vmatpush2.msra.mxu0 0.0
        %541 = vmatprep.subr.mxu0 0.0
        %542 = vmatpush2.msra.mxu0 0.0
        %543 = vmatprep.subr.mxu0 0.0
        %544 = vmatpush2.msra.mxu0 0.0
        %545 = vmatprep.subr.mxu0 0.0
        %546 = vmatpush2.msra.mxu0 0.0
        %547 = vmatprep.subr.mxu0 0.0
        %548 = vmatpush2.msra.mxu0 0.0
        %549 = vmatprep.subr.mxu0 0.0
        %550 = vmatpush2.msra.mxu0 0.0
        %551 = vmatprep.subr.mxu0 0.0
        %552 = vmatpush2.msra.mxu0 0.0
        %553 = vmatprep.subr.mxu0 0.0
        %554 = vmatpush2.msra.mxu0 0.0
        %555 = vmatprep.subr.mxu0 0.0
        %556 = vmatpush2.msra.mxu0 0.0
        %557 = vmatprep.subr.mxu0 0.0
        %558 = vmatpush2.msra.mxu0 0.0
        %559 = vmatprep.mubr.f32.mxu0 0.0
        %560 = vmatmul.mubr.f32.gmra.mxu0 %v400
        %v561 = vpop.f32.mrf.mxu0
        %v562 = vadd.f32 %v396, %v561
        %v563 = vpop.f32.mrf.mxu0
        %564 = vmatprep.mubr.f32.mxu0 0.0
        %565 = vmatmul.mubr.f32.gmra.mxu0 %v403
        %v566 = vpop.f32.mrf.mxu0
        %v567 = vadd.f32 %v396, %v566
        %v568 = vpop.f32.mrf.mxu0
        %569 = vmatprep.mubr.f32.mxu0 0.0
        %570 = vmatmul.mubr.f32.gmra.mxu0 %v406
        %v571 = vpop.f32.mrf.mxu0
        %v572 = vadd.f32 %v396, %v571
        %v573 = vpop.f32.mrf.mxu0
        %574 = vmatprep.mubr.f32.mxu0 0.0
        %575 = vmatmul.mubr.f32.gmra.mxu0 %v409
        %v576 = vpop.f32.mrf.mxu0
        %v577 = vadd.f32 %v396, %v576
        %v578 = vpop.f32.mrf.mxu0
        %579 = vmatprep.mubr.f32.mxu0 0.0
        %580 = vmatmul.mubr.f32.gmra.mxu0 %v412
        %v581 = vpop.f32.mrf.mxu0
        %v582 = vadd.f32 %v396, %v581
        %v583 = vpop.f32.mrf.mxu0
        %584 = vmatprep.mubr.f32.mxu0 0.0
        %585 = vmatmul.mubr.f32.gmra.mxu0 %v415
        %v586 = vpop.f32.mrf.mxu0
        %v587 = vadd.f32 %v396, %v586
        %v588 = vpop.f32.mrf.mxu0
        %589 = vmatprep.mubr.f32.mxu0 0.0
        %590 = vmatmul.mubr.f32.gmra.mxu0 %v418
        %v591 = vpop.f32.mrf.mxu0
        %v592 = vadd.f32 %v396, %v591
        %v593 = vpop.f32.mrf.mxu0
        %594 = vmatprep.mubr.f32.mxu0 0.0
        %595 = vmatmul.mubr.f32.gmra.mxu0 %v421
        %v596 = vpop.f32.mrf.mxu0
        %v597 = vadd.f32 %v396, %v596
        %v598 = vpop.f32.mrf.mxu0
        %599 = vmatprep.mubr.f32.mxu0 0.0
        %600 = vmatmul.mubr.f32.gmra.mxu0 %v424
        %v601 = vpop.f32.mrf.mxu0
        %v602 = vadd.f32 %v396, %v601
        %v603 = vpop.f32.mrf.mxu0
        %604 = vmatprep.mubr.f32.mxu0 0.0
        %605 = vmatmul.mubr.f32.gmra.mxu0 %v427
        %v606 = vpop.f32.mrf.mxu0
        %v607 = vadd.f32 %v396, %v606
        %v608 = vpop.f32.mrf.mxu0
        %609 = vmatprep.mubr.f32.mxu0 0.0
        %610 = vmatmul.mubr.f32.gmra.mxu0 %v430
        %v611 = vpop.f32.mrf.mxu0
        %v612 = vadd.f32 %v396, %v611
        %v613 = vpop.f32.mrf.mxu0
        %614 = vmatprep.mubr.f32.mxu0 0.0
        %615 = vmatmul.mubr.f32.gmra.mxu0 %v433
        %v616 = vpop.f32.mrf.mxu0
        %v617 = vadd.f32 %v396, %v616
        %v618 = vpop.f32.mrf.mxu0
        %619 = vmatprep.mubr.f32.mxu0 0.0
        %620 = vmatmul.mubr.f32.gmra.mxu0 %v436
        %v621 = vpop.f32.mrf.mxu0
        %v622 = vadd.f32 %v396, %v621
        %v623 = vpop.f32.mrf.mxu0
        %624 = vmatprep.mubr.f32.mxu0 0.0
        %625 = vmatmul.mubr.f32.gmra.mxu0 %v439
        %v626 = vpop.f32.mrf.mxu0
        %v627 = vadd.f32 %v396, %v626
        %v628 = vpop.f32.mrf.mxu0
        %629 = vmatprep.mubr.f32.mxu0 0.0
        %630 = vmatmul.mubr.f32.gmra.mxu0 %v442
        %v631 = vpop.f32.mrf.mxu0
        %v632 = vadd.f32 %v396, %v631
        %v633 = vpop.f32.mrf.mxu0
        %634 = vmatprep.mubr.f32.mxu0 0.0
        %635 = vmatmul.mubr.f32.gmra.mxu0 %v445
        %v636 = vpop.f32.mrf.mxu0
        %v637 = vadd.f32 %v396, %v636
        %v638 = vpop.f32.mrf.mxu0
        %639 = vmatprep.mubr.f32.mxu0 0.0
        %640 = vmatmul.mubr.f32.gmra.mxu0 %v448
        %v641 = vpop.f32.mrf.mxu0
        %v642 = vadd.f32 %v396, %v641
        %v643 = vpop.f32.mrf.mxu0
        %644 = vmatprep.mubr.f32.mxu0 0.0
        %645 = vmatmul.mubr.f32.gmra.mxu0 %v451
        %v646 = vpop.f32.mrf.mxu0
        %v647 = vadd.f32 %v396, %v646
        %v648 = vpop.f32.mrf.mxu0
        %649 = vmatprep.mubr.f32.mxu0 0.0
        %650 = vmatmul.mubr.f32.gmra.mxu0 %v454
        %v651 = vpop.f32.mrf.mxu0
        %v652 = vadd.f32 %v396, %v651
        %v653 = vpop.f32.mrf.mxu0
        %654 = vmatprep.mubr.f32.mxu0 0.0
        %655 = vmatmul.mubr.f32.gmra.mxu0 %v457
        %v656 = vpop.f32.mrf.mxu0
        %v657 = vadd.f32 %v396, %v656
        %v658 = vpop.f32.mrf.mxu0
        %659 = vmatprep.mubr.f32.mxu0 0.0
        %660 = vmatmul.mubr.f32.gmra.mxu0 %v460
        %v661 = vpop.f32.mrf.mxu0
        %v662 = vadd.f32 %v396, %v661
        %v663 = vpop.f32.mrf.mxu0
        %664 = vmatprep.mubr.f32.mxu0 0.0
        %665 = vmatmul.mubr.f32.gmra.mxu0 %v463
        %v666 = vpop.f32.mrf.mxu0
        %v667 = vadd.f32 %v396, %v666
        %v668 = vpop.f32.mrf.mxu0
        %669 = vmatprep.mubr.f32.mxu0 0.0
        %670 = vmatmul.mubr.f32.gmra.mxu0 %v466
        %v671 = vpop.f32.mrf.mxu0
        %v672 = vadd.f32 %v396, %v671
        %v673 = vpop.f32.mrf.mxu0
        %674 = vmatprep.mubr.f32.mxu0 0.0
        %675 = vmatmul.mubr.f32.gmra.mxu0 %v469
        %v676 = vpop.f32.mrf.mxu0
        %v677 = vadd.f32 %v396, %v676
        %v678 = vpop.f32.mrf.mxu0
        %679 = vmatprep.mubr.f32.mxu0 0.0
        %680 = vmatmul.mubr.f32.gmra.mxu0 %v472
        %v681 = vpop.f32.mrf.mxu0
        %v682 = vadd.f32 %v396, %v681
        %v683 = vpop.f32.mrf.mxu0
        %684 = vmatprep.mubr.f32.mxu0 0.0
        %685 = vmatmul.mubr.f32.gmra.mxu0 %v475
        %v686 = vpop.f32.mrf.mxu0
        %v687 = vadd.f32 %v396, %v686
        %v688 = vpop.f32.mrf.mxu0
        %689 = vmatprep.mubr.f32.mxu0 0.0
        %690 = vmatmul.mubr.f32.gmra.mxu0 %v478
        %v691 = vpop.f32.mrf.mxu0
        %v692 = vadd.f32 %v396, %v691
        %v693 = vpop.f32.mrf.mxu0
        %694 = vmatprep.mubr.f32.mxu0 0.0
        %695 = vmatmul.mubr.f32.gmra.mxu0 %v481
        %v696 = vpop.f32.mrf.mxu0
        %v697 = vadd.f32 %v396, %v696
        %v698 = vpop.f32.mrf.mxu0
        %699 = vmatprep.mubr.f32.mxu0 0.0
        %700 = vmatmul.mubr.f32.gmra.mxu0 %v484
        %v701 = vpop.f32.mrf.mxu0
        %v702 = vadd.f32 %v396, %v701
        %v703 = vpop.f32.mrf.mxu0
        %704 = vmatprep.mubr.f32.mxu0 0.0
        %705 = vmatmul.mubr.f32.gmra.mxu0 %v487
        %v706 = vpop.f32.mrf.mxu0
        %v707 = vadd.f32 %v396, %v706
        %v708 = vpop.f32.mrf.mxu0
        %709 = vmatprep.mubr.f32.mxu0 0.0
        %710 = vmatmul.mubr.f32.gmra.mxu0 %v490
        %v711 = vpop.f32.mrf.mxu0
        %v712 = vadd.f32 %v396, %v711
        %v713 = vpop.f32.mrf.mxu0
        %714 = vmatprep.mubr.f32.mxu0 0.0
        %715 = vmatmul.mubr.f32.gmra.mxu0 %v493
        %v716 = vpop.f32.mrf.mxu0
        %v717 = vadd.f32 %v396, %v716
        %v718 = vpop.f32.mrf.mxu0
        %719 = vdwg.mxu0
        %720 = vst.msk [vmem:[#allocation2] sm:$0xff] %vm398, 0.0
        %721 = vst.msk [vmem:[#allocation2 + $0x8] sm:$0xff] %vm398, 0.0
        %722 = vst.msk [vmem:[#allocation2 + $0x10] sm:$0xff] %vm398, 0.0
        %723 = vst.msk [vmem:[#allocation2 + $0x18] sm:$0xff] %vm398, 0.0
        %724 = vst.msk [vmem:[#allocation2 + $0x20] sm:$0xff] %vm398, 0.0
        %725 = vst.msk [vmem:[#allocation2 + $0x28] sm:$0xff] %vm398, 0.0
        %726 = vst.msk [vmem:[#allocation2 + $0x30] sm:$0xff] %vm398, 0.0
        %727 = vst.msk [vmem:[#allocation2 + $0x38] sm:$0xff] %vm398, 0.0
        %728 = vst.msk [vmem:[#allocation2 + $0x40] sm:$0xff] %vm398, 0.0
        %729 = vst.msk [vmem:[#allocation2 + $0x48] sm:$0xff] %vm398, 0.0
        %730 = vst.msk [vmem:[#allocation2 + $0x50] sm:$0xff] %vm398, 0.0
        %731 = vst.msk [vmem:[#allocation2 + $0x58] sm:$0xff] %vm398, 0.0
        %732 = vst.msk [vmem:[#allocation2 + $0x60] sm:$0xff] %vm398, 0.0
        %733 = vst.msk [vmem:[#allocation2 + $0x68] sm:$0xff] %vm398, 0.0
        %734 = vst.msk [vmem:[#allocation2 + $0x70] sm:$0xff] %vm398, 0.0
        %735 = vst.msk [vmem:[#allocation2 + $0x78] sm:$0xff] %vm398, 0.0
        %736 = vst.msk [vmem:[#allocation2 + $0x80] sm:$0xff] %vm398, 0.0
        %737 = vst.msk [vmem:[#allocation2 + $0x88] sm:$0xff] %vm398, 0.0
        %738 = vst.msk [vmem:[#allocation2 + $0x90] sm:$0xff] %vm398, 0.0
        %739 = vst.msk [vmem:[#allocation2 + $0x98] sm:$0xff] %vm398, 0.0
        %740 = vst.msk [vmem:[#allocation2 + $0xa0] sm:$0xff] %vm398, 0.0
        %741 = vst.msk [vmem:[#allocation2 + $0xa8] sm:$0xff] %vm398, 0.0
        %742 = vst.msk [vmem:[#allocation2 + $0xb0] sm:$0xff] %vm398, 0.0
        %743 = vst.msk [vmem:[#allocation2 + $0xb8] sm:$0xff] %vm398, 0.0
        %744 = vst.msk [vmem:[#allocation2 + $0xc0] sm:$0xff] %vm398, 0.0
        %745 = vst.msk [vmem:[#allocation2 + $0xc8] sm:$0xff] %vm398, 0.0
        %746 = vst.msk [vmem:[#allocation2 + $0xd0] sm:$0xff] %vm398, 0.0
        %747 = vst.msk [vmem:[#allocation2 + $0xd8] sm:$0xff] %vm398, 0.0
        %748 = vst.msk [vmem:[#allocation2 + $0xe0] sm:$0xff] %vm398, 0.0
        %749 = vst.msk [vmem:[#allocation2 + $0xe8] sm:$0xff] %vm398, 0.0
        %750 = vst.msk [vmem:[#allocation2 + $0xf0] sm:$0xff] %vm398, 0.0
        %751 = vst.msk [vmem:[#allocation2 + $0xf8] sm:$0xff] %vm398, 0.0
        %752 = vst.msk [vmem:[#allocation2 + $0x100] sm:$0xff] %vm398, 0.0
        %753 = vst.msk [vmem:[#allocation2 + $0x108] sm:$0xff] %vm398, 0.0
        %754 = vst.msk [vmem:[#allocation2 + $0x110] sm:$0xff] %vm398, 0.0
        %755 = vst.msk [vmem:[#allocation2 + $0x118] sm:$0xff] %vm398, 0.0
        %756 = vst.msk [vmem:[#allocation2 + $0x120] sm:$0xff] %vm398, 0.0
        %757 = vst.msk [vmem:[#allocation2 + $0x128] sm:$0xff] %vm398, 0.0
        %758 = vst.msk [vmem:[#allocation2 + $0x130] sm:$0xff] %vm398, 0.0
        %759 = vst.msk [vmem:[#allocation2 + $0x138] sm:$0xff] %vm398, 0.0
        %760 = vst.msk [vmem:[#allocation2 + $0x140] sm:$0xff] %vm398, 0.0
        %761 = vst.msk [vmem:[#allocation2 + $0x148] sm:$0xff] %vm398, 0.0
        %762 = vst.msk [vmem:[#allocation2 + $0x150] sm:$0xff] %vm398, 0.0
        %763 = vst.msk [vmem:[#allocation2 + $0x158] sm:$0xff] %vm398, 0.0
        %764 = vst.msk [vmem:[#allocation2 + $0x160] sm:$0xff] %vm398, 0.0
        %765 = vst.msk [vmem:[#allocation2 + $0x168] sm:$0xff] %vm398, 0.0
        %766 = vst.msk [vmem:[#allocation2 + $0x170] sm:$0xff] %vm398, 0.0
        %767 = vst.msk [vmem:[#allocation2 + $0x178] sm:$0xff] %vm398, 0.0
        %768 = vst.msk [vmem:[#allocation2 + $0x180] sm:$0xff] %vm398, 0.0
        %769 = vst.msk [vmem:[#allocation2 + $0x188] sm:$0xff] %vm398, 0.0
        %770 = vst.msk [vmem:[#allocation2 + $0x190] sm:$0xff] %vm398, 0.0
        %771 = vst.msk [vmem:[#allocation2 + $0x198] sm:$0xff] %vm398, 0.0
        %772 = vst.msk [vmem:[#allocation2 + $0x1a0] sm:$0xff] %vm398, 0.0
        %773 = vst.msk [vmem:[#allocation2 + $0x1a8] sm:$0xff] %vm398, 0.0
        %774 = vst.msk [vmem:[#allocation2 + $0x1b0] sm:$0xff] %vm398, 0.0
        %775 = vst.msk [vmem:[#allocation2 + $0x1b8] sm:$0xff] %vm398, 0.0
        %776 = vst.msk [vmem:[#allocation2 + $0x1c0] sm:$0xff] %vm398, 0.0
        %777 = vst.msk [vmem:[#allocation2 + $0x1c8] sm:$0xff] %vm398, 0.0
        %778 = vst.msk [vmem:[#allocation2 + $0x1d0] sm:$0xff] %vm398, 0.0
        %779 = vst.msk [vmem:[#allocation2 + $0x1d8] sm:$0xff] %vm398, 0.0
        %780 = vst.msk [vmem:[#allocation2 + $0x1e0] sm:$0xff] %vm398, 0.0
        %781 = vst.msk [vmem:[#allocation2 + $0x1e8] sm:$0xff] %vm398, 0.0
        %782 = vst.msk [vmem:[#allocation2 + $0x1f0] sm:$0xff] %vm398, 0.0
        %783 = vst.msk [vmem:[#allocation2 + $0x1f8] sm:$0xff] %vm398, 0.0
        %784 = vst.msk [vmem:[#allocation2 + $0x200] sm:$0xff] %vm398, 0.0
        %785 = vst.msk [vmem:[#allocation2 + $0x208] sm:$0xff] %vm398, 0.0
        %786 = vst.msk [vmem:[#allocation2 + $0x210] sm:$0xff] %vm398, 0.0
        %787 = vst.msk [vmem:[#allocation2 + $0x218] sm:$0xff] %vm398, 0.0
        %788 = vst.msk [vmem:[#allocation2 + $0x220] sm:$0xff] %vm398, 0.0
        %789 = vst.msk [vmem:[#allocation2 + $0x228] sm:$0xff] %vm398, 0.0
        %790 = vst.msk [vmem:[#allocation2 + $0x230] sm:$0xff] %vm398, 0.0
        %791 = vst.msk [vmem:[#allocation2 + $0x238] sm:$0xff] %vm398, 0.0
        %s792 = scalar_lea.vmem [#allocation2], 32
        %793 = vst.msk [vmem:[%s792 + $0x8] sm:$0xff] %vm398, %v562
        %794 = vst.msk [vmem:[%s792 + $0x10] sm:$0xff] %vm398, %v567
        %795 = vst.msk [vmem:[%s792 + $0x28] sm:$0xff] %vm398, %v572
        %796 = vst.msk [vmem:[%s792 + $0x30] sm:$0xff] %vm398, %v577
        %797 = vst.msk [vmem:[%s792 + $0x48] sm:$0xff] %vm398, %v582
        %798 = vst.msk [vmem:[%s792 + $0x50] sm:$0xff] %vm398, %v587
        %799 = vst.msk [vmem:[%s792 + $0x68] sm:$0xff] %vm398, %v592
        %800 = vst.msk [vmem:[%s792 + $0x70] sm:$0xff] %vm398, %v597
        %801 = vst.msk [vmem:[%s792 + $0x88] sm:$0xff] %vm398, %v602
        %802 = vst.msk [vmem:[%s792 + $0x90] sm:$0xff] %vm398, %v607
        %803 = vst.msk [vmem:[%s792 + $0xa8] sm:$0xff] %vm398, %v612
        %804 = vst.msk [vmem:[%s792 + $0xb0] sm:$0xff] %vm398, %v617
        %805 = vst.msk [vmem:[%s792 + $0xc8] sm:$0xff] %vm398, %v622
        %806 = vst.msk [vmem:[%s792 + $0xd0] sm:$0xff] %vm398, %v627
        %807 = vst.msk [vmem:[%s792 + $0xe8] sm:$0xff] %vm398, %v632
        %808 = vst.msk [vmem:[%s792 + $0xf0] sm:$0xff] %vm398, %v637
        %809 = vst.msk [vmem:[%s792 + $0x108] sm:$0xff] %vm398, %v642
        %810 = vst.msk [vmem:[%s792 + $0x110] sm:$0xff] %vm398, %v647
        %811 = vst.msk [vmem:[%s792 + $0x128] sm:$0xff] %vm398, %v652
        %812 = vst.msk [vmem:[%s792 + $0x130] sm:$0xff] %vm398, %v657
        %813 = vst.msk [vmem:[%s792 + $0x148] sm:$0xff] %vm398, %v662
        %814 = vst.msk [vmem:[%s792 + $0x150] sm:$0xff] %vm398, %v667
        %815 = vst.msk [vmem:[%s792 + $0x168] sm:$0xff] %vm398, %v672
        %816 = vst.msk [vmem:[%s792 + $0x170] sm:$0xff] %vm398, %v677
        %817 = vst.msk [vmem:[%s792 + $0x188] sm:$0xff] %vm398, %v682
        %818 = vst.msk [vmem:[%s792 + $0x190] sm:$0xff] %vm398, %v687
        %819 = vst.msk [vmem:[%s792 + $0x1a8] sm:$0xff] %vm398, %v692
        %820 = vst.msk [vmem:[%s792 + $0x1b0] sm:$0xff] %vm398, %v697
        %821 = vst.msk [vmem:[%s792 + $0x1c8] sm:$0xff] %vm398, %v702
        %822 = vst.msk [vmem:[%s792 + $0x1d0] sm:$0xff] %vm398, %v707
        %823 = vst.msk [vmem:[%s792 + $0x1e8] sm:$0xff] %vm398, %v712
        %824 = vst.msk [vmem:[%s792 + $0x1f0] sm:$0xff] %vm398, %v717
        %v825 = vld [vmem:[#allocation2 + $0x7] sm:$0xff]
        %v826 = vld [vmem:[#allocation2 + $0xf] sm:$0xff]
        %v827 = vld [vmem:[#allocation2 + $0x27] sm:$0xff]
        %v828 = vld [vmem:[#allocation2 + $0x2f] sm:$0xff]
        %v829 = vld [vmem:[#allocation2 + $0x47] sm:$0xff]
        %v830 = vld [vmem:[#allocation2 + $0x4f] sm:$0xff]
        %v831 = vld [vmem:[#allocation2 + $0x67] sm:$0xff]
        %v832 = vld [vmem:[#allocation2 + $0x6f] sm:$0xff]
        %v833 = vld [vmem:[#allocation2 + $0x87] sm:$0xff]
        %v834 = vld [vmem:[#allocation2 + $0x8f] sm:$0xff]
        %v835 = vld [vmem:[#allocation2 + $0xa7] sm:$0xff]
        %v836 = vld [vmem:[#allocation2 + $0xaf] sm:$0xff]
        %v837 = vld [vmem:[#allocation2 + $0xc7] sm:$0xff]
        %v838 = vld [vmem:[#allocation2 + $0xcf] sm:$0xff]
        %v839 = vld [vmem:[#allocation2 + $0xe7] sm:$0xff]
        %v840 = vld [vmem:[#allocation2 + $0xef] sm:$0xff]
        %v841 = vld [vmem:[#allocation2 + $0x107] sm:$0xff]
        %v842 = vld [vmem:[#allocation2 + $0x10f] sm:$0xff]
        %v843 = vld [vmem:[#allocation2 + $0x127] sm:$0xff]
        %v844 = vld [vmem:[#allocation2 + $0x12f] sm:$0xff]
        %v845 = vld [vmem:[#allocation2 + $0x147] sm:$0xff]
        %v846 = vld [vmem:[#allocation2 + $0x14f] sm:$0xff]
        %v847 = vld [vmem:[#allocation2 + $0x167] sm:$0xff]
        %v848 = vld [vmem:[#allocation2 + $0x16f] sm:$0xff]
        %v849 = vld [vmem:[#allocation2 + $0x187] sm:$0xff]
        %v850 = vld [vmem:[#allocation2 + $0x18f] sm:$0xff]
        %v851 = vld [vmem:[#allocation2 + $0x1a7] sm:$0xff]
        %v852 = vld [vmem:[#allocation2 + $0x1af] sm:$0xff]
        %v853 = vld [vmem:[#allocation2 + $0x1c7] sm:$0xff]
        %v854 = vld [vmem:[#allocation2 + $0x1cf] sm:$0xff]
        %v855 = vld [vmem:[#allocation2 + $0x1e7] sm:$0xff]
        %v856 = vld [vmem:[#allocation2 + $0x1ef] sm:$0xff]
        %v857 = vld [vmem:[%s4] sm:$0xff]
        %v858 = vld [vmem:[#allocation2 + $0x8] sm:$0xff]
        %v859 = vld [vmem:[#allocation2 + $0x10] sm:$0xff]
        %v860 = vld [vmem:[#allocation2 + $0x28] sm:$0xff]
        %v861 = vld [vmem:[#allocation2 + $0x30] sm:$0xff]
        %v862 = vld [vmem:[#allocation2 + $0x48] sm:$0xff]
        %v863 = vld [vmem:[#allocation2 + $0x50] sm:$0xff]
        %v864 = vld [vmem:[#allocation2 + $0x68] sm:$0xff]
        %v865 = vld [vmem:[#allocation2 + $0x70] sm:$0xff]
        %v866 = vld [vmem:[#allocation2 + $0x88] sm:$0xff]
        %v867 = vld [vmem:[#allocation2 + $0x90] sm:$0xff]
        %v868 = vld [vmem:[#allocation2 + $0xa8] sm:$0xff]
        %v869 = vld [vmem:[#allocation2 + $0xb0] sm:$0xff]
        %v870 = vld [vmem:[#allocation2 + $0xc8] sm:$0xff]
        %v871 = vld [vmem:[#allocation2 + $0xd0] sm:$0xff]
        %v872 = vld [vmem:[#allocation2 + $0xe8] sm:$0xff]
        %v873 = vld [vmem:[#allocation2 + $0xf0] sm:$0xff]
        %v874 = vld [vmem:[#allocation2 + $0x108] sm:$0xff]
        %v875 = vld [vmem:[#allocation2 + $0x110] sm:$0xff]
        %v876 = vld [vmem:[#allocation2 + $0x128] sm:$0xff]
        %v877 = vld [vmem:[#allocation2 + $0x130] sm:$0xff]
        %v878 = vld [vmem:[#allocation2 + $0x148] sm:$0xff]
        %v879 = vld [vmem:[#allocation2 + $0x150] sm:$0xff]
        %v880 = vld [vmem:[#allocation2 + $0x168] sm:$0xff]
        %v881 = vld [vmem:[#allocation2 + $0x170] sm:$0xff]
        %v882 = vld [vmem:[#allocation2 + $0x188] sm:$0xff]
        %v883 = vld [vmem:[#allocation2 + $0x190] sm:$0xff]
        %v884 = vld [vmem:[#allocation2 + $0x1a8] sm:$0xff]
        %v885 = vld [vmem:[#allocation2 + $0x1b0] sm:$0xff]
        %v886 = vld [vmem:[#allocation2 + $0x1c8] sm:$0xff]
        %v887 = vld [vmem:[#allocation2 + $0x1d0] sm:$0xff]
        %v888 = vld [vmem:[#allocation2 + $0x1e8] sm:$0xff]
        %v889 = vld [vmem:[#allocation2 + $0x1f0] sm:$0xff]
        %s890 = scalar_lea.vmem %s4, 8
        %v891 = vld [vmem:[%s890] sm:$0xff]
        %v893 = vsel %vm398, %v858, 0
        %v896 = vsel %vm398, %v859, 0
        %v899 = vsel %vm398, %v860, 0
        %v902 = vsel %vm398, %v861, 0
        %v905 = vsel %vm398, %v862, 0
        %v908 = vsel %vm398, %v863, 0
        %v911 = vsel %vm398, %v864, 0
        %v914 = vsel %vm398, %v865, 0
        %v917 = vsel %vm398, %v866, 0
        %v920 = vsel %vm398, %v867, 0
        %v923 = vsel %vm398, %v868, 0
        %v926 = vsel %vm398, %v869, 0
        %v929 = vsel %vm398, %v870, 0
        %v932 = vsel %vm398, %v871, 0
        %v935 = vsel %vm398, %v872, 0
        %v938 = vsel %vm398, %v873, 0
        %v941 = vsel %vm398, %v874, 0
        %v944 = vsel %vm398, %v875, 0
        %v947 = vsel %vm398, %v876, 0
        %v950 = vsel %vm398, %v877, 0
        %v953 = vsel %vm398, %v878, 0
        %v956 = vsel %vm398, %v879, 0
        %v959 = vsel %vm398, %v880, 0
        %v962 = vsel %vm398, %v881, 0
        %v965 = vsel %vm398, %v882, 0
        %v968 = vsel %vm398, %v883, 0
        %v971 = vsel %vm398, %v884, 0
        %v974 = vsel %vm398, %v885, 0
        %v977 = vsel %vm398, %v886, 0
        %v980 = vsel %vm398, %v887, 0
        %v983 = vsel %vm398, %v888, 0
        %v986 = vsel %vm398, %v889, 0
        %988 = vmatprep.subr.mxu0 0.0
        %989 = vmatpush1.msra.mxu0 0.0
        %990 = vmatprep.subr.mxu0 0.0
        %991 = vmatpush1.msra.mxu0 0.0
        %992 = vmatprep.subr.mxu0 0.0
        %993 = vmatpush1.msra.mxu0 0.0
        %994 = vmatprep.subr.mxu0 0.0
        %995 = vmatpush1.msra.mxu0 0.0
        %996 = vmatprep.subr.mxu0 0.0
        %997 = vmatpush1.msra.mxu0 0.0
        %998 = vmatprep.subr.mxu0 0.0
        %999 = vmatpush1.msra.mxu0 0.0
        %1000 = vmatprep.subr.mxu0 0.0
        %1001 = vmatpush1.msra.mxu0 0.0
        %1002 = vmatprep.subr.mxu0 0.0
        %1003 = vmatpush1.msra.mxu0 0.0
        %1004 = vmatprep.subr.mxu0 0.0
        %1005 = vmatpush1.msra.mxu0 0.0
        %1006 = vmatprep.subr.mxu0 0.0
        %1007 = vmatpush1.msra.mxu0 0.0
        %1008 = vmatprep.subr.mxu0 0.0
        %1009 = vmatpush1.msra.mxu0 0.0
        %1010 = vmatprep.subr.mxu0 0.0
        %1011 = vmatpush1.msra.mxu0 0.0
        %1012 = vmatprep.subr.mxu0 0.0
        %1013 = vmatpush1.msra.mxu0 0.0
        %1014 = vmatprep.subr.mxu0 0.0
        %1015 = vmatpush1.msra.mxu0 0.0
        %1016 = vmatprep.subr.mxu0 0.0
        %1017 = vmatpush1.msra.mxu0 0.0
        %1018 = vmatprep.subr.mxu0 0.0
        %1019 = vmatpush1.msra.mxu0 %v891
        %1020 = vmatprep.subr.mxu0 0.0
        %1021 = vmatpush2.msra.mxu0 0.0
        %1022 = vmatprep.subr.mxu0 0.0
        %1023 = vmatpush2.msra.mxu0 0.0
        %1024 = vmatprep.subr.mxu0 0.0
        %1025 = vmatpush2.msra.mxu0 0.0
        %1026 = vmatprep.subr.mxu0 0.0
        %1027 = vmatpush2.msra.mxu0 0.0
        %1028 = vmatprep.subr.mxu0 0.0
        %1029 = vmatpush2.msra.mxu0 0.0
        %1030 = vmatprep.subr.mxu0 0.0
        %1031 = vmatpush2.msra.mxu0 0.0
        %1032 = vmatprep.subr.mxu0 0.0
        %1033 = vmatpush2.msra.mxu0 0.0
        %1034 = vmatprep.subr.mxu0 0.0
        %1035 = vmatpush2.msra.mxu0 0.0
        %1036 = vmatprep.subr.mxu0 0.0
        %1037 = vmatpush2.msra.mxu0 0.0
        %1038 = vmatprep.subr.mxu0 0.0
        %1039 = vmatpush2.msra.mxu0 0.0
        %1040 = vmatprep.subr.mxu0 0.0
        %1041 = vmatpush2.msra.mxu0 0.0
        %1042 = vmatprep.subr.mxu0 0.0
        %1043 = vmatpush2.msra.mxu0 0.0
        %1044 = vmatprep.subr.mxu0 0.0
        %1045 = vmatpush2.msra.mxu0 0.0
        %1046 = vmatprep.subr.mxu0 0.0
        %1047 = vmatpush2.msra.mxu0 0.0
        %1048 = vmatprep.subr.mxu0 0.0
        %1049 = vmatpush2.msra.mxu0 0.0
        %1050 = vmatprep.subr.mxu0 0.0
        %1051 = vmatpush2.msra.mxu0 0.0
        %1052 = vmatprep.mubr.f32.mxu0 0.0
        %1053 = vmatmul.mubr.f32.gmra.mxu0 %v893
        %v1054 = vpop.f32.mrf.mxu0
        %v1055 = vadd.f32 0.0, %v1054
        %v1056 = vpop.f32.mrf.mxu0
        %1057 = vmatprep.mubr.f32.mxu0 0.0
        %1058 = vmatmul.mubr.f32.gmra.mxu0 %v896
        %v1059 = vpop.f32.mrf.mxu0
        %v1060 = vadd.f32 0.0, %v1059
        %v1061 = vpop.f32.mrf.mxu0
        %1062 = vmatprep.mubr.f32.mxu0 0.0
        %1063 = vmatmul.mubr.f32.gmra.mxu0 %v899
        %v1064 = vpop.f32.mrf.mxu0
        %v1065 = vadd.f32 0.0, %v1064
        %v1066 = vpop.f32.mrf.mxu0
        %1067 = vmatprep.mubr.f32.mxu0 0.0
        %1068 = vmatmul.mubr.f32.gmra.mxu0 %v902
        %v1069 = vpop.f32.mrf.mxu0
        %v1070 = vadd.f32 0.0, %v1069
        %v1071 = vpop.f32.mrf.mxu0
        %1072 = vmatprep.mubr.f32.mxu0 0.0
        %1073 = vmatmul.mubr.f32.gmra.mxu0 %v905
        %v1074 = vpop.f32.mrf.mxu0
        %v1075 = vadd.f32 0.0, %v1074
        %v1076 = vpop.f32.mrf.mxu0
        %1077 = vmatprep.mubr.f32.mxu0 0.0
        %1078 = vmatmul.mubr.f32.gmra.mxu0 %v908
        %v1079 = vpop.f32.mrf.mxu0
        %v1080 = vadd.f32 0.0, %v1079
        %v1081 = vpop.f32.mrf.mxu0
        %1082 = vmatprep.mubr.f32.mxu0 0.0
        %1083 = vmatmul.mubr.f32.gmra.mxu0 %v911
        %v1084 = vpop.f32.mrf.mxu0
        %v1085 = vadd.f32 0.0, %v1084
        %v1086 = vpop.f32.mrf.mxu0
        %1087 = vmatprep.mubr.f32.mxu0 0.0
        %1088 = vmatmul.mubr.f32.gmra.mxu0 %v914
        %v1089 = vpop.f32.mrf.mxu0
        %v1090 = vadd.f32 0.0, %v1089
        %v1091 = vpop.f32.mrf.mxu0
        %1092 = vmatprep.mubr.f32.mxu0 0.0
        %1093 = vmatmul.mubr.f32.gmra.mxu0 %v917
        %v1094 = vpop.f32.mrf.mxu0
        %v1095 = vadd.f32 0.0, %v1094
        %v1096 = vpop.f32.mrf.mxu0
        %1097 = vmatprep.mubr.f32.mxu0 0.0
        %1098 = vmatmul.mubr.f32.gmra.mxu0 %v920
        %v1099 = vpop.f32.mrf.mxu0
        %v1100 = vadd.f32 0.0, %v1099
        %v1101 = vpop.f32.mrf.mxu0
        %1102 = vmatprep.mubr.f32.mxu0 0.0
        %1103 = vmatmul.mubr.f32.gmra.mxu0 %v923
        %v1104 = vpop.f32.mrf.mxu0
        %v1105 = vadd.f32 0.0, %v1104
        %v1106 = vpop.f32.mrf.mxu0
        %1107 = vmatprep.mubr.f32.mxu0 0.0
        %1108 = vmatmul.mubr.f32.gmra.mxu0 %v926
        %v1109 = vpop.f32.mrf.mxu0
        %v1110 = vadd.f32 0.0, %v1109
        %v1111 = vpop.f32.mrf.mxu0
        %1112 = vmatprep.mubr.f32.mxu0 0.0
        %1113 = vmatmul.mubr.f32.gmra.mxu0 %v929
        %v1114 = vpop.f32.mrf.mxu0
        %v1115 = vadd.f32 0.0, %v1114
        %v1116 = vpop.f32.mrf.mxu0
        %1117 = vmatprep.mubr.f32.mxu0 0.0
        %1118 = vmatmul.mubr.f32.gmra.mxu0 %v932
        %v1119 = vpop.f32.mrf.mxu0
        %v1120 = vadd.f32 0.0, %v1119
        %v1121 = vpop.f32.mrf.mxu0
        %1122 = vmatprep.mubr.f32.mxu0 0.0
        %1123 = vmatmul.mubr.f32.gmra.mxu0 %v935
        %v1124 = vpop.f32.mrf.mxu0
        %v1125 = vadd.f32 0.0, %v1124
        %v1126 = vpop.f32.mrf.mxu0
        %1127 = vmatprep.mubr.f32.mxu0 0.0
        %1128 = vmatmul.mubr.f32.gmra.mxu0 %v938
        %v1129 = vpop.f32.mrf.mxu0
        %v1130 = vadd.f32 0.0, %v1129
        %v1131 = vpop.f32.mrf.mxu0
        %1132 = vmatprep.mubr.f32.mxu0 0.0
        %1133 = vmatmul.mubr.f32.gmra.mxu0 %v941
        %v1134 = vpop.f32.mrf.mxu0
        %v1135 = vadd.f32 0.0, %v1134
        %v1136 = vpop.f32.mrf.mxu0
        %1137 = vmatprep.mubr.f32.mxu0 0.0
        %1138 = vmatmul.mubr.f32.gmra.mxu0 %v944
        %v1139 = vpop.f32.mrf.mxu0
        %v1140 = vadd.f32 0.0, %v1139
        %v1141 = vpop.f32.mrf.mxu0
        %1142 = vmatprep.mubr.f32.mxu0 0.0
        %1143 = vmatmul.mubr.f32.gmra.mxu0 %v947
        %v1144 = vpop.f32.mrf.mxu0
        %v1145 = vadd.f32 0.0, %v1144
        %v1146 = vpop.f32.mrf.mxu0
        %1147 = vmatprep.mubr.f32.mxu0 0.0
        %1148 = vmatmul.mubr.f32.gmra.mxu0 %v950
        %v1149 = vpop.f32.mrf.mxu0
        %v1150 = vadd.f32 0.0, %v1149
        %v1151 = vpop.f32.mrf.mxu0
        %1152 = vmatprep.mubr.f32.mxu0 0.0
        %1153 = vmatmul.mubr.f32.gmra.mxu0 %v953
        %v1154 = vpop.f32.mrf.mxu0
        %v1155 = vadd.f32 0.0, %v1154
        %v1156 = vpop.f32.mrf.mxu0
        %1157 = vmatprep.mubr.f32.mxu0 0.0
        %1158 = vmatmul.mubr.f32.gmra.mxu0 %v956
        %v1159 = vpop.f32.mrf.mxu0
        %v1160 = vadd.f32 0.0, %v1159
        %v1161 = vpop.f32.mrf.mxu0
        %1162 = vmatprep.mubr.f32.mxu0 0.0
        %1163 = vmatmul.mubr.f32.gmra.mxu0 %v959
        %v1164 = vpop.f32.mrf.mxu0
        %v1165 = vadd.f32 0.0, %v1164
        %v1166 = vpop.f32.mrf.mxu0
        %1167 = vmatprep.mubr.f32.mxu0 0.0
        %1168 = vmatmul.mubr.f32.gmra.mxu0 %v962
        %v1169 = vpop.f32.mrf.mxu0
        %v1170 = vadd.f32 0.0, %v1169
        %v1171 = vpop.f32.mrf.mxu0
        %1172 = vmatprep.mubr.f32.mxu0 0.0
        %1173 = vmatmul.mubr.f32.gmra.mxu0 %v965
        %v1174 = vpop.f32.mrf.mxu0
        %v1175 = vadd.f32 0.0, %v1174
        %v1176 = vpop.f32.mrf.mxu0
        %1177 = vmatprep.mubr.f32.mxu0 0.0
        %1178 = vmatmul.mubr.f32.gmra.mxu0 %v968
        %v1179 = vpop.f32.mrf.mxu0
        %v1180 = vadd.f32 0.0, %v1179
        %v1181 = vpop.f32.mrf.mxu0
        %1182 = vmatprep.mubr.f32.mxu0 0.0
        %1183 = vmatmul.mubr.f32.gmra.mxu0 %v971
        %v1184 = vpop.f32.mrf.mxu0
        %v1185 = vadd.f32 0.0, %v1184
        %v1186 = vpop.f32.mrf.mxu0
        %1187 = vmatprep.mubr.f32.mxu0 0.0
        %1188 = vmatmul.mubr.f32.gmra.mxu0 %v974
        %v1189 = vpop.f32.mrf.mxu0
        %v1190 = vadd.f32 0.0, %v1189
        %v1191 = vpop.f32.mrf.mxu0
        %1192 = vmatprep.mubr.f32.mxu0 0.0
        %1193 = vmatmul.mubr.f32.gmra.mxu0 %v977
        %v1194 = vpop.f32.mrf.mxu0
        %v1195 = vadd.f32 0.0, %v1194
        %v1196 = vpop.f32.mrf.mxu0
        %1197 = vmatprep.mubr.f32.mxu0 0.0
        %1198 = vmatmul.mubr.f32.gmra.mxu0 %v980
        %v1199 = vpop.f32.mrf.mxu0
        %v1200 = vadd.f32 0.0, %v1199
        %v1201 = vpop.f32.mrf.mxu0
        %1202 = vmatprep.mubr.f32.mxu0 0.0
        %1203 = vmatmul.mubr.f32.gmra.mxu0 %v983
        %v1204 = vpop.f32.mrf.mxu0
        %v1205 = vadd.f32 0.0, %v1204
        %v1206 = vpop.f32.mrf.mxu0
        %1207 = vmatprep.mubr.f32.mxu0 0.0
        %1208 = vmatmul.mubr.f32.gmra.mxu0 %v986
        %v1209 = vpop.f32.mrf.mxu0
        %v1210 = vadd.f32 0.0, %v1209
        %v1211 = vpop.f32.mrf.mxu0
        %1212 = vdwg.mxu0
        %v1214 = vsel %vm398, %v825, 0
        %v1217 = vsel %vm398, %v826, 0
        %v1220 = vsel %vm398, %v827, 0
        %v1223 = vsel %vm398, %v828, 0
        %v1226 = vsel %vm398, %v829, 0
        %v1229 = vsel %vm398, %v830, 0
        %v1232 = vsel %vm398, %v831, 0
        %v1235 = vsel %vm398, %v832, 0
        %v1238 = vsel %vm398, %v833, 0
        %v1241 = vsel %vm398, %v834, 0
        %v1244 = vsel %vm398, %v835, 0
        %v1247 = vsel %vm398, %v836, 0
        %v1250 = vsel %vm398, %v837, 0
        %v1253 = vsel %vm398, %v838, 0
        %v1256 = vsel %vm398, %v839, 0
        %v1259 = vsel %vm398, %v840, 0
        %v1262 = vsel %vm398, %v841, 0
        %v1265 = vsel %vm398, %v842, 0
        %v1268 = vsel %vm398, %v843, 0
        %v1271 = vsel %vm398, %v844, 0
        %v1274 = vsel %vm398, %v845, 0
        %v1277 = vsel %vm398, %v846, 0
        %v1280 = vsel %vm398, %v847, 0
        %v1283 = vsel %vm398, %v848, 0
        %v1286 = vsel %vm398, %v849, 0
        %v1289 = vsel %vm398, %v850, 0
        %v1292 = vsel %vm398, %v851, 0
        %v1295 = vsel %vm398, %v852, 0
        %v1298 = vsel %vm398, %v853, 0
        %v1301 = vsel %vm398, %v854, 0
        %v1304 = vsel %vm398, %v855, 0
        %v1307 = vsel %vm398, %v856, 0
        %1309 = vmatprep.subr.mxu0 0.0
        %1310 = vmatpush1.msra.mxu0 0.0
        %1311 = vmatprep.subr.mxu0 0.0
        %1312 = vmatpush1.msra.mxu0 0.0
        %1313 = vmatprep.subr.mxu0 0.0
        %1314 = vmatpush1.msra.mxu0 0.0
        %1315 = vmatprep.subr.mxu0 0.0
        %1316 = vmatpush1.msra.mxu0 0.0
        %1317 = vmatprep.subr.mxu0 0.0
        %1318 = vmatpush1.msra.mxu0 0.0
        %1319 = vmatprep.subr.mxu0 0.0
        %1320 = vmatpush1.msra.mxu0 0.0
        %1321 = vmatprep.subr.mxu0 0.0
        %1322 = vmatpush1.msra.mxu0 0.0
        %1323 = vmatprep.subr.mxu0 0.0
        %1324 = vmatpush1.msra.mxu0 0.0
        %1325 = vmatprep.subr.mxu0 0.0
        %1326 = vmatpush1.msra.mxu0 0.0
        %1327 = vmatprep.subr.mxu0 0.0
        %1328 = vmatpush1.msra.mxu0 0.0
        %1329 = vmatprep.subr.mxu0 0.0
        %1330 = vmatpush1.msra.mxu0 0.0
        %1331 = vmatprep.subr.mxu0 0.0
        %1332 = vmatpush1.msra.mxu0 0.0
        %1333 = vmatprep.subr.mxu0 0.0
        %1334 = vmatpush1.msra.mxu0 0.0
        %1335 = vmatprep.subr.mxu0 0.0
        %1336 = vmatpush1.msra.mxu0 0.0
        %1337 = vmatprep.subr.mxu0 0.0
        %1338 = vmatpush1.msra.mxu0 0.0
        %1339 = vmatprep.subr.mxu0 0.0
        %1340 = vmatpush1.msra.mxu0 %v857
        %1341 = vmatprep.subr.mxu0 0.0
        %1342 = vmatpush2.msra.mxu0 0.0
        %1343 = vmatprep.subr.mxu0 0.0
        %1344 = vmatpush2.msra.mxu0 0.0
        %1345 = vmatprep.subr.mxu0 0.0
        %1346 = vmatpush2.msra.mxu0 0.0
        %1347 = vmatprep.subr.mxu0 0.0
        %1348 = vmatpush2.msra.mxu0 0.0
        %1349 = vmatprep.subr.mxu0 0.0
        %1350 = vmatpush2.msra.mxu0 0.0
        %1351 = vmatprep.subr.mxu0 0.0
        %1352 = vmatpush2.msra.mxu0 0.0
        %1353 = vmatprep.subr.mxu0 0.0
        %1354 = vmatpush2.msra.mxu0 0.0
        %1355 = vmatprep.subr.mxu0 0.0
        %1356 = vmatpush2.msra.mxu0 0.0
        %1357 = vmatprep.subr.mxu0 0.0
        %1358 = vmatpush2.msra.mxu0 0.0
        %1359 = vmatprep.subr.mxu0 0.0
        %1360 = vmatpush2.msra.mxu0 0.0
        %1361 = vmatprep.subr.mxu0 0.0
        %1362 = vmatpush2.msra.mxu0 0.0
        %1363 = vmatprep.subr.mxu0 0.0
        %1364 = vmatpush2.msra.mxu0 0.0
        %1365 = vmatprep.subr.mxu0 0.0
        %1366 = vmatpush2.msra.mxu0 0.0
        %1367 = vmatprep.subr.mxu0 0.0
        %1368 = vmatpush2.msra.mxu0 0.0
        %1369 = vmatprep.subr.mxu0 0.0
        %1370 = vmatpush2.msra.mxu0 0.0
        %1371 = vmatprep.subr.mxu0 0.0
        %1372 = vmatpush2.msra.mxu0 0.0
        %1373 = vmatprep.mubr.f32.mxu0 0.0
        %1374 = vmatmul.mubr.f32.gmra.mxu0 %v1214
        %v1375 = vpop.f32.mrf.mxu0
        %v1376 = vadd.f32 %v1055, %v1375
        %v1377 = vpop.f32.mrf.mxu0
        %1378 = vmatprep.mubr.f32.mxu0 0.0
        %1379 = vmatmul.mubr.f32.gmra.mxu0 %v1217
        %v1380 = vpop.f32.mrf.mxu0
        %v1381 = vadd.f32 %v1060, %v1380
        %v1382 = vpop.f32.mrf.mxu0
        %1383 = vmatprep.mubr.f32.mxu0 0.0
        %1384 = vmatmul.mubr.f32.gmra.mxu0 %v1220
        %v1385 = vpop.f32.mrf.mxu0
        %v1386 = vadd.f32 %v1065, %v1385
        %v1387 = vpop.f32.mrf.mxu0
        %1388 = vmatprep.mubr.f32.mxu0 0.0
        %1389 = vmatmul.mubr.f32.gmra.mxu0 %v1223
        %v1390 = vpop.f32.mrf.mxu0
        %v1391 = vadd.f32 %v1070, %v1390
        %v1392 = vpop.f32.mrf.mxu0
        %1393 = vmatprep.mubr.f32.mxu0 0.0
        %1394 = vmatmul.mubr.f32.gmra.mxu0 %v1226
        %v1395 = vpop.f32.mrf.mxu0
        %v1396 = vadd.f32 %v1075, %v1395
        %v1397 = vpop.f32.mrf.mxu0
        %1398 = vmatprep.mubr.f32.mxu0 0.0
        %1399 = vmatmul.mubr.f32.gmra.mxu0 %v1229
        %v1400 = vpop.f32.mrf.mxu0
        %v1401 = vadd.f32 %v1080, %v1400
        %v1402 = vpop.f32.mrf.mxu0
        %1403 = vmatprep.mubr.f32.mxu0 0.0
        %1404 = vmatmul.mubr.f32.gmra.mxu0 %v1232
        %v1405 = vpop.f32.mrf.mxu0
        %v1406 = vadd.f32 %v1085, %v1405
        %v1407 = vpop.f32.mrf.mxu0
        %1408 = vmatprep.mubr.f32.mxu0 0.0
        %1409 = vmatmul.mubr.f32.gmra.mxu0 %v1235
        %v1410 = vpop.f32.mrf.mxu0
        %v1411 = vadd.f32 %v1090, %v1410
        %v1412 = vpop.f32.mrf.mxu0
        %1413 = vmatprep.mubr.f32.mxu0 0.0
        %1414 = vmatmul.mubr.f32.gmra.mxu0 %v1238
        %v1415 = vpop.f32.mrf.mxu0
        %v1416 = vadd.f32 %v1095, %v1415
        %v1417 = vpop.f32.mrf.mxu0
        %1418 = vmatprep.mubr.f32.mxu0 0.0
        %1419 = vmatmul.mubr.f32.gmra.mxu0 %v1241
        %v1420 = vpop.f32.mrf.mxu0
        %v1421 = vadd.f32 %v1100, %v1420
        %v1422 = vpop.f32.mrf.mxu0
        %1423 = vmatprep.mubr.f32.mxu0 0.0
        %1424 = vmatmul.mubr.f32.gmra.mxu0 %v1244
        %v1425 = vpop.f32.mrf.mxu0
        %v1426 = vadd.f32 %v1105, %v1425
        %v1427 = vpop.f32.mrf.mxu0
        %1428 = vmatprep.mubr.f32.mxu0 0.0
        %1429 = vmatmul.mubr.f32.gmra.mxu0 %v1247
        %v1430 = vpop.f32.mrf.mxu0
        %v1431 = vadd.f32 %v1110, %v1430
        %v1432 = vpop.f32.mrf.mxu0
        %1433 = vmatprep.mubr.f32.mxu0 0.0
        %1434 = vmatmul.mubr.f32.gmra.mxu0 %v1250
        %v1435 = vpop.f32.mrf.mxu0
        %v1436 = vadd.f32 %v1115, %v1435
        %v1437 = vpop.f32.mrf.mxu0
        %1438 = vmatprep.mubr.f32.mxu0 0.0
        %1439 = vmatmul.mubr.f32.gmra.mxu0 %v1253
        %v1440 = vpop.f32.mrf.mxu0
        %v1441 = vadd.f32 %v1120, %v1440
        %v1442 = vpop.f32.mrf.mxu0
        %1443 = vmatprep.mubr.f32.mxu0 0.0
        %1444 = vmatmul.mubr.f32.gmra.mxu0 %v1256
        %v1445 = vpop.f32.mrf.mxu0
        %v1446 = vadd.f32 %v1125, %v1445
        %v1447 = vpop.f32.mrf.mxu0
        %1448 = vmatprep.mubr.f32.mxu0 0.0
        %1449 = vmatmul.mubr.f32.gmra.mxu0 %v1259
        %v1450 = vpop.f32.mrf.mxu0
        %v1451 = vadd.f32 %v1130, %v1450
        %v1452 = vpop.f32.mrf.mxu0
        %1453 = vmatprep.mubr.f32.mxu0 0.0
        %1454 = vmatmul.mubr.f32.gmra.mxu0 %v1262
        %v1455 = vpop.f32.mrf.mxu0
        %v1456 = vadd.f32 %v1135, %v1455
        %v1457 = vpop.f32.mrf.mxu0
        %1458 = vmatprep.mubr.f32.mxu0 0.0
        %1459 = vmatmul.mubr.f32.gmra.mxu0 %v1265
        %v1460 = vpop.f32.mrf.mxu0
        %v1461 = vadd.f32 %v1140, %v1460
        %v1462 = vpop.f32.mrf.mxu0
        %1463 = vmatprep.mubr.f32.mxu0 0.0
        %1464 = vmatmul.mubr.f32.gmra.mxu0 %v1268
        %v1465 = vpop.f32.mrf.mxu0
        %v1466 = vadd.f32 %v1145, %v1465
        %v1467 = vpop.f32.mrf.mxu0
        %1468 = vmatprep.mubr.f32.mxu0 0.0
        %1469 = vmatmul.mubr.f32.gmra.mxu0 %v1271
        %v1470 = vpop.f32.mrf.mxu0
        %v1471 = vadd.f32 %v1150, %v1470
        %v1472 = vpop.f32.mrf.mxu0
        %1473 = vmatprep.mubr.f32.mxu0 0.0
        %1474 = vmatmul.mubr.f32.gmra.mxu0 %v1274
        %v1475 = vpop.f32.mrf.mxu0
        %v1476 = vadd.f32 %v1155, %v1475
        %v1477 = vpop.f32.mrf.mxu0
        %1478 = vmatprep.mubr.f32.mxu0 0.0
        %1479 = vmatmul.mubr.f32.gmra.mxu0 %v1277
        %v1480 = vpop.f32.mrf.mxu0
        %v1481 = vadd.f32 %v1160, %v1480
        %v1482 = vpop.f32.mrf.mxu0
        %1483 = vmatprep.mubr.f32.mxu0 0.0
        %1484 = vmatmul.mubr.f32.gmra.mxu0 %v1280
        %v1485 = vpop.f32.mrf.mxu0
        %v1486 = vadd.f32 %v1165, %v1485
        %v1487 = vpop.f32.mrf.mxu0
        %1488 = vmatprep.mubr.f32.mxu0 0.0
        %1489 = vmatmul.mubr.f32.gmra.mxu0 %v1283
        %v1490 = vpop.f32.mrf.mxu0
        %v1491 = vadd.f32 %v1170, %v1490
        %v1492 = vpop.f32.mrf.mxu0
        %1493 = vmatprep.mubr.f32.mxu0 0.0
        %1494 = vmatmul.mubr.f32.gmra.mxu0 %v1286
        %v1495 = vpop.f32.mrf.mxu0
        %v1496 = vadd.f32 %v1175, %v1495
        %v1497 = vpop.f32.mrf.mxu0
        %1498 = vmatprep.mubr.f32.mxu0 0.0
        %1499 = vmatmul.mubr.f32.gmra.mxu0 %v1289
        %v1500 = vpop.f32.mrf.mxu0
        %v1501 = vadd.f32 %v1180, %v1500
        %v1502 = vpop.f32.mrf.mxu0
        %1503 = vmatprep.mubr.f32.mxu0 0.0
        %1504 = vmatmul.mubr.f32.gmra.mxu0 %v1292
        %v1505 = vpop.f32.mrf.mxu0
        %v1506 = vadd.f32 %v1185, %v1505
        %v1507 = vpop.f32.mrf.mxu0
        %1508 = vmatprep.mubr.f32.mxu0 0.0
        %1509 = vmatmul.mubr.f32.gmra.mxu0 %v1295
        %v1510 = vpop.f32.mrf.mxu0
        %v1511 = vadd.f32 %v1190, %v1510
        %v1512 = vpop.f32.mrf.mxu0
        %1513 = vmatprep.mubr.f32.mxu0 0.0
        %1514 = vmatmul.mubr.f32.gmra.mxu0 %v1298
        %v1515 = vpop.f32.mrf.mxu0
        %v1516 = vadd.f32 %v1195, %v1515
        %v1517 = vpop.f32.mrf.mxu0
        %1518 = vmatprep.mubr.f32.mxu0 0.0
        %1519 = vmatmul.mubr.f32.gmra.mxu0 %v1301
        %v1520 = vpop.f32.mrf.mxu0
        %v1521 = vadd.f32 %v1200, %v1520
        %v1522 = vpop.f32.mrf.mxu0
        %1523 = vmatprep.mubr.f32.mxu0 0.0
        %1524 = vmatmul.mubr.f32.gmra.mxu0 %v1304
        %v1525 = vpop.f32.mrf.mxu0
        %v1526 = vadd.f32 %v1205, %v1525
        %v1527 = vpop.f32.mrf.mxu0
        %1528 = vmatprep.mubr.f32.mxu0 0.0
        %1529 = vmatmul.mubr.f32.gmra.mxu0 %v1307
        %v1530 = vpop.f32.mrf.mxu0
        %v1531 = vadd.f32 %v1210, %v1530
        %v1532 = vpop.f32.mrf.mxu0
        %1533 = vdwg.mxu0
        %v1534 = vld [vmem:[#allocation2 + $0x9] sm:$0xff]
        %v1535 = vld [vmem:[#allocation2 + $0x11] sm:$0xff]
        %v1536 = vld [vmem:[#allocation2 + $0x29] sm:$0xff]
        %v1537 = vld [vmem:[#allocation2 + $0x31] sm:$0xff]
        %v1538 = vld [vmem:[#allocation2 + $0x49] sm:$0xff]
        %v1539 = vld [vmem:[#allocation2 + $0x51] sm:$0xff]
        %v1540 = vld [vmem:[#allocation2 + $0x69] sm:$0xff]
        %v1541 = vld [vmem:[#allocation2 + $0x71] sm:$0xff]
        %v1542 = vld [vmem:[#allocation2 + $0x89] sm:$0xff]
        %v1543 = vld [vmem:[#allocation2 + $0x91] sm:$0xff]
        %v1544 = vld [vmem:[#allocation2 + $0xa9] sm:$0xff]
        %v1545 = vld [vmem:[#allocation2 + $0xb1] sm:$0xff]
        %v1546 = vld [vmem:[#allocation2 + $0xc9] sm:$0xff]
        %v1547 = vld [vmem:[#allocation2 + $0xd1] sm:$0xff]
        %v1548 = vld [vmem:[#allocation2 + $0xe9] sm:$0xff]
        %v1549 = vld [vmem:[#allocation2 + $0xf1] sm:$0xff]
        %v1550 = vld [vmem:[#allocation2 + $0x109] sm:$0xff]
        %v1551 = vld [vmem:[#allocation2 + $0x111] sm:$0xff]
        %v1552 = vld [vmem:[#allocation2 + $0x129] sm:$0xff]
        %v1553 = vld [vmem:[#allocation2 + $0x131] sm:$0xff]
        %v1554 = vld [vmem:[#allocation2 + $0x149] sm:$0xff]
        %v1555 = vld [vmem:[#allocation2 + $0x151] sm:$0xff]
        %v1556 = vld [vmem:[#allocation2 + $0x169] sm:$0xff]
        %v1557 = vld [vmem:[#allocation2 + $0x171] sm:$0xff]
        %v1558 = vld [vmem:[#allocation2 + $0x189] sm:$0xff]
        %v1559 = vld [vmem:[#allocation2 + $0x191] sm:$0xff]
        %v1560 = vld [vmem:[#allocation2 + $0x1a9] sm:$0xff]
        %v1561 = vld [vmem:[#allocation2 + $0x1b1] sm:$0xff]
        %v1562 = vld [vmem:[#allocation2 + $0x1c9] sm:$0xff]
        %v1563 = vld [vmem:[#allocation2 + $0x1d1] sm:$0xff]
        %v1564 = vld [vmem:[#allocation2 + $0x1e9] sm:$0xff]
        %v1565 = vld [vmem:[#allocation2 + $0x1f1] sm:$0xff]
        %s1566 = scalar_lea.vmem %s4, 16
        %v1567 = vld [vmem:[%s1566] sm:$0xff]
        %v1569 = vsel %vm398, %v1534, 0
        %v1572 = vsel %vm398, %v1535, 0
        %v1575 = vsel %vm398, %v1536, 0
        %v1578 = vsel %vm398, %v1537, 0
        %v1581 = vsel %vm398, %v1538, 0
        %v1584 = vsel %vm398, %v1539, 0
        %v1587 = vsel %vm398, %v1540, 0
        %v1590 = vsel %vm398, %v1541, 0
        %v1593 = vsel %vm398, %v1542, 0
        %v1596 = vsel %vm398, %v1543, 0
        %v1599 = vsel %vm398, %v1544, 0
        %v1602 = vsel %vm398, %v1545, 0
        %v1605 = vsel %vm398, %v1546, 0
        %v1608 = vsel %vm398, %v1547, 0
        %v1611 = vsel %vm398, %v1548, 0
        %v1614 = vsel %vm398, %v1549, 0
        %v1617 = vsel %vm398, %v1550, 0
        %v1620 = vsel %vm398, %v1551, 0
        %v1623 = vsel %vm398, %v1552, 0
        %v1626 = vsel %vm398, %v1553, 0
        %v1629 = vsel %vm398, %v1554, 0
        %v1632 = vsel %vm398, %v1555, 0
        %v1635 = vsel %vm398, %v1556, 0
        %v1638 = vsel %vm398, %v1557, 0
        %v1641 = vsel %vm398, %v1558, 0
        %v1644 = vsel %vm398, %v1559, 0
        %v1647 = vsel %vm398, %v1560, 0
        %v1650 = vsel %vm398, %v1561, 0
        %v1653 = vsel %vm398, %v1562, 0
        %v1656 = vsel %vm398, %v1563, 0
        %v1659 = vsel %vm398, %v1564, 0
        %v1662 = vsel %vm398, %v1565, 0
        %1664 = vmatprep.subr.mxu0 0.0
        %1665 = vmatpush1.msra.mxu0 0.0
        %1666 = vmatprep.subr.mxu0 0.0
        %1667 = vmatpush1.msra.mxu0 0.0
        %1668 = vmatprep.subr.mxu0 0.0
        %1669 = vmatpush1.msra.mxu0 0.0
        %1670 = vmatprep.subr.mxu0 0.0
        %1671 = vmatpush1.msra.mxu0 0.0
        %1672 = vmatprep.subr.mxu0 0.0
        %1673 = vmatpush1.msra.mxu0 0.0
        %1674 = vmatprep.subr.mxu0 0.0
        %1675 = vmatpush1.msra.mxu0 0.0
        %1676 = vmatprep.subr.mxu0 0.0
        %1677 = vmatpush1.msra.mxu0 0.0
        %1678 = vmatprep.subr.mxu0 0.0
        %1679 = vmatpush1.msra.mxu0 0.0
        %1680 = vmatprep.subr.mxu0 0.0
        %1681 = vmatpush1.msra.mxu0 0.0
        %1682 = vmatprep.subr.mxu0 0.0
        %1683 = vmatpush1.msra.mxu0 0.0
        %1684 = vmatprep.subr.mxu0 0.0
        %1685 = vmatpush1.msra.mxu0 0.0
        %1686 = vmatprep.subr.mxu0 0.0
        %1687 = vmatpush1.msra.mxu0 0.0
        %1688 = vmatprep.subr.mxu0 0.0
        %1689 = vmatpush1.msra.mxu0 0.0
        %1690 = vmatprep.subr.mxu0 0.0
        %1691 = vmatpush1.msra.mxu0 0.0
        %1692 = vmatprep.subr.mxu0 0.0
        %1693 = vmatpush1.msra.mxu0 0.0
        %1694 = vmatprep.subr.mxu0 0.0
        %1695 = vmatpush1.msra.mxu0 %v1567
        %1696 = vmatprep.subr.mxu0 0.0
        %1697 = vmatpush2.msra.mxu0 0.0
        %1698 = vmatprep.subr.mxu0 0.0
        %1699 = vmatpush2.msra.mxu0 0.0
        %1700 = vmatprep.subr.mxu0 0.0
        %1701 = vmatpush2.msra.mxu0 0.0
        %1702 = vmatprep.subr.mxu0 0.0
        %1703 = vmatpush2.msra.mxu0 0.0
        %1704 = vmatprep.subr.mxu0 0.0
        %1705 = vmatpush2.msra.mxu0 0.0
        %1706 = vmatprep.subr.mxu0 0.0
        %1707 = vmatpush2.msra.mxu0 0.0
        %1708 = vmatprep.subr.mxu0 0.0
        %1709 = vmatpush2.msra.mxu0 0.0
        %1710 = vmatprep.subr.mxu0 0.0
        %1711 = vmatpush2.msra.mxu0 0.0
        %1712 = vmatprep.subr.mxu0 0.0
        %1713 = vmatpush2.msra.mxu0 0.0
        %1714 = vmatprep.subr.mxu0 0.0
        %1715 = vmatpush2.msra.mxu0 0.0
        %1716 = vmatprep.subr.mxu0 0.0
        %1717 = vmatpush2.msra.mxu0 0.0
        %1718 = vmatprep.subr.mxu0 0.0
        %1719 = vmatpush2.msra.mxu0 0.0
        %1720 = vmatprep.subr.mxu0 0.0
        %1721 = vmatpush2.msra.mxu0 0.0
        %1722 = vmatprep.subr.mxu0 0.0
        %1723 = vmatpush2.msra.mxu0 0.0
        %1724 = vmatprep.subr.mxu0 0.0
        %1725 = vmatpush2.msra.mxu0 0.0
        %1726 = vmatprep.subr.mxu0 0.0
        %1727 = vmatpush2.msra.mxu0 0.0
        %1728 = vmatprep.mubr.f32.mxu0 0.0
        %1729 = vmatmul.mubr.f32.gmra.mxu0 %v1569
        %v1730 = vpop.f32.mrf.mxu0
        %v1731 = vadd.f32 0.0, %v1730
        %v1732 = vpop.f32.mrf.mxu0
        %1733 = vmatprep.mubr.f32.mxu0 0.0
        %1734 = vmatmul.mubr.f32.gmra.mxu0 %v1572
        %v1735 = vpop.f32.mrf.mxu0
        %v1736 = vadd.f32 0.0, %v1735
        %v1737 = vpop.f32.mrf.mxu0
        %1738 = vmatprep.mubr.f32.mxu0 0.0
        %1739 = vmatmul.mubr.f32.gmra.mxu0 %v1575
        %v1740 = vpop.f32.mrf.mxu0
        %v1741 = vadd.f32 0.0, %v1740
        %v1742 = vpop.f32.mrf.mxu0
        %1743 = vmatprep.mubr.f32.mxu0 0.0
        %1744 = vmatmul.mubr.f32.gmra.mxu0 %v1578
        %v1745 = vpop.f32.mrf.mxu0
        %v1746 = vadd.f32 0.0, %v1745
        %v1747 = vpop.f32.mrf.mxu0
        %1748 = vmatprep.mubr.f32.mxu0 0.0
        %1749 = vmatmul.mubr.f32.gmra.mxu0 %v1581
        %v1750 = vpop.f32.mrf.mxu0
        %v1751 = vadd.f32 0.0, %v1750
        %v1752 = vpop.f32.mrf.mxu0
        %1753 = vmatprep.mubr.f32.mxu0 0.0
        %1754 = vmatmul.mubr.f32.gmra.mxu0 %v1584
        %v1755 = vpop.f32.mrf.mxu0
        %v1756 = vadd.f32 0.0, %v1755
        %v1757 = vpop.f32.mrf.mxu0
        %1758 = vmatprep.mubr.f32.mxu0 0.0
        %1759 = vmatmul.mubr.f32.gmra.mxu0 %v1587
        %v1760 = vpop.f32.mrf.mxu0
        %v1761 = vadd.f32 0.0, %v1760
        %v1762 = vpop.f32.mrf.mxu0
        %1763 = vmatprep.mubr.f32.mxu0 0.0
        %1764 = vmatmul.mubr.f32.gmra.mxu0 %v1590
        %v1765 = vpop.f32.mrf.mxu0
        %v1766 = vadd.f32 0.0, %v1765
        %v1767 = vpop.f32.mrf.mxu0
        %1768 = vmatprep.mubr.f32.mxu0 0.0
        %1769 = vmatmul.mubr.f32.gmra.mxu0 %v1593
        %v1770 = vpop.f32.mrf.mxu0
        %v1771 = vadd.f32 0.0, %v1770
        %v1772 = vpop.f32.mrf.mxu0
        %1773 = vmatprep.mubr.f32.mxu0 0.0
        %1774 = vmatmul.mubr.f32.gmra.mxu0 %v1596
        %v1775 = vpop.f32.mrf.mxu0
        %v1776 = vadd.f32 0.0, %v1775
        %v1777 = vpop.f32.mrf.mxu0
        %1778 = vmatprep.mubr.f32.mxu0 0.0
        %1779 = vmatmul.mubr.f32.gmra.mxu0 %v1599
        %v1780 = vpop.f32.mrf.mxu0
        %v1781 = vadd.f32 0.0, %v1780
        %v1782 = vpop.f32.mrf.mxu0
        %1783 = vmatprep.mubr.f32.mxu0 0.0
        %1784 = vmatmul.mubr.f32.gmra.mxu0 %v1602
        %v1785 = vpop.f32.mrf.mxu0
        %v1786 = vadd.f32 0.0, %v1785
        %v1787 = vpop.f32.mrf.mxu0
        %1788 = vmatprep.mubr.f32.mxu0 0.0
        %1789 = vmatmul.mubr.f32.gmra.mxu0 %v1605
        %v1790 = vpop.f32.mrf.mxu0
        %v1791 = vadd.f32 0.0, %v1790
        %v1792 = vpop.f32.mrf.mxu0
        %1793 = vmatprep.mubr.f32.mxu0 0.0
        %1794 = vmatmul.mubr.f32.gmra.mxu0 %v1608
        %v1795 = vpop.f32.mrf.mxu0
        %v1796 = vadd.f32 0.0, %v1795
        %v1797 = vpop.f32.mrf.mxu0
        %1798 = vmatprep.mubr.f32.mxu0 0.0
        %1799 = vmatmul.mubr.f32.gmra.mxu0 %v1611
        %v1800 = vpop.f32.mrf.mxu0
        %v1801 = vadd.f32 0.0, %v1800
        %v1802 = vpop.f32.mrf.mxu0
        %1803 = vmatprep.mubr.f32.mxu0 0.0
        %1804 = vmatmul.mubr.f32.gmra.mxu0 %v1614
        %v1805 = vpop.f32.mrf.mxu0
        %v1806 = vadd.f32 0.0, %v1805
        %v1807 = vpop.f32.mrf.mxu0
        %1808 = vmatprep.mubr.f32.mxu0 0.0
        %1809 = vmatmul.mubr.f32.gmra.mxu0 %v1617
        %v1810 = vpop.f32.mrf.mxu0
        %v1811 = vadd.f32 0.0, %v1810
        %v1812 = vpop.f32.mrf.mxu0
        %1813 = vmatprep.mubr.f32.mxu0 0.0
        %1814 = vmatmul.mubr.f32.gmra.mxu0 %v1620
        %v1815 = vpop.f32.mrf.mxu0
        %v1816 = vadd.f32 0.0, %v1815
        %v1817 = vpop.f32.mrf.mxu0
        %1818 = vmatprep.mubr.f32.mxu0 0.0
        %1819 = vmatmul.mubr.f32.gmra.mxu0 %v1623
        %v1820 = vpop.f32.mrf.mxu0
        %v1821 = vadd.f32 0.0, %v1820
        %v1822 = vpop.f32.mrf.mxu0
        %1823 = vmatprep.mubr.f32.mxu0 0.0
        %1824 = vmatmul.mubr.f32.gmra.mxu0 %v1626
        %v1825 = vpop.f32.mrf.mxu0
        %v1826 = vadd.f32 0.0, %v1825
        %v1827 = vpop.f32.mrf.mxu0
        %1828 = vmatprep.mubr.f32.mxu0 0.0
        %1829 = vmatmul.mubr.f32.gmra.mxu0 %v1629
        %v1830 = vpop.f32.mrf.mxu0
        %v1831 = vadd.f32 0.0, %v1830
        %v1832 = vpop.f32.mrf.mxu0
        %1833 = vmatprep.mubr.f32.mxu0 0.0
        %1834 = vmatmul.mubr.f32.gmra.mxu0 %v1632
        %v1835 = vpop.f32.mrf.mxu0
        %v1836 = vadd.f32 0.0, %v1835
        %v1837 = vpop.f32.mrf.mxu0
        %1838 = vmatprep.mubr.f32.mxu0 0.0
        %1839 = vmatmul.mubr.f32.gmra.mxu0 %v1635
        %v1840 = vpop.f32.mrf.mxu0
        %v1841 = vadd.f32 0.0, %v1840
        %v1842 = vpop.f32.mrf.mxu0
        %1843 = vmatprep.mubr.f32.mxu0 0.0
        %1844 = vmatmul.mubr.f32.gmra.mxu0 %v1638
        %v1845 = vpop.f32.mrf.mxu0
        %v1846 = vadd.f32 0.0, %v1845
        %v1847 = vpop.f32.mrf.mxu0
        %1848 = vmatprep.mubr.f32.mxu0 0.0
        %1849 = vmatmul.mubr.f32.gmra.mxu0 %v1641
        %v1850 = vpop.f32.mrf.mxu0
        %v1851 = vadd.f32 0.0, %v1850
        %v1852 = vpop.f32.mrf.mxu0
        %1853 = vmatprep.mubr.f32.mxu0 0.0
        %1854 = vmatmul.mubr.f32.gmra.mxu0 %v1644
        %v1855 = vpop.f32.mrf.mxu0
        %v1856 = vadd.f32 0.0, %v1855
        %v1857 = vpop.f32.mrf.mxu0
        %1858 = vmatprep.mubr.f32.mxu0 0.0
        %1859 = vmatmul.mubr.f32.gmra.mxu0 %v1647
        %v1860 = vpop.f32.mrf.mxu0
        %v1861 = vadd.f32 0.0, %v1860
        %v1862 = vpop.f32.mrf.mxu0
        %1863 = vmatprep.mubr.f32.mxu0 0.0
        %1864 = vmatmul.mubr.f32.gmra.mxu0 %v1650
        %v1865 = vpop.f32.mrf.mxu0
        %v1866 = vadd.f32 0.0, %v1865
        %v1867 = vpop.f32.mrf.mxu0
        %1868 = vmatprep.mubr.f32.mxu0 0.0
        %1869 = vmatmul.mubr.f32.gmra.mxu0 %v1653
        %v1870 = vpop.f32.mrf.mxu0
        %v1871 = vadd.f32 0.0, %v1870
        %v1872 = vpop.f32.mrf.mxu0
        %1873 = vmatprep.mubr.f32.mxu0 0.0
        %1874 = vmatmul.mubr.f32.gmra.mxu0 %v1656
        %v1875 = vpop.f32.mrf.mxu0
        %v1876 = vadd.f32 0.0, %v1875
        %v1877 = vpop.f32.mrf.mxu0
        %1878 = vmatprep.mubr.f32.mxu0 0.0
        %1879 = vmatmul.mubr.f32.gmra.mxu0 %v1659
        %v1880 = vpop.f32.mrf.mxu0
        %v1881 = vadd.f32 0.0, %v1880
        %v1882 = vpop.f32.mrf.mxu0
        %1883 = vmatprep.mubr.f32.mxu0 0.0
        %1884 = vmatmul.mubr.f32.gmra.mxu0 %v1662
        %v1885 = vpop.f32.mrf.mxu0
        %v1886 = vadd.f32 0.0, %v1885
        %v1887 = vpop.f32.mrf.mxu0
        %1888 = vdwg.mxu0
        %v1889 = vadd.f32 %v1376, %v1731
        %v1890 = vadd.f32 %v1381, %v1736
        %v1891 = vadd.f32 %v1386, %v1741
        %v1892 = vadd.f32 %v1391, %v1746
        %v1893 = vadd.f32 %v1396, %v1751
        %v1894 = vadd.f32 %v1401, %v1756
        %v1895 = vadd.f32 %v1406, %v1761
        %v1896 = vadd.f32 %v1411, %v1766
        %v1897 = vadd.f32 %v1416, %v1771
        %v1898 = vadd.f32 %v1421, %v1776
        %v1899 = vadd.f32 %v1426, %v1781
        %v1900 = vadd.f32 %v1431, %v1786
        %v1901 = vadd.f32 %v1436, %v1791
        %v1902 = vadd.f32 %v1441, %v1796
        %v1903 = vadd.f32 %v1446, %v1801
        %v1904 = vadd.f32 %v1451, %v1806
        %v1905 = vadd.f32 %v1456, %v1811
        %v1906 = vadd.f32 %v1461, %v1816
        %v1907 = vadd.f32 %v1466, %v1821
        %v1908 = vadd.f32 %v1471, %v1826
        %v1909 = vadd.f32 %v1476, %v1831
        %v1910 = vadd.f32 %v1481, %v1836
        %v1911 = vadd.f32 %v1486, %v1841
        %v1912 = vadd.f32 %v1491, %v1846
        %v1913 = vadd.f32 %v1496, %v1851
        %v1914 = vadd.f32 %v1501, %v1856
        %v1915 = vadd.f32 %v1506, %v1861
        %v1916 = vadd.f32 %v1511, %v1866
        %v1917 = vadd.f32 %v1516, %v1871
        %v1918 = vadd.f32 %v1521, %v1876
        %v1919 = vadd.f32 %v1526, %v1881
        %v1920 = vadd.f32 %v1531, %v1886
        %v1921 = vld [vmem:[%s792 + $0x7] sm:$0xff]
        %v1922 = vld [vmem:[%s792 + $0xf] sm:$0xff]
        %v1923 = vld [vmem:[%s792 + $0x27] sm:$0xff]
        %v1924 = vld [vmem:[%s792 + $0x2f] sm:$0xff]
        %v1925 = vld [vmem:[%s792 + $0x47] sm:$0xff]
        %v1926 = vld [vmem:[%s792 + $0x4f] sm:$0xff]
        %v1927 = vld [vmem:[%s792 + $0x67] sm:$0xff]
        %v1928 = vld [vmem:[%s792 + $0x6f] sm:$0xff]
        %v1929 = vld [vmem:[%s792 + $0x87] sm:$0xff]
        %v1930 = vld [vmem:[%s792 + $0x8f] sm:$0xff]
        %v1931 = vld [vmem:[%s792 + $0xa7] sm:$0xff]
        %v1932 = vld [vmem:[%s792 + $0xaf] sm:$0xff]
        %v1933 = vld [vmem:[%s792 + $0xc7] sm:$0xff]
        %v1934 = vld [vmem:[%s792 + $0xcf] sm:$0xff]
        %v1935 = vld [vmem:[%s792 + $0xe7] sm:$0xff]
        %v1936 = vld [vmem:[%s792 + $0xef] sm:$0xff]
        %v1937 = vld [vmem:[%s792 + $0x107] sm:$0xff]
        %v1938 = vld [vmem:[%s792 + $0x10f] sm:$0xff]
        %v1939 = vld [vmem:[%s792 + $0x127] sm:$0xff]
        %v1940 = vld [vmem:[%s792 + $0x12f] sm:$0xff]
        %v1941 = vld [vmem:[%s792 + $0x147] sm:$0xff]
        %v1942 = vld [vmem:[%s792 + $0x14f] sm:$0xff]
        %v1943 = vld [vmem:[%s792 + $0x167] sm:$0xff]
        %v1944 = vld [vmem:[%s792 + $0x16f] sm:$0xff]
        %v1945 = vld [vmem:[%s792 + $0x187] sm:$0xff]
        %v1946 = vld [vmem:[%s792 + $0x18f] sm:$0xff]
        %v1947 = vld [vmem:[%s792 + $0x1a7] sm:$0xff]
        %v1948 = vld [vmem:[%s792 + $0x1af] sm:$0xff]
        %v1949 = vld [vmem:[%s792 + $0x1c7] sm:$0xff]
        %v1950 = vld [vmem:[%s792 + $0x1cf] sm:$0xff]
        %v1951 = vld [vmem:[%s792 + $0x1e7] sm:$0xff]
        %v1952 = vld [vmem:[%s792 + $0x1ef] sm:$0xff]
        %s1953 = scalar_lea.vmem %s4, 24
        %v1954 = vld [vmem:[%s1953] sm:$0xff]
        %v1956 = vsel %vm398, %v1921, 0
        %v1959 = vsel %vm398, %v1922, 0
        %v1962 = vsel %vm398, %v1923, 0
        %v1965 = vsel %vm398, %v1924, 0
        %v1968 = vsel %vm398, %v1925, 0
        %v1971 = vsel %vm398, %v1926, 0
        %v1974 = vsel %vm398, %v1927, 0
        %v1977 = vsel %vm398, %v1928, 0
        %v1980 = vsel %vm398, %v1929, 0
        %v1983 = vsel %vm398, %v1930, 0
        %v1986 = vsel %vm398, %v1931, 0
        %v1989 = vsel %vm398, %v1932, 0
        %v1992 = vsel %vm398, %v1933, 0
        %v1995 = vsel %vm398, %v1934, 0
        %v1998 = vsel %vm398, %v1935, 0
        %v2001 = vsel %vm398, %v1936, 0
        %v2004 = vsel %vm398, %v1937, 0
        %v2007 = vsel %vm398, %v1938, 0
        %v2010 = vsel %vm398, %v1939, 0
        %v2013 = vsel %vm398, %v1940, 0
        %v2016 = vsel %vm398, %v1941, 0
        %v2019 = vsel %vm398, %v1942, 0
        %v2022 = vsel %vm398, %v1943, 0
        %v2025 = vsel %vm398, %v1944, 0
        %v2028 = vsel %vm398, %v1945, 0
        %v2031 = vsel %vm398, %v1946, 0
        %v2034 = vsel %vm398, %v1947, 0
        %v2037 = vsel %vm398, %v1948, 0
        %v2040 = vsel %vm398, %v1949, 0
        %v2043 = vsel %vm398, %v1950, 0
        %v2046 = vsel %vm398, %v1951, 0
        %v2049 = vsel %vm398, %v1952, 0
        %2051 = vmatprep.subr.mxu0 0.0
        %2052 = vmatpush1.msra.mxu0 0.0
        %2053 = vmatprep.subr.mxu0 0.0
        %2054 = vmatpush1.msra.mxu0 0.0
        %2055 = vmatprep.subr.mxu0 0.0
        %2056 = vmatpush1.msra.mxu0 0.0
        %2057 = vmatprep.subr.mxu0 0.0
        %2058 = vmatpush1.msra.mxu0 0.0
        %2059 = vmatprep.subr.mxu0 0.0
        %2060 = vmatpush1.msra.mxu0 0.0
        %2061 = vmatprep.subr.mxu0 0.0
        %2062 = vmatpush1.msra.mxu0 0.0
        %2063 = vmatprep.subr.mxu0 0.0
        %2064 = vmatpush1.msra.mxu0 0.0
        %2065 = vmatprep.subr.mxu0 0.0
        %2066 = vmatpush1.msra.mxu0 0.0
        %2067 = vmatprep.subr.mxu0 0.0
        %2068 = vmatpush1.msra.mxu0 0.0
        %2069 = vmatprep.subr.mxu0 0.0
        %2070 = vmatpush1.msra.mxu0 0.0
        %2071 = vmatprep.subr.mxu0 0.0
        %2072 = vmatpush1.msra.mxu0 0.0
        %2073 = vmatprep.subr.mxu0 0.0
        %2074 = vmatpush1.msra.mxu0 0.0
        %2075 = vmatprep.subr.mxu0 0.0
        %2076 = vmatpush1.msra.mxu0 0.0
        %2077 = vmatprep.subr.mxu0 0.0
        %2078 = vmatpush1.msra.mxu0 0.0
        %2079 = vmatprep.subr.mxu0 0.0
        %2080 = vmatpush1.msra.mxu0 0.0
        %2081 = vmatprep.subr.mxu0 0.0
        %2082 = vmatpush1.msra.mxu0 %v1954
        %2083 = vmatprep.subr.mxu0 0.0
        %2084 = vmatpush2.msra.mxu0 0.0
        %2085 = vmatprep.subr.mxu0 0.0
        %2086 = vmatpush2.msra.mxu0 0.0
        %2087 = vmatprep.subr.mxu0 0.0
        %2088 = vmatpush2.msra.mxu0 0.0
        %2089 = vmatprep.subr.mxu0 0.0
        %2090 = vmatpush2.msra.mxu0 0.0
        %2091 = vmatprep.subr.mxu0 0.0
        %2092 = vmatpush2.msra.mxu0 0.0
        %2093 = vmatprep.subr.mxu0 0.0
        %2094 = vmatpush2.msra.mxu0 0.0
        %2095 = vmatprep.subr.mxu0 0.0
        %2096 = vmatpush2.msra.mxu0 0.0
        %2097 = vmatprep.subr.mxu0 0.0
        %2098 = vmatpush2.msra.mxu0 0.0
        %2099 = vmatprep.subr.mxu0 0.0
        %2100 = vmatpush2.msra.mxu0 0.0
        %2101 = vmatprep.subr.mxu0 0.0
        %2102 = vmatpush2.msra.mxu0 0.0
        %2103 = vmatprep.subr.mxu0 0.0
        %2104 = vmatpush2.msra.mxu0 0.0
        %2105 = vmatprep.subr.mxu0 0.0
        %2106 = vmatpush2.msra.mxu0 0.0
        %2107 = vmatprep.subr.mxu0 0.0
        %2108 = vmatpush2.msra.mxu0 0.0
        %2109 = vmatprep.subr.mxu0 0.0
        %2110 = vmatpush2.msra.mxu0 0.0
        %2111 = vmatprep.subr.mxu0 0.0
        %2112 = vmatpush2.msra.mxu0 0.0
        %2113 = vmatprep.subr.mxu0 0.0
        %2114 = vmatpush2.msra.mxu0 0.0
        %2115 = vmatprep.mubr.f32.mxu0 0.0
        %2116 = vmatmul.mubr.f32.gmra.mxu0 %v1956
        %v2117 = vpop.f32.mrf.mxu0
        %v2118 = vadd.f32 0.0, %v2117
        %v2119 = vpop.f32.mrf.mxu0
        %2120 = vmatprep.mubr.f32.mxu0 0.0
        %2121 = vmatmul.mubr.f32.gmra.mxu0 %v1959
        %v2122 = vpop.f32.mrf.mxu0
        %v2123 = vadd.f32 0.0, %v2122
        %v2124 = vpop.f32.mrf.mxu0
        %2125 = vmatprep.mubr.f32.mxu0 0.0
        %2126 = vmatmul.mubr.f32.gmra.mxu0 %v1962
        %v2127 = vpop.f32.mrf.mxu0
        %v2128 = vadd.f32 0.0, %v2127
        %v2129 = vpop.f32.mrf.mxu0
        %2130 = vmatprep.mubr.f32.mxu0 0.0
        %2131 = vmatmul.mubr.f32.gmra.mxu0 %v1965
        %v2132 = vpop.f32.mrf.mxu0
        %v2133 = vadd.f32 0.0, %v2132
        %v2134 = vpop.f32.mrf.mxu0
        %2135 = vmatprep.mubr.f32.mxu0 0.0
        %2136 = vmatmul.mubr.f32.gmra.mxu0 %v1968
        %v2137 = vpop.f32.mrf.mxu0
        %v2138 = vadd.f32 0.0, %v2137
        %v2139 = vpop.f32.mrf.mxu0
        %2140 = vmatprep.mubr.f32.mxu0 0.0
        %2141 = vmatmul.mubr.f32.gmra.mxu0 %v1971
        %v2142 = vpop.f32.mrf.mxu0
        %v2143 = vadd.f32 0.0, %v2142
        %v2144 = vpop.f32.mrf.mxu0
        %2145 = vmatprep.mubr.f32.mxu0 0.0
        %2146 = vmatmul.mubr.f32.gmra.mxu0 %v1974
        %v2147 = vpop.f32.mrf.mxu0
        %v2148 = vadd.f32 0.0, %v2147
        %v2149 = vpop.f32.mrf.mxu0
        %2150 = vmatprep.mubr.f32.mxu0 0.0
        %2151 = vmatmul.mubr.f32.gmra.mxu0 %v1977
        %v2152 = vpop.f32.mrf.mxu0
        %v2153 = vadd.f32 0.0, %v2152
        %v2154 = vpop.f32.mrf.mxu0
        %2155 = vmatprep.mubr.f32.mxu0 0.0
        %2156 = vmatmul.mubr.f32.gmra.mxu0 %v1980
        %v2157 = vpop.f32.mrf.mxu0
        %v2158 = vadd.f32 0.0, %v2157
        %v2159 = vpop.f32.mrf.mxu0
        %2160 = vmatprep.mubr.f32.mxu0 0.0
        %2161 = vmatmul.mubr.f32.gmra.mxu0 %v1983
        %v2162 = vpop.f32.mrf.mxu0
        %v2163 = vadd.f32 0.0, %v2162
        %v2164 = vpop.f32.mrf.mxu0
        %2165 = vmatprep.mubr.f32.mxu0 0.0
        %2166 = vmatmul.mubr.f32.gmra.mxu0 %v1986
        %v2167 = vpop.f32.mrf.mxu0
        %v2168 = vadd.f32 0.0, %v2167
        %v2169 = vpop.f32.mrf.mxu0
        %2170 = vmatprep.mubr.f32.mxu0 0.0
        %2171 = vmatmul.mubr.f32.gmra.mxu0 %v1989
        %v2172 = vpop.f32.mrf.mxu0
        %v2173 = vadd.f32 0.0, %v2172
        %v2174 = vpop.f32.mrf.mxu0
        %2175 = vmatprep.mubr.f32.mxu0 0.0
        %2176 = vmatmul.mubr.f32.gmra.mxu0 %v1992
        %v2177 = vpop.f32.mrf.mxu0
        %v2178 = vadd.f32 0.0, %v2177
        %v2179 = vpop.f32.mrf.mxu0
        %2180 = vmatprep.mubr.f32.mxu0 0.0
        %2181 = vmatmul.mubr.f32.gmra.mxu0 %v1995
        %v2182 = vpop.f32.mrf.mxu0
        %v2183 = vadd.f32 0.0, %v2182
        %v2184 = vpop.f32.mrf.mxu0
        %2185 = vmatprep.mubr.f32.mxu0 0.0
        %2186 = vmatmul.mubr.f32.gmra.mxu0 %v1998
        %v2187 = vpop.f32.mrf.mxu0
        %v2188 = vadd.f32 0.0, %v2187
        %v2189 = vpop.f32.mrf.mxu0
        %2190 = vmatprep.mubr.f32.mxu0 0.0
        %2191 = vmatmul.mubr.f32.gmra.mxu0 %v2001
        %v2192 = vpop.f32.mrf.mxu0
        %v2193 = vadd.f32 0.0, %v2192
        %v2194 = vpop.f32.mrf.mxu0
        %2195 = vmatprep.mubr.f32.mxu0 0.0
        %2196 = vmatmul.mubr.f32.gmra.mxu0 %v2004
        %v2197 = vpop.f32.mrf.mxu0
        %v2198 = vadd.f32 0.0, %v2197
        %v2199 = vpop.f32.mrf.mxu0
        %2200 = vmatprep.mubr.f32.mxu0 0.0
        %2201 = vmatmul.mubr.f32.gmra.mxu0 %v2007
        %v2202 = vpop.f32.mrf.mxu0
        %v2203 = vadd.f32 0.0, %v2202
        %v2204 = vpop.f32.mrf.mxu0
        %2205 = vmatprep.mubr.f32.mxu0 0.0
        %2206 = vmatmul.mubr.f32.gmra.mxu0 %v2010
        %v2207 = vpop.f32.mrf.mxu0
        %v2208 = vadd.f32 0.0, %v2207
        %v2209 = vpop.f32.mrf.mxu0
        %2210 = vmatprep.mubr.f32.mxu0 0.0
        %2211 = vmatmul.mubr.f32.gmra.mxu0 %v2013
        %v2212 = vpop.f32.mrf.mxu0
        %v2213 = vadd.f32 0.0, %v2212
        %v2214 = vpop.f32.mrf.mxu0
        %2215 = vmatprep.mubr.f32.mxu0 0.0
        %2216 = vmatmul.mubr.f32.gmra.mxu0 %v2016
        %v2217 = vpop.f32.mrf.mxu0
        %v2218 = vadd.f32 0.0, %v2217
        %v2219 = vpop.f32.mrf.mxu0
        %2220 = vmatprep.mubr.f32.mxu0 0.0
        %2221 = vmatmul.mubr.f32.gmra.mxu0 %v2019
        %v2222 = vpop.f32.mrf.mxu0
        %v2223 = vadd.f32 0.0, %v2222
        %v2224 = vpop.f32.mrf.mxu0
        %2225 = vmatprep.mubr.f32.mxu0 0.0
        %2226 = vmatmul.mubr.f32.gmra.mxu0 %v2022
        %v2227 = vpop.f32.mrf.mxu0
        %v2228 = vadd.f32 0.0, %v2227
        %v2229 = vpop.f32.mrf.mxu0
        %2230 = vmatprep.mubr.f32.mxu0 0.0
        %2231 = vmatmul.mubr.f32.gmra.mxu0 %v2025
        %v2232 = vpop.f32.mrf.mxu0
        %v2233 = vadd.f32 0.0, %v2232
        %v2234 = vpop.f32.mrf.mxu0
        %2235 = vmatprep.mubr.f32.mxu0 0.0
        %2236 = vmatmul.mubr.f32.gmra.mxu0 %v2028
        %v2237 = vpop.f32.mrf.mxu0
        %v2238 = vadd.f32 0.0, %v2237
        %v2239 = vpop.f32.mrf.mxu0
        %2240 = vmatprep.mubr.f32.mxu0 0.0
        %2241 = vmatmul.mubr.f32.gmra.mxu0 %v2031
        %v2242 = vpop.f32.mrf.mxu0
        %v2243 = vadd.f32 0.0, %v2242
        %v2244 = vpop.f32.mrf.mxu0
        %2245 = vmatprep.mubr.f32.mxu0 0.0
        %2246 = vmatmul.mubr.f32.gmra.mxu0 %v2034
        %v2247 = vpop.f32.mrf.mxu0
        %v2248 = vadd.f32 0.0, %v2247
        %v2249 = vpop.f32.mrf.mxu0
        %2250 = vmatprep.mubr.f32.mxu0 0.0
        %2251 = vmatmul.mubr.f32.gmra.mxu0 %v2037
        %v2252 = vpop.f32.mrf.mxu0
        %v2253 = vadd.f32 0.0, %v2252
        %v2254 = vpop.f32.mrf.mxu0
        %2255 = vmatprep.mubr.f32.mxu0 0.0
        %2256 = vmatmul.mubr.f32.gmra.mxu0 %v2040
        %v2257 = vpop.f32.mrf.mxu0
        %v2258 = vadd.f32 0.0, %v2257
        %v2259 = vpop.f32.mrf.mxu0
        %2260 = vmatprep.mubr.f32.mxu0 0.0
        %2261 = vmatmul.mubr.f32.gmra.mxu0 %v2043
        %v2262 = vpop.f32.mrf.mxu0
        %v2263 = vadd.f32 0.0, %v2262
        %v2264 = vpop.f32.mrf.mxu0
        %2265 = vmatprep.mubr.f32.mxu0 0.0
        %2266 = vmatmul.mubr.f32.gmra.mxu0 %v2046
        %v2267 = vpop.f32.mrf.mxu0
        %v2268 = vadd.f32 0.0, %v2267
        %v2269 = vpop.f32.mrf.mxu0
        %2270 = vmatprep.mubr.f32.mxu0 0.0
        %2271 = vmatmul.mubr.f32.gmra.mxu0 %v2049
        %v2272 = vpop.f32.mrf.mxu0
        %v2273 = vadd.f32 0.0, %v2272
        %v2274 = vpop.f32.mrf.mxu0
        %2275 = vdwg.mxu0
        %v2276 = vadd.f32 %v1889, %v2118
        %v2277 = vadd.f32 %v1890, %v2123
        %v2278 = vadd.f32 %v1891, %v2128
        %v2279 = vadd.f32 %v1892, %v2133
        %v2280 = vadd.f32 %v1893, %v2138
        %v2281 = vadd.f32 %v1894, %v2143
        %v2282 = vadd.f32 %v1895, %v2148
        %v2283 = vadd.f32 %v1896, %v2153
        %v2284 = vadd.f32 %v1897, %v2158
        %v2285 = vadd.f32 %v1898, %v2163
        %v2286 = vadd.f32 %v1899, %v2168
        %v2287 = vadd.f32 %v1900, %v2173
        %v2288 = vadd.f32 %v1901, %v2178
        %v2289 = vadd.f32 %v1902, %v2183
        %v2290 = vadd.f32 %v1903, %v2188
        %v2291 = vadd.f32 %v1904, %v2193
        %v2292 = vadd.f32 %v1905, %v2198
        %v2293 = vadd.f32 %v1906, %v2203
        %v2294 = vadd.f32 %v1907, %v2208
        %v2295 = vadd.f32 %v1908, %v2213
        %v2296 = vadd.f32 %v1909, %v2218
        %v2297 = vadd.f32 %v1910, %v2223
        %v2298 = vadd.f32 %v1911, %v2228
        %v2299 = vadd.f32 %v1912, %v2233
        %v2300 = vadd.f32 %v1913, %v2238
        %v2301 = vadd.f32 %v1914, %v2243
        %v2302 = vadd.f32 %v1915, %v2248
        %v2303 = vadd.f32 %v1916, %v2253
        %v2304 = vadd.f32 %v1917, %v2258
        %v2305 = vadd.f32 %v1918, %v2263
        %v2306 = vadd.f32 %v1919, %v2268
        %v2307 = vadd.f32 %v1920, %v2273
        %v2308 = vld [vmem:[%s792 + $0x8] sm:$0xff]
        %v2309 = vld [vmem:[%s792 + $0x10] sm:$0xff]
        %v2310 = vld [vmem:[%s792 + $0x28] sm:$0xff]
        %v2311 = vld [vmem:[%s792 + $0x30] sm:$0xff]
        %v2312 = vld [vmem:[%s792 + $0x48] sm:$0xff]
        %v2313 = vld [vmem:[%s792 + $0x50] sm:$0xff]
        %v2314 = vld [vmem:[%s792 + $0x68] sm:$0xff]
        %v2315 = vld [vmem:[%s792 + $0x70] sm:$0xff]
        %v2316 = vld [vmem:[%s792 + $0x88] sm:$0xff]
        %v2317 = vld [vmem:[%s792 + $0x90] sm:$0xff]
        %v2318 = vld [vmem:[%s792 + $0xa8] sm:$0xff]
        %v2319 = vld [vmem:[%s792 + $0xb0] sm:$0xff]
        %v2320 = vld [vmem:[%s792 + $0xc8] sm:$0xff]
        %v2321 = vld [vmem:[%s792 + $0xd0] sm:$0xff]
        %v2322 = vld [vmem:[%s792 + $0xe8] sm:$0xff]
        %v2323 = vld [vmem:[%s792 + $0xf0] sm:$0xff]
        %v2324 = vld [vmem:[%s792 + $0x108] sm:$0xff]
        %v2325 = vld [vmem:[%s792 + $0x110] sm:$0xff]
        %v2326 = vld [vmem:[%s792 + $0x128] sm:$0xff]
        %v2327 = vld [vmem:[%s792 + $0x130] sm:$0xff]
        %v2328 = vld [vmem:[%s792 + $0x148] sm:$0xff]
        %v2329 = vld [vmem:[%s792 + $0x150] sm:$0xff]
        %v2330 = vld [vmem:[%s792 + $0x168] sm:$0xff]
        %v2331 = vld [vmem:[%s792 + $0x170] sm:$0xff]
        %v2332 = vld [vmem:[%s792 + $0x188] sm:$0xff]
        %v2333 = vld [vmem:[%s792 + $0x190] sm:$0xff]
        %v2334 = vld [vmem:[%s792 + $0x1a8] sm:$0xff]
        %v2335 = vld [vmem:[%s792 + $0x1b0] sm:$0xff]
        %v2336 = vld [vmem:[%s792 + $0x1c8] sm:$0xff]
        %v2337 = vld [vmem:[%s792 + $0x1d0] sm:$0xff]
        %v2338 = vld [vmem:[%s792 + $0x1e8] sm:$0xff]
        %v2339 = vld [vmem:[%s792 + $0x1f0] sm:$0xff]
        %s2340 = scalar_lea.vmem %s4, 32
        %v2341 = vld [vmem:[%s2340] sm:$0xff]
        %v2343 = vsel %vm398, %v2308, 0
        %v2346 = vsel %vm398, %v2309, 0
        %v2349 = vsel %vm398, %v2310, 0
        %v2352 = vsel %vm398, %v2311, 0
        %v2355 = vsel %vm398, %v2312, 0
        %v2358 = vsel %vm398, %v2313, 0
        %v2361 = vsel %vm398, %v2314, 0
        %v2364 = vsel %vm398, %v2315, 0
        %v2367 = vsel %vm398, %v2316, 0
        %v2370 = vsel %vm398, %v2317, 0
        %v2373 = vsel %vm398, %v2318, 0
        %v2376 = vsel %vm398, %v2319, 0
        %v2379 = vsel %vm398, %v2320, 0
        %v2382 = vsel %vm398, %v2321, 0
        %v2385 = vsel %vm398, %v2322, 0
        %v2388 = vsel %vm398, %v2323, 0
        %v2391 = vsel %vm398, %v2324, 0
        %v2394 = vsel %vm398, %v2325, 0
        %v2397 = vsel %vm398, %v2326, 0
        %v2400 = vsel %vm398, %v2327, 0
        %v2403 = vsel %vm398, %v2328, 0
        %v2406 = vsel %vm398, %v2329, 0
        %v2409 = vsel %vm398, %v2330, 0
        %v2412 = vsel %vm398, %v2331, 0
        %v2415 = vsel %vm398, %v2332, 0
        %v2418 = vsel %vm398, %v2333, 0
        %v2421 = vsel %vm398, %v2334, 0
        %v2424 = vsel %vm398, %v2335, 0
        %v2427 = vsel %vm398, %v2336, 0
        %v2430 = vsel %vm398, %v2337, 0
        %v2433 = vsel %vm398, %v2338, 0
        %v2436 = vsel %vm398, %v2339, 0
        %2438 = vmatprep.subr.mxu0 0.0
        %2439 = vmatpush1.msra.mxu0 0.0
        %2440 = vmatprep.subr.mxu0 0.0
        %2441 = vmatpush1.msra.mxu0 0.0
        %2442 = vmatprep.subr.mxu0 0.0
        %2443 = vmatpush1.msra.mxu0 0.0
        %2444 = vmatprep.subr.mxu0 0.0
        %2445 = vmatpush1.msra.mxu0 0.0
        %2446 = vmatprep.subr.mxu0 0.0
        %2447 = vmatpush1.msra.mxu0 0.0
        %2448 = vmatprep.subr.mxu0 0.0
        %2449 = vmatpush1.msra.mxu0 0.0
        %2450 = vmatprep.subr.mxu0 0.0
        %2451 = vmatpush1.msra.mxu0 0.0
        %2452 = vmatprep.subr.mxu0 0.0
        %2453 = vmatpush1.msra.mxu0 0.0
        %2454 = vmatprep.subr.mxu0 0.0
        %2455 = vmatpush1.msra.mxu0 0.0
        %2456 = vmatprep.subr.mxu0 0.0
        %2457 = vmatpush1.msra.mxu0 0.0
        %2458 = vmatprep.subr.mxu0 0.0
        %2459 = vmatpush1.msra.mxu0 0.0
        %2460 = vmatprep.subr.mxu0 0.0
        %2461 = vmatpush1.msra.mxu0 0.0
        %2462 = vmatprep.subr.mxu0 0.0
        %2463 = vmatpush1.msra.mxu0 0.0
        %2464 = vmatprep.subr.mxu0 0.0
        %2465 = vmatpush1.msra.mxu0 0.0
        %2466 = vmatprep.subr.mxu0 0.0
        %2467 = vmatpush1.msra.mxu0 0.0
        %2468 = vmatprep.subr.mxu0 0.0
        %2469 = vmatpush1.msra.mxu0 %v2341
        %2470 = vmatprep.subr.mxu0 0.0
        %2471 = vmatpush2.msra.mxu0 0.0
        %2472 = vmatprep.subr.mxu0 0.0
        %2473 = vmatpush2.msra.mxu0 0.0
        %2474 = vmatprep.subr.mxu0 0.0
        %2475 = vmatpush2.msra.mxu0 0.0
        %2476 = vmatprep.subr.mxu0 0.0
        %2477 = vmatpush2.msra.mxu0 0.0
        %2478 = vmatprep.subr.mxu0 0.0
        %2479 = vmatpush2.msra.mxu0 0.0
        %2480 = vmatprep.subr.mxu0 0.0
        %2481 = vmatpush2.msra.mxu0 0.0
        %2482 = vmatprep.subr.mxu0 0.0
        %2483 = vmatpush2.msra.mxu0 0.0
        %2484 = vmatprep.subr.mxu0 0.0
        %2485 = vmatpush2.msra.mxu0 0.0
        %2486 = vmatprep.subr.mxu0 0.0
        %2487 = vmatpush2.msra.mxu0 0.0
        %2488 = vmatprep.subr.mxu0 0.0
        %2489 = vmatpush2.msra.mxu0 0.0
        %2490 = vmatprep.subr.mxu0 0.0
        %2491 = vmatpush2.msra.mxu0 0.0
        %2492 = vmatprep.subr.mxu0 0.0
        %2493 = vmatpush2.msra.mxu0 0.0
        %2494 = vmatprep.subr.mxu0 0.0
        %2495 = vmatpush2.msra.mxu0 0.0
        %2496 = vmatprep.subr.mxu0 0.0
        %2497 = vmatpush2.msra.mxu0 0.0
        %2498 = vmatprep.subr.mxu0 0.0
        %2499 = vmatpush2.msra.mxu0 0.0
        %2500 = vmatprep.subr.mxu0 0.0
        %2501 = vmatpush2.msra.mxu0 0.0
        %2502 = vmatprep.mubr.f32.mxu0 0.0
        %2503 = vmatmul.mubr.f32.gmra.mxu0 %v2343
        %v2504 = vpop.f32.mrf.mxu0
        %v2505 = vadd.f32 0.0, %v2504
        %v2506 = vpop.f32.mrf.mxu0
        %2507 = vmatprep.mubr.f32.mxu0 0.0
        %2508 = vmatmul.mubr.f32.gmra.mxu0 %v2346
        %v2509 = vpop.f32.mrf.mxu0
        %v2510 = vadd.f32 0.0, %v2509
        %v2511 = vpop.f32.mrf.mxu0
        %2512 = vmatprep.mubr.f32.mxu0 0.0
        %2513 = vmatmul.mubr.f32.gmra.mxu0 %v2349
        %v2514 = vpop.f32.mrf.mxu0
        %v2515 = vadd.f32 0.0, %v2514
        %v2516 = vpop.f32.mrf.mxu0
        %2517 = vmatprep.mubr.f32.mxu0 0.0
        %2518 = vmatmul.mubr.f32.gmra.mxu0 %v2352
        %v2519 = vpop.f32.mrf.mxu0
        %v2520 = vadd.f32 0.0, %v2519
        %v2521 = vpop.f32.mrf.mxu0
        %2522 = vmatprep.mubr.f32.mxu0 0.0
        %2523 = vmatmul.mubr.f32.gmra.mxu0 %v2355
        %v2524 = vpop.f32.mrf.mxu0
        %v2525 = vadd.f32 0.0, %v2524
        %v2526 = vpop.f32.mrf.mxu0
        %2527 = vmatprep.mubr.f32.mxu0 0.0
        %2528 = vmatmul.mubr.f32.gmra.mxu0 %v2358
        %v2529 = vpop.f32.mrf.mxu0
        %v2530 = vadd.f32 0.0, %v2529
        %v2531 = vpop.f32.mrf.mxu0
        %2532 = vmatprep.mubr.f32.mxu0 0.0
        %2533 = vmatmul.mubr.f32.gmra.mxu0 %v2361
        %v2534 = vpop.f32.mrf.mxu0
        %v2535 = vadd.f32 0.0, %v2534
        %v2536 = vpop.f32.mrf.mxu0
        %2537 = vmatprep.mubr.f32.mxu0 0.0
        %2538 = vmatmul.mubr.f32.gmra.mxu0 %v2364
        %v2539 = vpop.f32.mrf.mxu0
        %v2540 = vadd.f32 0.0, %v2539
        %v2541 = vpop.f32.mrf.mxu0
        %2542 = vmatprep.mubr.f32.mxu0 0.0
        %2543 = vmatmul.mubr.f32.gmra.mxu0 %v2367
        %v2544 = vpop.f32.mrf.mxu0
        %v2545 = vadd.f32 0.0, %v2544
        %v2546 = vpop.f32.mrf.mxu0
        %2547 = vmatprep.mubr.f32.mxu0 0.0
        %2548 = vmatmul.mubr.f32.gmra.mxu0 %v2370
        %v2549 = vpop.f32.mrf.mxu0
        %v2550 = vadd.f32 0.0, %v2549
        %v2551 = vpop.f32.mrf.mxu0
        %2552 = vmatprep.mubr.f32.mxu0 0.0
        %2553 = vmatmul.mubr.f32.gmra.mxu0 %v2373
        %v2554 = vpop.f32.mrf.mxu0
        %v2555 = vadd.f32 0.0, %v2554
        %v2556 = vpop.f32.mrf.mxu0
        %2557 = vmatprep.mubr.f32.mxu0 0.0
        %2558 = vmatmul.mubr.f32.gmra.mxu0 %v2376
        %v2559 = vpop.f32.mrf.mxu0
        %v2560 = vadd.f32 0.0, %v2559
        %v2561 = vpop.f32.mrf.mxu0
        %2562 = vmatprep.mubr.f32.mxu0 0.0
        %2563 = vmatmul.mubr.f32.gmra.mxu0 %v2379
        %v2564 = vpop.f32.mrf.mxu0
        %v2565 = vadd.f32 0.0, %v2564
        %v2566 = vpop.f32.mrf.mxu0
        %2567 = vmatprep.mubr.f32.mxu0 0.0
        %2568 = vmatmul.mubr.f32.gmra.mxu0 %v2382
        %v2569 = vpop.f32.mrf.mxu0
        %v2570 = vadd.f32 0.0, %v2569
        %v2571 = vpop.f32.mrf.mxu0
        %2572 = vmatprep.mubr.f32.mxu0 0.0
        %2573 = vmatmul.mubr.f32.gmra.mxu0 %v2385
        %v2574 = vpop.f32.mrf.mxu0
        %v2575 = vadd.f32 0.0, %v2574
        %v2576 = vpop.f32.mrf.mxu0
        %2577 = vmatprep.mubr.f32.mxu0 0.0
        %2578 = vmatmul.mubr.f32.gmra.mxu0 %v2388
        %v2579 = vpop.f32.mrf.mxu0
        %v2580 = vadd.f32 0.0, %v2579
        %v2581 = vpop.f32.mrf.mxu0
        %2582 = vmatprep.mubr.f32.mxu0 0.0
        %2583 = vmatmul.mubr.f32.gmra.mxu0 %v2391
        %v2584 = vpop.f32.mrf.mxu0
        %v2585 = vadd.f32 0.0, %v2584
        %v2586 = vpop.f32.mrf.mxu0
        %2587 = vmatprep.mubr.f32.mxu0 0.0
        %2588 = vmatmul.mubr.f32.gmra.mxu0 %v2394
        %v2589 = vpop.f32.mrf.mxu0
        %v2590 = vadd.f32 0.0, %v2589
        %v2591 = vpop.f32.mrf.mxu0
        %2592 = vmatprep.mubr.f32.mxu0 0.0
        %2593 = vmatmul.mubr.f32.gmra.mxu0 %v2397
        %v2594 = vpop.f32.mrf.mxu0
        %v2595 = vadd.f32 0.0, %v2594
        %v2596 = vpop.f32.mrf.mxu0
        %2597 = vmatprep.mubr.f32.mxu0 0.0
        %2598 = vmatmul.mubr.f32.gmra.mxu0 %v2400
        %v2599 = vpop.f32.mrf.mxu0
        %v2600 = vadd.f32 0.0, %v2599
        %v2601 = vpop.f32.mrf.mxu0
        %2602 = vmatprep.mubr.f32.mxu0 0.0
        %2603 = vmatmul.mubr.f32.gmra.mxu0 %v2403
        %v2604 = vpop.f32.mrf.mxu0
        %v2605 = vadd.f32 0.0, %v2604
        %v2606 = vpop.f32.mrf.mxu0
        %2607 = vmatprep.mubr.f32.mxu0 0.0
        %2608 = vmatmul.mubr.f32.gmra.mxu0 %v2406
        %v2609 = vpop.f32.mrf.mxu0
        %v2610 = vadd.f32 0.0, %v2609
        %v2611 = vpop.f32.mrf.mxu0
        %2612 = vmatprep.mubr.f32.mxu0 0.0
        %2613 = vmatmul.mubr.f32.gmra.mxu0 %v2409
        %v2614 = vpop.f32.mrf.mxu0
        %v2615 = vadd.f32 0.0, %v2614
        %v2616 = vpop.f32.mrf.mxu0
        %2617 = vmatprep.mubr.f32.mxu0 0.0
        %2618 = vmatmul.mubr.f32.gmra.mxu0 %v2412
        %v2619 = vpop.f32.mrf.mxu0
        %v2620 = vadd.f32 0.0, %v2619
        %v2621 = vpop.f32.mrf.mxu0
        %2622 = vmatprep.mubr.f32.mxu0 0.0
        %2623 = vmatmul.mubr.f32.gmra.mxu0 %v2415
        %v2624 = vpop.f32.mrf.mxu0
        %v2625 = vadd.f32 0.0, %v2624
        %v2626 = vpop.f32.mrf.mxu0
        %2627 = vmatprep.mubr.f32.mxu0 0.0
        %2628 = vmatmul.mubr.f32.gmra.mxu0 %v2418
        %v2629 = vpop.f32.mrf.mxu0
        %v2630 = vadd.f32 0.0, %v2629
        %v2631 = vpop.f32.mrf.mxu0
        %2632 = vmatprep.mubr.f32.mxu0 0.0
        %2633 = vmatmul.mubr.f32.gmra.mxu0 %v2421
        %v2634 = vpop.f32.mrf.mxu0
        %v2635 = vadd.f32 0.0, %v2634
        %v2636 = vpop.f32.mrf.mxu0
        %2637 = vmatprep.mubr.f32.mxu0 0.0
        %2638 = vmatmul.mubr.f32.gmra.mxu0 %v2424
        %v2639 = vpop.f32.mrf.mxu0
        %v2640 = vadd.f32 0.0, %v2639
        %v2641 = vpop.f32.mrf.mxu0
        %2642 = vmatprep.mubr.f32.mxu0 0.0
        %2643 = vmatmul.mubr.f32.gmra.mxu0 %v2427
        %v2644 = vpop.f32.mrf.mxu0
        %v2645 = vadd.f32 0.0, %v2644
        %v2646 = vpop.f32.mrf.mxu0
        %2647 = vmatprep.mubr.f32.mxu0 0.0
        %2648 = vmatmul.mubr.f32.gmra.mxu0 %v2430
        %v2649 = vpop.f32.mrf.mxu0
        %v2650 = vadd.f32 0.0, %v2649
        %v2651 = vpop.f32.mrf.mxu0
        %2652 = vmatprep.mubr.f32.mxu0 0.0
        %2653 = vmatmul.mubr.f32.gmra.mxu0 %v2433
        %v2654 = vpop.f32.mrf.mxu0
        %v2655 = vadd.f32 0.0, %v2654
        %v2656 = vpop.f32.mrf.mxu0
        %2657 = vmatprep.mubr.f32.mxu0 0.0
        %2658 = vmatmul.mubr.f32.gmra.mxu0 %v2436
        %v2659 = vpop.f32.mrf.mxu0
        %v2660 = vadd.f32 0.0, %v2659
        %v2661 = vpop.f32.mrf.mxu0
        %2662 = vdwg.mxu0
        %v2663 = vadd.f32 %v2276, %v2505
        %v2664 = vadd.f32 %v2277, %v2510
        %v2665 = vadd.f32 %v2278, %v2515
        %v2666 = vadd.f32 %v2279, %v2520
        %v2667 = vadd.f32 %v2280, %v2525
        %v2668 = vadd.f32 %v2281, %v2530
        %v2669 = vadd.f32 %v2282, %v2535
        %v2670 = vadd.f32 %v2283, %v2540
        %v2671 = vadd.f32 %v2284, %v2545
        %v2672 = vadd.f32 %v2285, %v2550
        %v2673 = vadd.f32 %v2286, %v2555
        %v2674 = vadd.f32 %v2287, %v2560
        %v2675 = vadd.f32 %v2288, %v2565
        %v2676 = vadd.f32 %v2289, %v2570
        %v2677 = vadd.f32 %v2290, %v2575
        %v2678 = vadd.f32 %v2291, %v2580
        %v2679 = vadd.f32 %v2292, %v2585
        %v2680 = vadd.f32 %v2293, %v2590
        %v2681 = vadd.f32 %v2294, %v2595
        %v2682 = vadd.f32 %v2295, %v2600
        %v2683 = vadd.f32 %v2296, %v2605
        %v2684 = vadd.f32 %v2297, %v2610
        %v2685 = vadd.f32 %v2298, %v2615
        %v2686 = vadd.f32 %v2299, %v2620
        %v2687 = vadd.f32 %v2300, %v2625
        %v2688 = vadd.f32 %v2301, %v2630
        %v2689 = vadd.f32 %v2302, %v2635
        %v2690 = vadd.f32 %v2303, %v2640
        %v2691 = vadd.f32 %v2304, %v2645
        %v2692 = vadd.f32 %v2305, %v2650
        %v2693 = vadd.f32 %v2306, %v2655
        %v2694 = vadd.f32 %v2307, %v2660
        %v2695 = vld [vmem:[%s792 + $0x9] sm:$0xff]
        %v2696 = vld [vmem:[%s792 + $0x11] sm:$0xff]
        %v2697 = vld [vmem:[%s792 + $0x29] sm:$0xff]
        %v2698 = vld [vmem:[%s792 + $0x31] sm:$0xff]
        %v2699 = vld [vmem:[%s792 + $0x49] sm:$0xff]
        %v2700 = vld [vmem:[%s792 + $0x51] sm:$0xff]
        %v2701 = vld [vmem:[%s792 + $0x69] sm:$0xff]
        %v2702 = vld [vmem:[%s792 + $0x71] sm:$0xff]
        %v2703 = vld [vmem:[%s792 + $0x89] sm:$0xff]
        %v2704 = vld [vmem:[%s792 + $0x91] sm:$0xff]
        %v2705 = vld [vmem:[%s792 + $0xa9] sm:$0xff]
        %v2706 = vld [vmem:[%s792 + $0xb1] sm:$0xff]
        %v2707 = vld [vmem:[%s792 + $0xc9] sm:$0xff]
        %v2708 = vld [vmem:[%s792 + $0xd1] sm:$0xff]
        %v2709 = vld [vmem:[%s792 + $0xe9] sm:$0xff]
        %v2710 = vld [vmem:[%s792 + $0xf1] sm:$0xff]
        %v2711 = vld [vmem:[%s792 + $0x109] sm:$0xff]
        %v2712 = vld [vmem:[%s792 + $0x111] sm:$0xff]
        %v2713 = vld [vmem:[%s792 + $0x129] sm:$0xff]
        %v2714 = vld [vmem:[%s792 + $0x131] sm:$0xff]
        %v2715 = vld [vmem:[%s792 + $0x149] sm:$0xff]
        %v2716 = vld [vmem:[%s792 + $0x151] sm:$0xff]
        %v2717 = vld [vmem:[%s792 + $0x169] sm:$0xff]
        %v2718 = vld [vmem:[%s792 + $0x171] sm:$0xff]
        %v2719 = vld [vmem:[%s792 + $0x189] sm:$0xff]
        %v2720 = vld [vmem:[%s792 + $0x191] sm:$0xff]
        %v2721 = vld [vmem:[%s792 + $0x1a9] sm:$0xff]
        %v2722 = vld [vmem:[%s792 + $0x1b1] sm:$0xff]
        %v2723 = vld [vmem:[%s792 + $0x1c9] sm:$0xff]
        %v2724 = vld [vmem:[%s792 + $0x1d1] sm:$0xff]
        %v2725 = vld [vmem:[%s792 + $0x1e9] sm:$0xff]
        %v2726 = vld [vmem:[%s792 + $0x1f1] sm:$0xff]
        %s2727 = scalar_lea.vmem %s4, 40
        %v2728 = vld [vmem:[%s2727] sm:$0xff]
        %v2730 = vsel %vm398, %v2695, 0
        %v2733 = vsel %vm398, %v2696, 0
        %v2736 = vsel %vm398, %v2697, 0
        %v2739 = vsel %vm398, %v2698, 0
        %v2742 = vsel %vm398, %v2699, 0
        %v2745 = vsel %vm398, %v2700, 0
        %v2748 = vsel %vm398, %v2701, 0
        %v2751 = vsel %vm398, %v2702, 0
        %v2754 = vsel %vm398, %v2703, 0
        %v2757 = vsel %vm398, %v2704, 0
        %v2760 = vsel %vm398, %v2705, 0
        %v2763 = vsel %vm398, %v2706, 0
        %v2766 = vsel %vm398, %v2707, 0
        %v2769 = vsel %vm398, %v2708, 0
        %v2772 = vsel %vm398, %v2709, 0
        %v2775 = vsel %vm398, %v2710, 0
        %v2778 = vsel %vm398, %v2711, 0
        %v2781 = vsel %vm398, %v2712, 0
        %v2784 = vsel %vm398, %v2713, 0
        %v2787 = vsel %vm398, %v2714, 0
        %v2790 = vsel %vm398, %v2715, 0
        %v2793 = vsel %vm398, %v2716, 0
        %v2796 = vsel %vm398, %v2717, 0
        %v2799 = vsel %vm398, %v2718, 0
        %v2802 = vsel %vm398, %v2719, 0
        %v2805 = vsel %vm398, %v2720, 0
        %v2808 = vsel %vm398, %v2721, 0
        %v2811 = vsel %vm398, %v2722, 0
        %v2814 = vsel %vm398, %v2723, 0
        %v2817 = vsel %vm398, %v2724, 0
        %v2820 = vsel %vm398, %v2725, 0
        %v2823 = vsel %vm398, %v2726, 0
        %2825 = vmatprep.subr.mxu0 0.0
        %2826 = vmatpush1.msra.mxu0 0.0
        %2827 = vmatprep.subr.mxu0 0.0
        %2828 = vmatpush1.msra.mxu0 0.0
        %2829 = vmatprep.subr.mxu0 0.0
        %2830 = vmatpush1.msra.mxu0 0.0
        %2831 = vmatprep.subr.mxu0 0.0
        %2832 = vmatpush1.msra.mxu0 0.0
        %2833 = vmatprep.subr.mxu0 0.0
        %2834 = vmatpush1.msra.mxu0 0.0
        %2835 = vmatprep.subr.mxu0 0.0
        %2836 = vmatpush1.msra.mxu0 0.0
        %2837 = vmatprep.subr.mxu0 0.0
        %2838 = vmatpush1.msra.mxu0 0.0
        %2839 = vmatprep.subr.mxu0 0.0
        %2840 = vmatpush1.msra.mxu0 0.0
        %2841 = vmatprep.subr.mxu0 0.0
        %2842 = vmatpush1.msra.mxu0 0.0
        %2843 = vmatprep.subr.mxu0 0.0
        %2844 = vmatpush1.msra.mxu0 0.0
        %2845 = vmatprep.subr.mxu0 0.0
        %2846 = vmatpush1.msra.mxu0 0.0
        %2847 = vmatprep.subr.mxu0 0.0
        %2848 = vmatpush1.msra.mxu0 0.0
        %2849 = vmatprep.subr.mxu0 0.0
        %2850 = vmatpush1.msra.mxu0 0.0
        %2851 = vmatprep.subr.mxu0 0.0
        %2852 = vmatpush1.msra.mxu0 0.0
        %2853 = vmatprep.subr.mxu0 0.0
        %2854 = vmatpush1.msra.mxu0 0.0
        %2855 = vmatprep.subr.mxu0 0.0
        %2856 = vmatpush1.msra.mxu0 %v2728
        %2857 = vmatprep.subr.mxu0 0.0
        %2858 = vmatpush2.msra.mxu0 0.0
        %2859 = vmatprep.subr.mxu0 0.0
        %2860 = vmatpush2.msra.mxu0 0.0
        %2861 = vmatprep.subr.mxu0 0.0
        %2862 = vmatpush2.msra.mxu0 0.0
        %2863 = vmatprep.subr.mxu0 0.0
        %2864 = vmatpush2.msra.mxu0 0.0
        %2865 = vmatprep.subr.mxu0 0.0
        %2866 = vmatpush2.msra.mxu0 0.0
        %2867 = vmatprep.subr.mxu0 0.0
        %2868 = vmatpush2.msra.mxu0 0.0
        %2869 = vmatprep.subr.mxu0 0.0
        %2870 = vmatpush2.msra.mxu0 0.0
        %2871 = vmatprep.subr.mxu0 0.0
        %2872 = vmatpush2.msra.mxu0 0.0
        %2873 = vmatprep.subr.mxu0 0.0
        %2874 = vmatpush2.msra.mxu0 0.0
        %2875 = vmatprep.subr.mxu0 0.0
        %2876 = vmatpush2.msra.mxu0 0.0
        %2877 = vmatprep.subr.mxu0 0.0
        %2878 = vmatpush2.msra.mxu0 0.0
        %2879 = vmatprep.subr.mxu0 0.0
        %2880 = vmatpush2.msra.mxu0 0.0
        %2881 = vmatprep.subr.mxu0 0.0
        %2882 = vmatpush2.msra.mxu0 0.0
        %2883 = vmatprep.subr.mxu0 0.0
        %2884 = vmatpush2.msra.mxu0 0.0
        %2885 = vmatprep.subr.mxu0 0.0
        %2886 = vmatpush2.msra.mxu0 0.0
        %2887 = vmatprep.subr.mxu0 0.0
        %2888 = vmatpush2.msra.mxu0 0.0
        %2889 = vmatprep.mubr.f32.mxu0 0.0
        %2890 = vmatmul.mubr.f32.gmra.mxu0 %v2730
        %v2891 = vpop.f32.mrf.mxu0
        %v2892 = vadd.f32 0.0, %v2891
        %v2893 = vpop.f32.mrf.mxu0
        %2894 = vmatprep.mubr.f32.mxu0 0.0
        %2895 = vmatmul.mubr.f32.gmra.mxu0 %v2733
        %v2896 = vpop.f32.mrf.mxu0
        %v2897 = vadd.f32 0.0, %v2896
        %v2898 = vpop.f32.mrf.mxu0
        %2899 = vmatprep.mubr.f32.mxu0 0.0
        %2900 = vmatmul.mubr.f32.gmra.mxu0 %v2736
        %v2901 = vpop.f32.mrf.mxu0
        %v2902 = vadd.f32 0.0, %v2901
        %v2903 = vpop.f32.mrf.mxu0
        %2904 = vmatprep.mubr.f32.mxu0 0.0
        %2905 = vmatmul.mubr.f32.gmra.mxu0 %v2739
        %v2906 = vpop.f32.mrf.mxu0
        %v2907 = vadd.f32 0.0, %v2906
        %v2908 = vpop.f32.mrf.mxu0
        %2909 = vmatprep.mubr.f32.mxu0 0.0
        %2910 = vmatmul.mubr.f32.gmra.mxu0 %v2742
        %v2911 = vpop.f32.mrf.mxu0
        %v2912 = vadd.f32 0.0, %v2911
        %v2913 = vpop.f32.mrf.mxu0
        %2914 = vmatprep.mubr.f32.mxu0 0.0
        %2915 = vmatmul.mubr.f32.gmra.mxu0 %v2745
        %v2916 = vpop.f32.mrf.mxu0
        %v2917 = vadd.f32 0.0, %v2916
        %v2918 = vpop.f32.mrf.mxu0
        %2919 = vmatprep.mubr.f32.mxu0 0.0
        %2920 = vmatmul.mubr.f32.gmra.mxu0 %v2748
        %v2921 = vpop.f32.mrf.mxu0
        %v2922 = vadd.f32 0.0, %v2921
        %v2923 = vpop.f32.mrf.mxu0
        %2924 = vmatprep.mubr.f32.mxu0 0.0
        %2925 = vmatmul.mubr.f32.gmra.mxu0 %v2751
        %v2926 = vpop.f32.mrf.mxu0
        %v2927 = vadd.f32 0.0, %v2926
        %v2928 = vpop.f32.mrf.mxu0
        %2929 = vmatprep.mubr.f32.mxu0 0.0
        %2930 = vmatmul.mubr.f32.gmra.mxu0 %v2754
        %v2931 = vpop.f32.mrf.mxu0
        %v2932 = vadd.f32 0.0, %v2931
        %v2933 = vpop.f32.mrf.mxu0
        %2934 = vmatprep.mubr.f32.mxu0 0.0
        %2935 = vmatmul.mubr.f32.gmra.mxu0 %v2757
        %v2936 = vpop.f32.mrf.mxu0
        %v2937 = vadd.f32 0.0, %v2936
        %v2938 = vpop.f32.mrf.mxu0
        %2939 = vmatprep.mubr.f32.mxu0 0.0
        %2940 = vmatmul.mubr.f32.gmra.mxu0 %v2760
        %v2941 = vpop.f32.mrf.mxu0
        %v2942 = vadd.f32 0.0, %v2941
        %v2943 = vpop.f32.mrf.mxu0
        %2944 = vmatprep.mubr.f32.mxu0 0.0
        %2945 = vmatmul.mubr.f32.gmra.mxu0 %v2763
        %v2946 = vpop.f32.mrf.mxu0
        %v2947 = vadd.f32 0.0, %v2946
        %v2948 = vpop.f32.mrf.mxu0
        %2949 = vmatprep.mubr.f32.mxu0 0.0
        %2950 = vmatmul.mubr.f32.gmra.mxu0 %v2766
        %v2951 = vpop.f32.mrf.mxu0
        %v2952 = vadd.f32 0.0, %v2951
        %v2953 = vpop.f32.mrf.mxu0
        %2954 = vmatprep.mubr.f32.mxu0 0.0
        %2955 = vmatmul.mubr.f32.gmra.mxu0 %v2769
        %v2956 = vpop.f32.mrf.mxu0
        %v2957 = vadd.f32 0.0, %v2956
        %v2958 = vpop.f32.mrf.mxu0
        %2959 = vmatprep.mubr.f32.mxu0 0.0
        %2960 = vmatmul.mubr.f32.gmra.mxu0 %v2772
        %v2961 = vpop.f32.mrf.mxu0
        %v2962 = vadd.f32 0.0, %v2961
        %v2963 = vpop.f32.mrf.mxu0
        %2964 = vmatprep.mubr.f32.mxu0 0.0
        %2965 = vmatmul.mubr.f32.gmra.mxu0 %v2775
        %v2966 = vpop.f32.mrf.mxu0
        %v2967 = vadd.f32 0.0, %v2966
        %v2968 = vpop.f32.mrf.mxu0
        %2969 = vmatprep.mubr.f32.mxu0 0.0
        %2970 = vmatmul.mubr.f32.gmra.mxu0 %v2778
        %v2971 = vpop.f32.mrf.mxu0
        %v2972 = vadd.f32 0.0, %v2971
        %v2973 = vpop.f32.mrf.mxu0
        %2974 = vmatprep.mubr.f32.mxu0 0.0
        %2975 = vmatmul.mubr.f32.gmra.mxu0 %v2781
        %v2976 = vpop.f32.mrf.mxu0
        %v2977 = vadd.f32 0.0, %v2976
        %v2978 = vpop.f32.mrf.mxu0
        %2979 = vmatprep.mubr.f32.mxu0 0.0
        %2980 = vmatmul.mubr.f32.gmra.mxu0 %v2784
        %v2981 = vpop.f32.mrf.mxu0
        %v2982 = vadd.f32 0.0, %v2981
        %v2983 = vpop.f32.mrf.mxu0
        %2984 = vmatprep.mubr.f32.mxu0 0.0
        %2985 = vmatmul.mubr.f32.gmra.mxu0 %v2787
        %v2986 = vpop.f32.mrf.mxu0
        %v2987 = vadd.f32 0.0, %v2986
        %v2988 = vpop.f32.mrf.mxu0
        %2989 = vmatprep.mubr.f32.mxu0 0.0
        %2990 = vmatmul.mubr.f32.gmra.mxu0 %v2790
        %v2991 = vpop.f32.mrf.mxu0
        %v2992 = vadd.f32 0.0, %v2991
        %v2993 = vpop.f32.mrf.mxu0
        %2994 = vmatprep.mubr.f32.mxu0 0.0
        %2995 = vmatmul.mubr.f32.gmra.mxu0 %v2793
        %v2996 = vpop.f32.mrf.mxu0
        %v2997 = vadd.f32 0.0, %v2996
        %v2998 = vpop.f32.mrf.mxu0
        %2999 = vmatprep.mubr.f32.mxu0 0.0
        %3000 = vmatmul.mubr.f32.gmra.mxu0 %v2796
        %v3001 = vpop.f32.mrf.mxu0
        %v3002 = vadd.f32 0.0, %v3001
        %v3003 = vpop.f32.mrf.mxu0
        %3004 = vmatprep.mubr.f32.mxu0 0.0
        %3005 = vmatmul.mubr.f32.gmra.mxu0 %v2799
        %v3006 = vpop.f32.mrf.mxu0
        %v3007 = vadd.f32 0.0, %v3006
        %v3008 = vpop.f32.mrf.mxu0
        %3009 = vmatprep.mubr.f32.mxu0 0.0
        %3010 = vmatmul.mubr.f32.gmra.mxu0 %v2802
        %v3011 = vpop.f32.mrf.mxu0
        %v3012 = vadd.f32 0.0, %v3011
        %v3013 = vpop.f32.mrf.mxu0
        %3014 = vmatprep.mubr.f32.mxu0 0.0
        %3015 = vmatmul.mubr.f32.gmra.mxu0 %v2805
        %v3016 = vpop.f32.mrf.mxu0
        %v3017 = vadd.f32 0.0, %v3016
        %v3018 = vpop.f32.mrf.mxu0
        %3019 = vmatprep.mubr.f32.mxu0 0.0
        %3020 = vmatmul.mubr.f32.gmra.mxu0 %v2808
        %v3021 = vpop.f32.mrf.mxu0
        %v3022 = vadd.f32 0.0, %v3021
        %v3023 = vpop.f32.mrf.mxu0
        %3024 = vmatprep.mubr.f32.mxu0 0.0
        %3025 = vmatmul.mubr.f32.gmra.mxu0 %v2811
        %v3026 = vpop.f32.mrf.mxu0
        %v3027 = vadd.f32 0.0, %v3026
        %v3028 = vpop.f32.mrf.mxu0
        %3029 = vmatprep.mubr.f32.mxu0 0.0
        %3030 = vmatmul.mubr.f32.gmra.mxu0 %v2814
        %v3031 = vpop.f32.mrf.mxu0
        %v3032 = vadd.f32 0.0, %v3031
        %v3033 = vpop.f32.mrf.mxu0
        %3034 = vmatprep.mubr.f32.mxu0 0.0
        %3035 = vmatmul.mubr.f32.gmra.mxu0 %v2817
        %v3036 = vpop.f32.mrf.mxu0
        %v3037 = vadd.f32 0.0, %v3036
        %v3038 = vpop.f32.mrf.mxu0
        %3039 = vmatprep.mubr.f32.mxu0 0.0
        %3040 = vmatmul.mubr.f32.gmra.mxu0 %v2820
        %v3041 = vpop.f32.mrf.mxu0
        %v3042 = vadd.f32 0.0, %v3041
        %v3043 = vpop.f32.mrf.mxu0
        %3044 = vmatprep.mubr.f32.mxu0 0.0
        %3045 = vmatmul.mubr.f32.gmra.mxu0 %v2823
        %v3046 = vpop.f32.mrf.mxu0
        %v3047 = vadd.f32 0.0, %v3046
        %v3048 = vpop.f32.mrf.mxu0
        %3049 = vdwg.mxu0
        %v3050 = vadd.f32 %v2663, %v2892
        %v3051 = vadd.f32 %v2664, %v2897
        %v3052 = vadd.f32 %v2665, %v2902
        %v3053 = vadd.f32 %v2666, %v2907
        %v3054 = vadd.f32 %v2667, %v2912
        %v3055 = vadd.f32 %v2668, %v2917
        %v3056 = vadd.f32 %v2669, %v2922
        %v3057 = vadd.f32 %v2670, %v2927
        %v3058 = vadd.f32 %v2671, %v2932
        %v3059 = vadd.f32 %v2672, %v2937
        %v3060 = vadd.f32 %v2673, %v2942
        %v3061 = vadd.f32 %v2674, %v2947
        %v3062 = vadd.f32 %v2675, %v2952
        %v3063 = vadd.f32 %v2676, %v2957
        %v3064 = vadd.f32 %v2677, %v2962
        %v3065 = vadd.f32 %v2678, %v2967
        %v3066 = vadd.f32 %v2679, %v2972
        %v3067 = vadd.f32 %v2680, %v2977
        %v3068 = vadd.f32 %v2681, %v2982
        %v3069 = vadd.f32 %v2682, %v2987
        %v3070 = vadd.f32 %v2683, %v2992
        %v3071 = vadd.f32 %v2684, %v2997
        %v3072 = vadd.f32 %v2685, %v3002
        %v3073 = vadd.f32 %v2686, %v3007
        %v3074 = vadd.f32 %v2687, %v3012
        %v3075 = vadd.f32 %v2688, %v3017
        %v3076 = vadd.f32 %v2689, %v3022
        %v3077 = vadd.f32 %v2690, %v3027
        %v3078 = vadd.f32 %v2691, %v3032
        %v3079 = vadd.f32 %v2692, %v3037
        %v3080 = vadd.f32 %v2693, %v3042
        %v3081 = vadd.f32 %v2694, %v3047
        %s3082 = scalar_lea.vmem [#allocation2], 64
        %v3083 = vld [vmem:[%s3082 + $0x7] sm:$0xff]
        %v3084 = vld [vmem:[%s3082 + $0xf] sm:$0xff]
        %v3085 = vld [vmem:[%s3082 + $0x27] sm:$0xff]
        %v3086 = vld [vmem:[%s3082 + $0x2f] sm:$0xff]
        %v3087 = vld [vmem:[%s3082 + $0x47] sm:$0xff]
        %v3088 = vld [vmem:[%s3082 + $0x4f] sm:$0xff]
        %v3089 = vld [vmem:[%s3082 + $0x67] sm:$0xff]
        %v3090 = vld [vmem:[%s3082 + $0x6f] sm:$0xff]
        %v3091 = vld [vmem:[%s3082 + $0x87] sm:$0xff]
        %v3092 = vld [vmem:[%s3082 + $0x8f] sm:$0xff]
        %v3093 = vld [vmem:[%s3082 + $0xa7] sm:$0xff]
        %v3094 = vld [vmem:[%s3082 + $0xaf] sm:$0xff]
        %v3095 = vld [vmem:[%s3082 + $0xc7] sm:$0xff]
        %v3096 = vld [vmem:[%s3082 + $0xcf] sm:$0xff]
        %v3097 = vld [vmem:[%s3082 + $0xe7] sm:$0xff]
        %v3098 = vld [vmem:[%s3082 + $0xef] sm:$0xff]
        %v3099 = vld [vmem:[%s3082 + $0x107] sm:$0xff]
        %v3100 = vld [vmem:[%s3082 + $0x10f] sm:$0xff]
        %v3101 = vld [vmem:[%s3082 + $0x127] sm:$0xff]
        %v3102 = vld [vmem:[%s3082 + $0x12f] sm:$0xff]
        %v3103 = vld [vmem:[%s3082 + $0x147] sm:$0xff]
        %v3104 = vld [vmem:[%s3082 + $0x14f] sm:$0xff]
        %v3105 = vld [vmem:[%s3082 + $0x167] sm:$0xff]
        %v3106 = vld [vmem:[%s3082 + $0x16f] sm:$0xff]
        %v3107 = vld [vmem:[%s3082 + $0x187] sm:$0xff]
        %v3108 = vld [vmem:[%s3082 + $0x18f] sm:$0xff]
        %v3109 = vld [vmem:[%s3082 + $0x1a7] sm:$0xff]
        %v3110 = vld [vmem:[%s3082 + $0x1af] sm:$0xff]
        %v3111 = vld [vmem:[%s3082 + $0x1c7] sm:$0xff]
        %v3112 = vld [vmem:[%s3082 + $0x1cf] sm:$0xff]
        %v3113 = vld [vmem:[%s3082 + $0x1e7] sm:$0xff]
        %v3114 = vld [vmem:[%s3082 + $0x1ef] sm:$0xff]
        %s3115 = scalar_lea.vmem %s4, 48
        %v3116 = vld [vmem:[%s3115] sm:$0xff]
        %v3118 = vsel %vm398, %v3083, 0
        %v3121 = vsel %vm398, %v3084, 0
        %v3124 = vsel %vm398, %v3085, 0
        %v3127 = vsel %vm398, %v3086, 0
        %v3130 = vsel %vm398, %v3087, 0
        %v3133 = vsel %vm398, %v3088, 0
        %v3136 = vsel %vm398, %v3089, 0
        %v3139 = vsel %vm398, %v3090, 0
        %v3142 = vsel %vm398, %v3091, 0
        %v3145 = vsel %vm398, %v3092, 0
        %v3148 = vsel %vm398, %v3093, 0
        %v3151 = vsel %vm398, %v3094, 0
        %v3154 = vsel %vm398, %v3095, 0
        %v3157 = vsel %vm398, %v3096, 0
        %v3160 = vsel %vm398, %v3097, 0
        %v3163 = vsel %vm398, %v3098, 0
        %v3166 = vsel %vm398, %v3099, 0
        %v3169 = vsel %vm398, %v3100, 0
        %v3172 = vsel %vm398, %v3101, 0
        %v3175 = vsel %vm398, %v3102, 0
        %v3178 = vsel %vm398, %v3103, 0
        %v3181 = vsel %vm398, %v3104, 0
        %v3184 = vsel %vm398, %v3105, 0
        %v3187 = vsel %vm398, %v3106, 0
        %v3190 = vsel %vm398, %v3107, 0
        %v3193 = vsel %vm398, %v3108, 0
        %v3196 = vsel %vm398, %v3109, 0
        %v3199 = vsel %vm398, %v3110, 0
        %v3202 = vsel %vm398, %v3111, 0
        %v3205 = vsel %vm398, %v3112, 0
        %v3208 = vsel %vm398, %v3113, 0
        %v3211 = vsel %vm398, %v3114, 0
        %3213 = vmatprep.subr.mxu0 0.0
        %3214 = vmatpush1.msra.mxu0 0.0
        %3215 = vmatprep.subr.mxu0 0.0
        %3216 = vmatpush1.msra.mxu0 0.0
        %3217 = vmatprep.subr.mxu0 0.0
        %3218 = vmatpush1.msra.mxu0 0.0
        %3219 = vmatprep.subr.mxu0 0.0
        %3220 = vmatpush1.msra.mxu0 0.0
        %3221 = vmatprep.subr.mxu0 0.0
        %3222 = vmatpush1.msra.mxu0 0.0
        %3223 = vmatprep.subr.mxu0 0.0
        %3224 = vmatpush1.msra.mxu0 0.0
        %3225 = vmatprep.subr.mxu0 0.0
        %3226 = vmatpush1.msra.mxu0 0.0
        %3227 = vmatprep.subr.mxu0 0.0
        %3228 = vmatpush1.msra.mxu0 0.0
        %3229 = vmatprep.subr.mxu0 0.0
        %3230 = vmatpush1.msra.mxu0 0.0
        %3231 = vmatprep.subr.mxu0 0.0
        %3232 = vmatpush1.msra.mxu0 0.0
        %3233 = vmatprep.subr.mxu0 0.0
        %3234 = vmatpush1.msra.mxu0 0.0
        %3235 = vmatprep.subr.mxu0 0.0
        %3236 = vmatpush1.msra.mxu0 0.0
        %3237 = vmatprep.subr.mxu0 0.0
        %3238 = vmatpush1.msra.mxu0 0.0
        %3239 = vmatprep.subr.mxu0 0.0
        %3240 = vmatpush1.msra.mxu0 0.0
        %3241 = vmatprep.subr.mxu0 0.0
        %3242 = vmatpush1.msra.mxu0 0.0
        %3243 = vmatprep.subr.mxu0 0.0
        %3244 = vmatpush1.msra.mxu0 %v3116
        %3245 = vmatprep.subr.mxu0 0.0
        %3246 = vmatpush2.msra.mxu0 0.0
        %3247 = vmatprep.subr.mxu0 0.0
        %3248 = vmatpush2.msra.mxu0 0.0
        %3249 = vmatprep.subr.mxu0 0.0
        %3250 = vmatpush2.msra.mxu0 0.0
        %3251 = vmatprep.subr.mxu0 0.0
        %3252 = vmatpush2.msra.mxu0 0.0
        %3253 = vmatprep.subr.mxu0 0.0
        %3254 = vmatpush2.msra.mxu0 0.0
        %3255 = vmatprep.subr.mxu0 0.0
        %3256 = vmatpush2.msra.mxu0 0.0
        %3257 = vmatprep.subr.mxu0 0.0
        %3258 = vmatpush2.msra.mxu0 0.0
        %3259 = vmatprep.subr.mxu0 0.0
        %3260 = vmatpush2.msra.mxu0 0.0
        %3261 = vmatprep.subr.mxu0 0.0
        %3262 = vmatpush2.msra.mxu0 0.0
        %3263 = vmatprep.subr.mxu0 0.0
        %3264 = vmatpush2.msra.mxu0 0.0
        %3265 = vmatprep.subr.mxu0 0.0
        %3266 = vmatpush2.msra.mxu0 0.0
        %3267 = vmatprep.subr.mxu0 0.0
        %3268 = vmatpush2.msra.mxu0 0.0
        %3269 = vmatprep.subr.mxu0 0.0
        %3270 = vmatpush2.msra.mxu0 0.0
        %3271 = vmatprep.subr.mxu0 0.0
        %3272 = vmatpush2.msra.mxu0 0.0
        %3273 = vmatprep.subr.mxu0 0.0
        %3274 = vmatpush2.msra.mxu0 0.0
        %3275 = vmatprep.subr.mxu0 0.0
        %3276 = vmatpush2.msra.mxu0 0.0
        %3277 = vmatprep.mubr.f32.mxu0 0.0
        %3278 = vmatmul.mubr.f32.gmra.mxu0 %v3118
        %v3279 = vpop.f32.mrf.mxu0
        %v3280 = vadd.f32 0.0, %v3279
        %v3281 = vpop.f32.mrf.mxu0
        %3282 = vmatprep.mubr.f32.mxu0 0.0
        %3283 = vmatmul.mubr.f32.gmra.mxu0 %v3121
        %v3284 = vpop.f32.mrf.mxu0
        %v3285 = vadd.f32 0.0, %v3284
        %v3286 = vpop.f32.mrf.mxu0
        %3287 = vmatprep.mubr.f32.mxu0 0.0
        %3288 = vmatmul.mubr.f32.gmra.mxu0 %v3124
        %v3289 = vpop.f32.mrf.mxu0
        %v3290 = vadd.f32 0.0, %v3289
        %v3291 = vpop.f32.mrf.mxu0
        %3292 = vmatprep.mubr.f32.mxu0 0.0
        %3293 = vmatmul.mubr.f32.gmra.mxu0 %v3127
        %v3294 = vpop.f32.mrf.mxu0
        %v3295 = vadd.f32 0.0, %v3294
        %v3296 = vpop.f32.mrf.mxu0
        %3297 = vmatprep.mubr.f32.mxu0 0.0
        %3298 = vmatmul.mubr.f32.gmra.mxu0 %v3130
        %v3299 = vpop.f32.mrf.mxu0
        %v3300 = vadd.f32 0.0, %v3299
        %v3301 = vpop.f32.mrf.mxu0
        %3302 = vmatprep.mubr.f32.mxu0 0.0
        %3303 = vmatmul.mubr.f32.gmra.mxu0 %v3133
        %v3304 = vpop.f32.mrf.mxu0
        %v3305 = vadd.f32 0.0, %v3304
        %v3306 = vpop.f32.mrf.mxu0
        %3307 = vmatprep.mubr.f32.mxu0 0.0
        %3308 = vmatmul.mubr.f32.gmra.mxu0 %v3136
        %v3309 = vpop.f32.mrf.mxu0
        %v3310 = vadd.f32 0.0, %v3309
        %v3311 = vpop.f32.mrf.mxu0
        %3312 = vmatprep.mubr.f32.mxu0 0.0
        %3313 = vmatmul.mubr.f32.gmra.mxu0 %v3139
        %v3314 = vpop.f32.mrf.mxu0
        %v3315 = vadd.f32 0.0, %v3314
        %v3316 = vpop.f32.mrf.mxu0
        %3317 = vmatprep.mubr.f32.mxu0 0.0
        %3318 = vmatmul.mubr.f32.gmra.mxu0 %v3142
        %v3319 = vpop.f32.mrf.mxu0
        %v3320 = vadd.f32 0.0, %v3319
        %v3321 = vpop.f32.mrf.mxu0
        %3322 = vmatprep.mubr.f32.mxu0 0.0
        %3323 = vmatmul.mubr.f32.gmra.mxu0 %v3145
        %v3324 = vpop.f32.mrf.mxu0
        %v3325 = vadd.f32 0.0, %v3324
        %v3326 = vpop.f32.mrf.mxu0
        %3327 = vmatprep.mubr.f32.mxu0 0.0
        %3328 = vmatmul.mubr.f32.gmra.mxu0 %v3148
        %v3329 = vpop.f32.mrf.mxu0
        %v3330 = vadd.f32 0.0, %v3329
        %v3331 = vpop.f32.mrf.mxu0
        %3332 = vmatprep.mubr.f32.mxu0 0.0
        %3333 = vmatmul.mubr.f32.gmra.mxu0 %v3151
        %v3334 = vpop.f32.mrf.mxu0
        %v3335 = vadd.f32 0.0, %v3334
        %v3336 = vpop.f32.mrf.mxu0
        %3337 = vmatprep.mubr.f32.mxu0 0.0
        %3338 = vmatmul.mubr.f32.gmra.mxu0 %v3154
        %v3339 = vpop.f32.mrf.mxu0
        %v3340 = vadd.f32 0.0, %v3339
        %v3341 = vpop.f32.mrf.mxu0
        %3342 = vmatprep.mubr.f32.mxu0 0.0
        %3343 = vmatmul.mubr.f32.gmra.mxu0 %v3157
        %v3344 = vpop.f32.mrf.mxu0
        %v3345 = vadd.f32 0.0, %v3344
        %v3346 = vpop.f32.mrf.mxu0
        %3347 = vmatprep.mubr.f32.mxu0 0.0
        %3348 = vmatmul.mubr.f32.gmra.mxu0 %v3160
        %v3349 = vpop.f32.mrf.mxu0
        %v3350 = vadd.f32 0.0, %v3349
        %v3351 = vpop.f32.mrf.mxu0
        %3352 = vmatprep.mubr.f32.mxu0 0.0
        %3353 = vmatmul.mubr.f32.gmra.mxu0 %v3163
        %v3354 = vpop.f32.mrf.mxu0
        %v3355 = vadd.f32 0.0, %v3354
        %v3356 = vpop.f32.mrf.mxu0
        %3357 = vmatprep.mubr.f32.mxu0 0.0
        %3358 = vmatmul.mubr.f32.gmra.mxu0 %v3166
        %v3359 = vpop.f32.mrf.mxu0
        %v3360 = vadd.f32 0.0, %v3359
        %v3361 = vpop.f32.mrf.mxu0
        %3362 = vmatprep.mubr.f32.mxu0 0.0
        %3363 = vmatmul.mubr.f32.gmra.mxu0 %v3169
        %v3364 = vpop.f32.mrf.mxu0
        %v3365 = vadd.f32 0.0, %v3364
        %v3366 = vpop.f32.mrf.mxu0
        %3367 = vmatprep.mubr.f32.mxu0 0.0
        %3368 = vmatmul.mubr.f32.gmra.mxu0 %v3172
        %v3369 = vpop.f32.mrf.mxu0
        %v3370 = vadd.f32 0.0, %v3369
        %v3371 = vpop.f32.mrf.mxu0
        %3372 = vmatprep.mubr.f32.mxu0 0.0
        %3373 = vmatmul.mubr.f32.gmra.mxu0 %v3175
        %v3374 = vpop.f32.mrf.mxu0
        %v3375 = vadd.f32 0.0, %v3374
        %v3376 = vpop.f32.mrf.mxu0
        %3377 = vmatprep.mubr.f32.mxu0 0.0
        %3378 = vmatmul.mubr.f32.gmra.mxu0 %v3178
        %v3379 = vpop.f32.mrf.mxu0
        %v3380 = vadd.f32 0.0, %v3379
        %v3381 = vpop.f32.mrf.mxu0
        %3382 = vmatprep.mubr.f32.mxu0 0.0
        %3383 = vmatmul.mubr.f32.gmra.mxu0 %v3181
        %v3384 = vpop.f32.mrf.mxu0
        %v3385 = vadd.f32 0.0, %v3384
        %v3386 = vpop.f32.mrf.mxu0
        %3387 = vmatprep.mubr.f32.mxu0 0.0
        %3388 = vmatmul.mubr.f32.gmra.mxu0 %v3184
        %v3389 = vpop.f32.mrf.mxu0
        %v3390 = vadd.f32 0.0, %v3389
        %v3391 = vpop.f32.mrf.mxu0
        %3392 = vmatprep.mubr.f32.mxu0 0.0
        %3393 = vmatmul.mubr.f32.gmra.mxu0 %v3187
        %v3394 = vpop.f32.mrf.mxu0
        %v3395 = vadd.f32 0.0, %v3394
        %v3396 = vpop.f32.mrf.mxu0
        %3397 = vmatprep.mubr.f32.mxu0 0.0
        %3398 = vmatmul.mubr.f32.gmra.mxu0 %v3190
        %v3399 = vpop.f32.mrf.mxu0
        %v3400 = vadd.f32 0.0, %v3399
        %v3401 = vpop.f32.mrf.mxu0
        %3402 = vmatprep.mubr.f32.mxu0 0.0
        %3403 = vmatmul.mubr.f32.gmra.mxu0 %v3193
        %v3404 = vpop.f32.mrf.mxu0
        %v3405 = vadd.f32 0.0, %v3404
        %v3406 = vpop.f32.mrf.mxu0
        %3407 = vmatprep.mubr.f32.mxu0 0.0
        %3408 = vmatmul.mubr.f32.gmra.mxu0 %v3196
        %v3409 = vpop.f32.mrf.mxu0
        %v3410 = vadd.f32 0.0, %v3409
        %v3411 = vpop.f32.mrf.mxu0
        %3412 = vmatprep.mubr.f32.mxu0 0.0
        %3413 = vmatmul.mubr.f32.gmra.mxu0 %v3199
        %v3414 = vpop.f32.mrf.mxu0
        %v3415 = vadd.f32 0.0, %v3414
        %v3416 = vpop.f32.mrf.mxu0
        %3417 = vmatprep.mubr.f32.mxu0 0.0
        %3418 = vmatmul.mubr.f32.gmra.mxu0 %v3202
        %v3419 = vpop.f32.mrf.mxu0
        %v3420 = vadd.f32 0.0, %v3419
        %v3421 = vpop.f32.mrf.mxu0
        %3422 = vmatprep.mubr.f32.mxu0 0.0
        %3423 = vmatmul.mubr.f32.gmra.mxu0 %v3205
        %v3424 = vpop.f32.mrf.mxu0
        %v3425 = vadd.f32 0.0, %v3424
        %v3426 = vpop.f32.mrf.mxu0
        %3427 = vmatprep.mubr.f32.mxu0 0.0
        %3428 = vmatmul.mubr.f32.gmra.mxu0 %v3208
        %v3429 = vpop.f32.mrf.mxu0
        %v3430 = vadd.f32 0.0, %v3429
        %v3431 = vpop.f32.mrf.mxu0
        %3432 = vmatprep.mubr.f32.mxu0 0.0
        %3433 = vmatmul.mubr.f32.gmra.mxu0 %v3211
        %v3434 = vpop.f32.mrf.mxu0
        %v3435 = vadd.f32 0.0, %v3434
        %v3436 = vpop.f32.mrf.mxu0
        %3437 = vdwg.mxu0
        %v3438 = vadd.f32 %v3050, %v3280
        %v3439 = vadd.f32 %v3051, %v3285
        %v3440 = vadd.f32 %v3052, %v3290
        %v3441 = vadd.f32 %v3053, %v3295
        %v3442 = vadd.f32 %v3054, %v3300
        %v3443 = vadd.f32 %v3055, %v3305
        %v3444 = vadd.f32 %v3056, %v3310
        %v3445 = vadd.f32 %v3057, %v3315
        %v3446 = vadd.f32 %v3058, %v3320
        %v3447 = vadd.f32 %v3059, %v3325
        %v3448 = vadd.f32 %v3060, %v3330
        %v3449 = vadd.f32 %v3061, %v3335
        %v3450 = vadd.f32 %v3062, %v3340
        %v3451 = vadd.f32 %v3063, %v3345
        %v3452 = vadd.f32 %v3064, %v3350
        %v3453 = vadd.f32 %v3065, %v3355
        %v3454 = vadd.f32 %v3066, %v3360
        %v3455 = vadd.f32 %v3067, %v3365
        %v3456 = vadd.f32 %v3068, %v3370
        %v3457 = vadd.f32 %v3069, %v3375
        %v3458 = vadd.f32 %v3070, %v3380
        %v3459 = vadd.f32 %v3071, %v3385
        %v3460 = vadd.f32 %v3072, %v3390
        %v3461 = vadd.f32 %v3073, %v3395
        %v3462 = vadd.f32 %v3074, %v3400
        %v3463 = vadd.f32 %v3075, %v3405
        %v3464 = vadd.f32 %v3076, %v3410
        %v3465 = vadd.f32 %v3077, %v3415
        %v3466 = vadd.f32 %v3078, %v3420
        %v3467 = vadd.f32 %v3079, %v3425
        %v3468 = vadd.f32 %v3080, %v3430
        %v3469 = vadd.f32 %v3081, %v3435
        %v3470 = vld [vmem:[%s3082 + $0x8] sm:$0xff]
        %v3471 = vld [vmem:[%s3082 + $0x10] sm:$0xff]
        %v3472 = vld [vmem:[%s3082 + $0x28] sm:$0xff]
        %v3473 = vld [vmem:[%s3082 + $0x30] sm:$0xff]
        %v3474 = vld [vmem:[%s3082 + $0x48] sm:$0xff]
        %v3475 = vld [vmem:[%s3082 + $0x50] sm:$0xff]
        %v3476 = vld [vmem:[%s3082 + $0x68] sm:$0xff]
        %v3477 = vld [vmem:[%s3082 + $0x70] sm:$0xff]
        %v3478 = vld [vmem:[%s3082 + $0x88] sm:$0xff]
        %v3479 = vld [vmem:[%s3082 + $0x90] sm:$0xff]
        %v3480 = vld [vmem:[%s3082 + $0xa8] sm:$0xff]
        %v3481 = vld [vmem:[%s3082 + $0xb0] sm:$0xff]
        %v3482 = vld [vmem:[%s3082 + $0xc8] sm:$0xff]
        %v3483 = vld [vmem:[%s3082 + $0xd0] sm:$0xff]
        %v3484 = vld [vmem:[%s3082 + $0xe8] sm:$0xff]
        %v3485 = vld [vmem:[%s3082 + $0xf0] sm:$0xff]
        %v3486 = vld [vmem:[%s3082 + $0x108] sm:$0xff]
        %v3487 = vld [vmem:[%s3082 + $0x110] sm:$0xff]
        %v3488 = vld [vmem:[%s3082 + $0x128] sm:$0xff]
        %v3489 = vld [vmem:[%s3082 + $0x130] sm:$0xff]
        %v3490 = vld [vmem:[%s3082 + $0x148] sm:$0xff]
        %v3491 = vld [vmem:[%s3082 + $0x150] sm:$0xff]
        %v3492 = vld [vmem:[%s3082 + $0x168] sm:$0xff]
        %v3493 = vld [vmem:[%s3082 + $0x170] sm:$0xff]
        %v3494 = vld [vmem:[%s3082 + $0x188] sm:$0xff]
        %v3495 = vld [vmem:[%s3082 + $0x190] sm:$0xff]
        %v3496 = vld [vmem:[%s3082 + $0x1a8] sm:$0xff]
        %v3497 = vld [vmem:[%s3082 + $0x1b0] sm:$0xff]
        %v3498 = vld [vmem:[%s3082 + $0x1c8] sm:$0xff]
        %v3499 = vld [vmem:[%s3082 + $0x1d0] sm:$0xff]
        %v3500 = vld [vmem:[%s3082 + $0x1e8] sm:$0xff]
        %v3501 = vld [vmem:[%s3082 + $0x1f0] sm:$0xff]
        %s3502 = scalar_lea.vmem %s4, 56
        %v3503 = vld [vmem:[%s3502] sm:$0xff]
        %v3505 = vsel %vm398, %v3470, 0
        %v3508 = vsel %vm398, %v3471, 0
        %v3511 = vsel %vm398, %v3472, 0
        %v3514 = vsel %vm398, %v3473, 0
        %v3517 = vsel %vm398, %v3474, 0
        %v3520 = vsel %vm398, %v3475, 0
        %v3523 = vsel %vm398, %v3476, 0
        %v3526 = vsel %vm398, %v3477, 0
        %v3529 = vsel %vm398, %v3478, 0
        %v3532 = vsel %vm398, %v3479, 0
        %v3535 = vsel %vm398, %v3480, 0
        %v3538 = vsel %vm398, %v3481, 0
        %v3541 = vsel %vm398, %v3482, 0
        %v3544 = vsel %vm398, %v3483, 0
        %v3547 = vsel %vm398, %v3484, 0
        %v3550 = vsel %vm398, %v3485, 0
        %v3553 = vsel %vm398, %v3486, 0
        %v3556 = vsel %vm398, %v3487, 0
        %v3559 = vsel %vm398, %v3488, 0
        %v3562 = vsel %vm398, %v3489, 0
        %v3565 = vsel %vm398, %v3490, 0
        %v3568 = vsel %vm398, %v3491, 0
        %v3571 = vsel %vm398, %v3492, 0
        %v3574 = vsel %vm398, %v3493, 0
        %v3577 = vsel %vm398, %v3494, 0
        %v3580 = vsel %vm398, %v3495, 0
        %v3583 = vsel %vm398, %v3496, 0
        %v3586 = vsel %vm398, %v3497, 0
        %v3589 = vsel %vm398, %v3498, 0
        %v3592 = vsel %vm398, %v3499, 0
        %v3595 = vsel %vm398, %v3500, 0
        %v3598 = vsel %vm398, %v3501, 0
        %3600 = vmatprep.subr.mxu0 0.0
        %3601 = vmatpush1.msra.mxu0 0.0
        %3602 = vmatprep.subr.mxu0 0.0
        %3603 = vmatpush1.msra.mxu0 0.0
        %3604 = vmatprep.subr.mxu0 0.0
        %3605 = vmatpush1.msra.mxu0 0.0
        %3606 = vmatprep.subr.mxu0 0.0
        %3607 = vmatpush1.msra.mxu0 0.0
        %3608 = vmatprep.subr.mxu0 0.0
        %3609 = vmatpush1.msra.mxu0 0.0
        %3610 = vmatprep.subr.mxu0 0.0
        %3611 = vmatpush1.msra.mxu0 0.0
        %3612 = vmatprep.subr.mxu0 0.0
        %3613 = vmatpush1.msra.mxu0 0.0
        %3614 = vmatprep.subr.mxu0 0.0
        %3615 = vmatpush1.msra.mxu0 0.0
        %3616 = vmatprep.subr.mxu0 0.0
        %3617 = vmatpush1.msra.mxu0 0.0
        %3618 = vmatprep.subr.mxu0 0.0
        %3619 = vmatpush1.msra.mxu0 0.0
        %3620 = vmatprep.subr.mxu0 0.0
        %3621 = vmatpush1.msra.mxu0 0.0
        %3622 = vmatprep.subr.mxu0 0.0
        %3623 = vmatpush1.msra.mxu0 0.0
        %3624 = vmatprep.subr.mxu0 0.0
        %3625 = vmatpush1.msra.mxu0 0.0
        %3626 = vmatprep.subr.mxu0 0.0
        %3627 = vmatpush1.msra.mxu0 0.0
        %3628 = vmatprep.subr.mxu0 0.0
        %3629 = vmatpush1.msra.mxu0 0.0
        %3630 = vmatprep.subr.mxu0 0.0
        %3631 = vmatpush1.msra.mxu0 %v3503
        %3632 = vmatprep.subr.mxu0 0.0
        %3633 = vmatpush2.msra.mxu0 0.0
        %3634 = vmatprep.subr.mxu0 0.0
        %3635 = vmatpush2.msra.mxu0 0.0
        %3636 = vmatprep.subr.mxu0 0.0
        %3637 = vmatpush2.msra.mxu0 0.0
        %3638 = vmatprep.subr.mxu0 0.0
        %3639 = vmatpush2.msra.mxu0 0.0
        %3640 = vmatprep.subr.mxu0 0.0
        %3641 = vmatpush2.msra.mxu0 0.0
        %3642 = vmatprep.subr.mxu0 0.0
        %3643 = vmatpush2.msra.mxu0 0.0
        %3644 = vmatprep.subr.mxu0 0.0
        %3645 = vmatpush2.msra.mxu0 0.0
        %3646 = vmatprep.subr.mxu0 0.0
        %3647 = vmatpush2.msra.mxu0 0.0
        %3648 = vmatprep.subr.mxu0 0.0
        %3649 = vmatpush2.msra.mxu0 0.0
        %3650 = vmatprep.subr.mxu0 0.0
        %3651 = vmatpush2.msra.mxu0 0.0
        %3652 = vmatprep.subr.mxu0 0.0
        %3653 = vmatpush2.msra.mxu0 0.0
        %3654 = vmatprep.subr.mxu0 0.0
        %3655 = vmatpush2.msra.mxu0 0.0
        %3656 = vmatprep.subr.mxu0 0.0
        %3657 = vmatpush2.msra.mxu0 0.0
        %3658 = vmatprep.subr.mxu0 0.0
        %3659 = vmatpush2.msra.mxu0 0.0
        %3660 = vmatprep.subr.mxu0 0.0
        %3661 = vmatpush2.msra.mxu0 0.0
        %3662 = vmatprep.subr.mxu0 0.0
        %3663 = vmatpush2.msra.mxu0 0.0
        %3664 = vmatprep.mubr.f32.mxu0 0.0
        %3665 = vmatmul.mubr.f32.gmra.mxu0 %v3505
        %v3666 = vpop.f32.mrf.mxu0
        %v3667 = vadd.f32 0.0, %v3666
        %v3668 = vpop.f32.mrf.mxu0
        %3669 = vmatprep.mubr.f32.mxu0 0.0
        %3670 = vmatmul.mubr.f32.gmra.mxu0 %v3508
        %v3671 = vpop.f32.mrf.mxu0
        %v3672 = vadd.f32 0.0, %v3671
        %v3673 = vpop.f32.mrf.mxu0
        %3674 = vmatprep.mubr.f32.mxu0 0.0
        %3675 = vmatmul.mubr.f32.gmra.mxu0 %v3511
        %v3676 = vpop.f32.mrf.mxu0
        %v3677 = vadd.f32 0.0, %v3676
        %v3678 = vpop.f32.mrf.mxu0
        %3679 = vmatprep.mubr.f32.mxu0 0.0
        %3680 = vmatmul.mubr.f32.gmra.mxu0 %v3514
        %v3681 = vpop.f32.mrf.mxu0
        %v3682 = vadd.f32 0.0, %v3681
        %v3683 = vpop.f32.mrf.mxu0
        %3684 = vmatprep.mubr.f32.mxu0 0.0
        %3685 = vmatmul.mubr.f32.gmra.mxu0 %v3517
        %v3686 = vpop.f32.mrf.mxu0
        %v3687 = vadd.f32 0.0, %v3686
        %v3688 = vpop.f32.mrf.mxu0
        %3689 = vmatprep.mubr.f32.mxu0 0.0
        %3690 = vmatmul.mubr.f32.gmra.mxu0 %v3520
        %v3691 = vpop.f32.mrf.mxu0
        %v3692 = vadd.f32 0.0, %v3691
        %v3693 = vpop.f32.mrf.mxu0
        %3694 = vmatprep.mubr.f32.mxu0 0.0
        %3695 = vmatmul.mubr.f32.gmra.mxu0 %v3523
        %v3696 = vpop.f32.mrf.mxu0
        %v3697 = vadd.f32 0.0, %v3696
        %v3698 = vpop.f32.mrf.mxu0
        %3699 = vmatprep.mubr.f32.mxu0 0.0
        %3700 = vmatmul.mubr.f32.gmra.mxu0 %v3526
        %v3701 = vpop.f32.mrf.mxu0
        %v3702 = vadd.f32 0.0, %v3701
        %v3703 = vpop.f32.mrf.mxu0
        %3704 = vmatprep.mubr.f32.mxu0 0.0
        %3705 = vmatmul.mubr.f32.gmra.mxu0 %v3529
        %v3706 = vpop.f32.mrf.mxu0
        %v3707 = vadd.f32 0.0, %v3706
        %v3708 = vpop.f32.mrf.mxu0
        %3709 = vmatprep.mubr.f32.mxu0 0.0
        %3710 = vmatmul.mubr.f32.gmra.mxu0 %v3532
        %v3711 = vpop.f32.mrf.mxu0
        %v3712 = vadd.f32 0.0, %v3711
        %v3713 = vpop.f32.mrf.mxu0
        %3714 = vmatprep.mubr.f32.mxu0 0.0
        %3715 = vmatmul.mubr.f32.gmra.mxu0 %v3535
        %v3716 = vpop.f32.mrf.mxu0
        %v3717 = vadd.f32 0.0, %v3716
        %v3718 = vpop.f32.mrf.mxu0
        %3719 = vmatprep.mubr.f32.mxu0 0.0
        %3720 = vmatmul.mubr.f32.gmra.mxu0 %v3538
        %v3721 = vpop.f32.mrf.mxu0
        %v3722 = vadd.f32 0.0, %v3721
        %v3723 = vpop.f32.mrf.mxu0
        %3724 = vmatprep.mubr.f32.mxu0 0.0
        %3725 = vmatmul.mubr.f32.gmra.mxu0 %v3541
        %v3726 = vpop.f32.mrf.mxu0
        %v3727 = vadd.f32 0.0, %v3726
        %v3728 = vpop.f32.mrf.mxu0
        %3729 = vmatprep.mubr.f32.mxu0 0.0
        %3730 = vmatmul.mubr.f32.gmra.mxu0 %v3544
        %v3731 = vpop.f32.mrf.mxu0
        %v3732 = vadd.f32 0.0, %v3731
        %v3733 = vpop.f32.mrf.mxu0
        %3734 = vmatprep.mubr.f32.mxu0 0.0
        %3735 = vmatmul.mubr.f32.gmra.mxu0 %v3547
        %v3736 = vpop.f32.mrf.mxu0
        %v3737 = vadd.f32 0.0, %v3736
        %v3738 = vpop.f32.mrf.mxu0
        %3739 = vmatprep.mubr.f32.mxu0 0.0
        %3740 = vmatmul.mubr.f32.gmra.mxu0 %v3550
        %v3741 = vpop.f32.mrf.mxu0
        %v3742 = vadd.f32 0.0, %v3741
        %v3743 = vpop.f32.mrf.mxu0
        %3744 = vmatprep.mubr.f32.mxu0 0.0
        %3745 = vmatmul.mubr.f32.gmra.mxu0 %v3553
        %v3746 = vpop.f32.mrf.mxu0
        %v3747 = vadd.f32 0.0, %v3746
        %v3748 = vpop.f32.mrf.mxu0
        %3749 = vmatprep.mubr.f32.mxu0 0.0
        %3750 = vmatmul.mubr.f32.gmra.mxu0 %v3556
        %v3751 = vpop.f32.mrf.mxu0
        %v3752 = vadd.f32 0.0, %v3751
        %v3753 = vpop.f32.mrf.mxu0
        %3754 = vmatprep.mubr.f32.mxu0 0.0
        %3755 = vmatmul.mubr.f32.gmra.mxu0 %v3559
        %v3756 = vpop.f32.mrf.mxu0
        %v3757 = vadd.f32 0.0, %v3756
        %v3758 = vpop.f32.mrf.mxu0
        %3759 = vmatprep.mubr.f32.mxu0 0.0
        %3760 = vmatmul.mubr.f32.gmra.mxu0 %v3562
        %v3761 = vpop.f32.mrf.mxu0
        %v3762 = vadd.f32 0.0, %v3761
        %v3763 = vpop.f32.mrf.mxu0
        %3764 = vmatprep.mubr.f32.mxu0 0.0
        %3765 = vmatmul.mubr.f32.gmra.mxu0 %v3565
        %v3766 = vpop.f32.mrf.mxu0
        %v3767 = vadd.f32 0.0, %v3766
        %v3768 = vpop.f32.mrf.mxu0
        %3769 = vmatprep.mubr.f32.mxu0 0.0
        %3770 = vmatmul.mubr.f32.gmra.mxu0 %v3568
        %v3771 = vpop.f32.mrf.mxu0
        %v3772 = vadd.f32 0.0, %v3771
        %v3773 = vpop.f32.mrf.mxu0
        %3774 = vmatprep.mubr.f32.mxu0 0.0
        %3775 = vmatmul.mubr.f32.gmra.mxu0 %v3571
        %v3776 = vpop.f32.mrf.mxu0
        %v3777 = vadd.f32 0.0, %v3776
        %v3778 = vpop.f32.mrf.mxu0
        %3779 = vmatprep.mubr.f32.mxu0 0.0
        %3780 = vmatmul.mubr.f32.gmra.mxu0 %v3574
        %v3781 = vpop.f32.mrf.mxu0
        %v3782 = vadd.f32 0.0, %v3781
        %v3783 = vpop.f32.mrf.mxu0
        %3784 = vmatprep.mubr.f32.mxu0 0.0
        %3785 = vmatmul.mubr.f32.gmra.mxu0 %v3577
        %v3786 = vpop.f32.mrf.mxu0
        %v3787 = vadd.f32 0.0, %v3786
        %v3788 = vpop.f32.mrf.mxu0
        %3789 = vmatprep.mubr.f32.mxu0 0.0
        %3790 = vmatmul.mubr.f32.gmra.mxu0 %v3580
        %v3791 = vpop.f32.mrf.mxu0
        %v3792 = vadd.f32 0.0, %v3791
        %v3793 = vpop.f32.mrf.mxu0
        %3794 = vmatprep.mubr.f32.mxu0 0.0
        %3795 = vmatmul.mubr.f32.gmra.mxu0 %v3583
        %v3796 = vpop.f32.mrf.mxu0
        %v3797 = vadd.f32 0.0, %v3796
        %v3798 = vpop.f32.mrf.mxu0
        %3799 = vmatprep.mubr.f32.mxu0 0.0
        %3800 = vmatmul.mubr.f32.gmra.mxu0 %v3586
        %v3801 = vpop.f32.mrf.mxu0
        %v3802 = vadd.f32 0.0, %v3801
        %v3803 = vpop.f32.mrf.mxu0
        %3804 = vmatprep.mubr.f32.mxu0 0.0
        %3805 = vmatmul.mubr.f32.gmra.mxu0 %v3589
        %v3806 = vpop.f32.mrf.mxu0
        %v3807 = vadd.f32 0.0, %v3806
        %v3808 = vpop.f32.mrf.mxu0
        %3809 = vmatprep.mubr.f32.mxu0 0.0
        %3810 = vmatmul.mubr.f32.gmra.mxu0 %v3592
        %v3811 = vpop.f32.mrf.mxu0
        %v3812 = vadd.f32 0.0, %v3811
        %v3813 = vpop.f32.mrf.mxu0
        %3814 = vmatprep.mubr.f32.mxu0 0.0
        %3815 = vmatmul.mubr.f32.gmra.mxu0 %v3595
        %v3816 = vpop.f32.mrf.mxu0
        %v3817 = vadd.f32 0.0, %v3816
        %v3818 = vpop.f32.mrf.mxu0
        %3819 = vmatprep.mubr.f32.mxu0 0.0
        %3820 = vmatmul.mubr.f32.gmra.mxu0 %v3598
        %v3821 = vpop.f32.mrf.mxu0
        %v3822 = vadd.f32 0.0, %v3821
        %v3823 = vpop.f32.mrf.mxu0
        %3824 = vdwg.mxu0
        %v3825 = vadd.f32 %v3438, %v3667
        %v3826 = vadd.f32 %v3439, %v3672
        %v3827 = vadd.f32 %v3440, %v3677
        %v3828 = vadd.f32 %v3441, %v3682
        %v3829 = vadd.f32 %v3442, %v3687
        %v3830 = vadd.f32 %v3443, %v3692
        %v3831 = vadd.f32 %v3444, %v3697
        %v3832 = vadd.f32 %v3445, %v3702
        %v3833 = vadd.f32 %v3446, %v3707
        %v3834 = vadd.f32 %v3447, %v3712
        %v3835 = vadd.f32 %v3448, %v3717
        %v3836 = vadd.f32 %v3449, %v3722
        %v3837 = vadd.f32 %v3450, %v3727
        %v3838 = vadd.f32 %v3451, %v3732
        %v3839 = vadd.f32 %v3452, %v3737
        %v3840 = vadd.f32 %v3453, %v3742
        %v3841 = vadd.f32 %v3454, %v3747
        %v3842 = vadd.f32 %v3455, %v3752
        %v3843 = vadd.f32 %v3456, %v3757
        %v3844 = vadd.f32 %v3457, %v3762
        %v3845 = vadd.f32 %v3458, %v3767
        %v3846 = vadd.f32 %v3459, %v3772
        %v3847 = vadd.f32 %v3460, %v3777
        %v3848 = vadd.f32 %v3461, %v3782
        %v3849 = vadd.f32 %v3462, %v3787
        %v3850 = vadd.f32 %v3463, %v3792
        %v3851 = vadd.f32 %v3464, %v3797
        %v3852 = vadd.f32 %v3465, %v3802
        %v3853 = vadd.f32 %v3466, %v3807
        %v3854 = vadd.f32 %v3467, %v3812
        %v3855 = vadd.f32 %v3468, %v3817
        %v3856 = vadd.f32 %v3469, %v3822
        %v3857 = vld [vmem:[%s3082 + $0x9] sm:$0xff]
        %v3858 = vld [vmem:[%s3082 + $0x11] sm:$0xff]
        %v3859 = vld [vmem:[%s3082 + $0x29] sm:$0xff]
        %v3860 = vld [vmem:[%s3082 + $0x31] sm:$0xff]
        %v3861 = vld [vmem:[%s3082 + $0x49] sm:$0xff]
        %v3862 = vld [vmem:[%s3082 + $0x51] sm:$0xff]
        %v3863 = vld [vmem:[%s3082 + $0x69] sm:$0xff]
        %v3864 = vld [vmem:[%s3082 + $0x71] sm:$0xff]
        %v3865 = vld [vmem:[%s3082 + $0x89] sm:$0xff]
        %v3866 = vld [vmem:[%s3082 + $0x91] sm:$0xff]
        %v3867 = vld [vmem:[%s3082 + $0xa9] sm:$0xff]
        %v3868 = vld [vmem:[%s3082 + $0xb1] sm:$0xff]
        %v3869 = vld [vmem:[%s3082 + $0xc9] sm:$0xff]
        %v3870 = vld [vmem:[%s3082 + $0xd1] sm:$0xff]
        %v3871 = vld [vmem:[%s3082 + $0xe9] sm:$0xff]
        %v3872 = vld [vmem:[%s3082 + $0xf1] sm:$0xff]
        %v3873 = vld [vmem:[%s3082 + $0x109] sm:$0xff]
        %v3874 = vld [vmem:[%s3082 + $0x111] sm:$0xff]
        %v3875 = vld [vmem:[%s3082 + $0x129] sm:$0xff]
        %v3876 = vld [vmem:[%s3082 + $0x131] sm:$0xff]
        %v3877 = vld [vmem:[%s3082 + $0x149] sm:$0xff]
        %v3878 = vld [vmem:[%s3082 + $0x151] sm:$0xff]
        %v3879 = vld [vmem:[%s3082 + $0x169] sm:$0xff]
        %v3880 = vld [vmem:[%s3082 + $0x171] sm:$0xff]
        %v3881 = vld [vmem:[%s3082 + $0x189] sm:$0xff]
        %v3882 = vld [vmem:[%s3082 + $0x191] sm:$0xff]
        %v3883 = vld [vmem:[%s3082 + $0x1a9] sm:$0xff]
        %v3884 = vld [vmem:[%s3082 + $0x1b1] sm:$0xff]
        %v3885 = vld [vmem:[%s3082 + $0x1c9] sm:$0xff]
        %v3886 = vld [vmem:[%s3082 + $0x1d1] sm:$0xff]
        %v3887 = vld [vmem:[%s3082 + $0x1e9] sm:$0xff]
        %v3888 = vld [vmem:[%s3082 + $0x1f1] sm:$0xff]
        %s3889 = scalar_lea.vmem %s4, 64
        %v3890 = vld [vmem:[%s3889] sm:$0xff]
        %v3892 = vsel %vm398, %v3857, 0
        %v3895 = vsel %vm398, %v3858, 0
        %v3898 = vsel %vm398, %v3859, 0
        %v3901 = vsel %vm398, %v3860, 0
        %v3904 = vsel %vm398, %v3861, 0
        %v3907 = vsel %vm398, %v3862, 0
        %v3910 = vsel %vm398, %v3863, 0
        %v3913 = vsel %vm398, %v3864, 0
        %v3916 = vsel %vm398, %v3865, 0
        %v3919 = vsel %vm398, %v3866, 0
        %v3922 = vsel %vm398, %v3867, 0
        %v3925 = vsel %vm398, %v3868, 0
        %v3928 = vsel %vm398, %v3869, 0
        %v3931 = vsel %vm398, %v3870, 0
        %v3934 = vsel %vm398, %v3871, 0
        %v3937 = vsel %vm398, %v3872, 0
        %v3940 = vsel %vm398, %v3873, 0
        %v3943 = vsel %vm398, %v3874, 0
        %v3946 = vsel %vm398, %v3875, 0
        %v3949 = vsel %vm398, %v3876, 0
        %v3952 = vsel %vm398, %v3877, 0
        %v3955 = vsel %vm398, %v3878, 0
        %v3958 = vsel %vm398, %v3879, 0
        %v3961 = vsel %vm398, %v3880, 0
        %v3964 = vsel %vm398, %v3881, 0
        %v3967 = vsel %vm398, %v3882, 0
        %v3970 = vsel %vm398, %v3883, 0
        %v3973 = vsel %vm398, %v3884, 0
        %v3976 = vsel %vm398, %v3885, 0
        %v3979 = vsel %vm398, %v3886, 0
        %v3982 = vsel %vm398, %v3887, 0
        %v3985 = vsel %vm398, %v3888, 0
        %3987 = vmatprep.subr.mxu0 0.0
        %3988 = vmatpush1.msra.mxu0 0.0
        %3989 = vmatprep.subr.mxu0 0.0
        %3990 = vmatpush1.msra.mxu0 0.0
        %3991 = vmatprep.subr.mxu0 0.0
        %3992 = vmatpush1.msra.mxu0 0.0
        %3993 = vmatprep.subr.mxu0 0.0
        %3994 = vmatpush1.msra.mxu0 0.0
        %3995 = vmatprep.subr.mxu0 0.0
        %3996 = vmatpush1.msra.mxu0 0.0
        %3997 = vmatprep.subr.mxu0 0.0
        %3998 = vmatpush1.msra.mxu0 0.0
        %3999 = vmatprep.subr.mxu0 0.0
        %4000 = vmatpush1.msra.mxu0 0.0
        %4001 = vmatprep.subr.mxu0 0.0
        %4002 = vmatpush1.msra.mxu0 0.0
        %4003 = vmatprep.subr.mxu0 0.0
        %4004 = vmatpush1.msra.mxu0 0.0
        %4005 = vmatprep.subr.mxu0 0.0
        %4006 = vmatpush1.msra.mxu0 0.0
        %4007 = vmatprep.subr.mxu0 0.0
        %4008 = vmatpush1.msra.mxu0 0.0
        %4009 = vmatprep.subr.mxu0 0.0
        %4010 = vmatpush1.msra.mxu0 0.0
        %4011 = vmatprep.subr.mxu0 0.0
        %4012 = vmatpush1.msra.mxu0 0.0
        %4013 = vmatprep.subr.mxu0 0.0
        %4014 = vmatpush1.msra.mxu0 0.0
        %4015 = vmatprep.subr.mxu0 0.0
        %4016 = vmatpush1.msra.mxu0 0.0
        %4017 = vmatprep.subr.mxu0 0.0
        %4018 = vmatpush1.msra.mxu0 %v3890
        %4019 = vmatprep.subr.mxu0 0.0
        %4020 = vmatpush2.msra.mxu0 0.0
        %4021 = vmatprep.subr.mxu0 0.0
        %4022 = vmatpush2.msra.mxu0 0.0
        %4023 = vmatprep.subr.mxu0 0.0
        %4024 = vmatpush2.msra.mxu0 0.0
        %4025 = vmatprep.subr.mxu0 0.0
        %4026 = vmatpush2.msra.mxu0 0.0
        %4027 = vmatprep.subr.mxu0 0.0
        %4028 = vmatpush2.msra.mxu0 0.0
        %4029 = vmatprep.subr.mxu0 0.0
        %4030 = vmatpush2.msra.mxu0 0.0
        %4031 = vmatprep.subr.mxu0 0.0
        %4032 = vmatpush2.msra.mxu0 0.0
        %4033 = vmatprep.subr.mxu0 0.0
        %4034 = vmatpush2.msra.mxu0 0.0
        %4035 = vmatprep.subr.mxu0 0.0
        %4036 = vmatpush2.msra.mxu0 0.0
        %4037 = vmatprep.subr.mxu0 0.0
        %4038 = vmatpush2.msra.mxu0 0.0
        %4039 = vmatprep.subr.mxu0 0.0
        %4040 = vmatpush2.msra.mxu0 0.0
        %4041 = vmatprep.subr.mxu0 0.0
        %4042 = vmatpush2.msra.mxu0 0.0
        %4043 = vmatprep.subr.mxu0 0.0
        %4044 = vmatpush2.msra.mxu0 0.0
        %4045 = vmatprep.subr.mxu0 0.0
        %4046 = vmatpush2.msra.mxu0 0.0
        %4047 = vmatprep.subr.mxu0 0.0
        %4048 = vmatpush2.msra.mxu0 0.0
        %4049 = vmatprep.subr.mxu0 0.0
        %4050 = vmatpush2.msra.mxu0 0.0
        %4051 = vmatprep.mubr.f32.mxu0 0.0
        %4052 = vmatmul.mubr.f32.gmra.mxu0 %v3892
        %v4053 = vpop.f32.mrf.mxu0
        %v4054 = vadd.f32 0.0, %v4053
        %v4055 = vpop.f32.mrf.mxu0
        %4056 = vmatprep.mubr.f32.mxu0 0.0
        %4057 = vmatmul.mubr.f32.gmra.mxu0 %v3895
        %v4058 = vpop.f32.mrf.mxu0
        %v4059 = vadd.f32 0.0, %v4058
        %v4060 = vpop.f32.mrf.mxu0
        %4061 = vmatprep.mubr.f32.mxu0 0.0
        %4062 = vmatmul.mubr.f32.gmra.mxu0 %v3898
        %v4063 = vpop.f32.mrf.mxu0
        %v4064 = vadd.f32 0.0, %v4063
        %v4065 = vpop.f32.mrf.mxu0
        %4066 = vmatprep.mubr.f32.mxu0 0.0
        %4067 = vmatmul.mubr.f32.gmra.mxu0 %v3901
        %v4068 = vpop.f32.mrf.mxu0
        %v4069 = vadd.f32 0.0, %v4068
        %v4070 = vpop.f32.mrf.mxu0
        %4071 = vmatprep.mubr.f32.mxu0 0.0
        %4072 = vmatmul.mubr.f32.gmra.mxu0 %v3904
        %v4073 = vpop.f32.mrf.mxu0
        %v4074 = vadd.f32 0.0, %v4073
        %v4075 = vpop.f32.mrf.mxu0
        %4076 = vmatprep.mubr.f32.mxu0 0.0
        %4077 = vmatmul.mubr.f32.gmra.mxu0 %v3907
        %v4078 = vpop.f32.mrf.mxu0
        %v4079 = vadd.f32 0.0, %v4078
        %v4080 = vpop.f32.mrf.mxu0
        %4081 = vmatprep.mubr.f32.mxu0 0.0
        %4082 = vmatmul.mubr.f32.gmra.mxu0 %v3910
        %v4083 = vpop.f32.mrf.mxu0
        %v4084 = vadd.f32 0.0, %v4083
        %v4085 = vpop.f32.mrf.mxu0
        %4086 = vmatprep.mubr.f32.mxu0 0.0
        %4087 = vmatmul.mubr.f32.gmra.mxu0 %v3913
        %v4088 = vpop.f32.mrf.mxu0
        %v4089 = vadd.f32 0.0, %v4088
        %v4090 = vpop.f32.mrf.mxu0
        %4091 = vmatprep.mubr.f32.mxu0 0.0
        %4092 = vmatmul.mubr.f32.gmra.mxu0 %v3916
        %v4093 = vpop.f32.mrf.mxu0
        %v4094 = vadd.f32 0.0, %v4093
        %v4095 = vpop.f32.mrf.mxu0
        %4096 = vmatprep.mubr.f32.mxu0 0.0
        %4097 = vmatmul.mubr.f32.gmra.mxu0 %v3919
        %v4098 = vpop.f32.mrf.mxu0
        %v4099 = vadd.f32 0.0, %v4098
        %v4100 = vpop.f32.mrf.mxu0
        %4101 = vmatprep.mubr.f32.mxu0 0.0
        %4102 = vmatmul.mubr.f32.gmra.mxu0 %v3922
        %v4103 = vpop.f32.mrf.mxu0
        %v4104 = vadd.f32 0.0, %v4103
        %v4105 = vpop.f32.mrf.mxu0
        %4106 = vmatprep.mubr.f32.mxu0 0.0
        %4107 = vmatmul.mubr.f32.gmra.mxu0 %v3925
        %v4108 = vpop.f32.mrf.mxu0
        %v4109 = vadd.f32 0.0, %v4108
        %v4110 = vpop.f32.mrf.mxu0
        %4111 = vmatprep.mubr.f32.mxu0 0.0
        %4112 = vmatmul.mubr.f32.gmra.mxu0 %v3928
        %v4113 = vpop.f32.mrf.mxu0
        %v4114 = vadd.f32 0.0, %v4113
        %v4115 = vpop.f32.mrf.mxu0
        %4116 = vmatprep.mubr.f32.mxu0 0.0
        %4117 = vmatmul.mubr.f32.gmra.mxu0 %v3931
        %v4118 = vpop.f32.mrf.mxu0
        %v4119 = vadd.f32 0.0, %v4118
        %v4120 = vpop.f32.mrf.mxu0
        %4121 = vmatprep.mubr.f32.mxu0 0.0
        %4122 = vmatmul.mubr.f32.gmra.mxu0 %v3934
        %v4123 = vpop.f32.mrf.mxu0
        %v4124 = vadd.f32 0.0, %v4123
        %v4125 = vpop.f32.mrf.mxu0
        %4126 = vmatprep.mubr.f32.mxu0 0.0
        %4127 = vmatmul.mubr.f32.gmra.mxu0 %v3937
        %v4128 = vpop.f32.mrf.mxu0
        %v4129 = vadd.f32 0.0, %v4128
        %v4130 = vpop.f32.mrf.mxu0
        %4131 = vmatprep.mubr.f32.mxu0 0.0
        %4132 = vmatmul.mubr.f32.gmra.mxu0 %v3940
        %v4133 = vpop.f32.mrf.mxu0
        %v4134 = vadd.f32 0.0, %v4133
        %v4135 = vpop.f32.mrf.mxu0
        %4136 = vmatprep.mubr.f32.mxu0 0.0
        %4137 = vmatmul.mubr.f32.gmra.mxu0 %v3943
        %v4138 = vpop.f32.mrf.mxu0
        %v4139 = vadd.f32 0.0, %v4138
        %v4140 = vpop.f32.mrf.mxu0
        %4141 = vmatprep.mubr.f32.mxu0 0.0
        %4142 = vmatmul.mubr.f32.gmra.mxu0 %v3946
        %v4143 = vpop.f32.mrf.mxu0
        %v4144 = vadd.f32 0.0, %v4143
        %v4145 = vpop.f32.mrf.mxu0
        %4146 = vmatprep.mubr.f32.mxu0 0.0
        %4147 = vmatmul.mubr.f32.gmra.mxu0 %v3949
        %v4148 = vpop.f32.mrf.mxu0
        %v4149 = vadd.f32 0.0, %v4148
        %v4150 = vpop.f32.mrf.mxu0
        %4151 = vmatprep.mubr.f32.mxu0 0.0
        %4152 = vmatmul.mubr.f32.gmra.mxu0 %v3952
        %v4153 = vpop.f32.mrf.mxu0
        %v4154 = vadd.f32 0.0, %v4153
        %v4155 = vpop.f32.mrf.mxu0
        %4156 = vmatprep.mubr.f32.mxu0 0.0
        %4157 = vmatmul.mubr.f32.gmra.mxu0 %v3955
        %v4158 = vpop.f32.mrf.mxu0
        %v4159 = vadd.f32 0.0, %v4158
        %v4160 = vpop.f32.mrf.mxu0
        %4161 = vmatprep.mubr.f32.mxu0 0.0
        %4162 = vmatmul.mubr.f32.gmra.mxu0 %v3958
        %v4163 = vpop.f32.mrf.mxu0
        %v4164 = vadd.f32 0.0, %v4163
        %v4165 = vpop.f32.mrf.mxu0
        %4166 = vmatprep.mubr.f32.mxu0 0.0
        %4167 = vmatmul.mubr.f32.gmra.mxu0 %v3961
        %v4168 = vpop.f32.mrf.mxu0
        %v4169 = vadd.f32 0.0, %v4168
        %v4170 = vpop.f32.mrf.mxu0
        %4171 = vmatprep.mubr.f32.mxu0 0.0
        %4172 = vmatmul.mubr.f32.gmra.mxu0 %v3964
        %v4173 = vpop.f32.mrf.mxu0
        %v4174 = vadd.f32 0.0, %v4173
        %v4175 = vpop.f32.mrf.mxu0
        %4176 = vmatprep.mubr.f32.mxu0 0.0
        %4177 = vmatmul.mubr.f32.gmra.mxu0 %v3967
        %v4178 = vpop.f32.mrf.mxu0
        %v4179 = vadd.f32 0.0, %v4178
        %v4180 = vpop.f32.mrf.mxu0
        %4181 = vmatprep.mubr.f32.mxu0 0.0
        %4182 = vmatmul.mubr.f32.gmra.mxu0 %v3970
        %v4183 = vpop.f32.mrf.mxu0
        %v4184 = vadd.f32 0.0, %v4183
        %v4185 = vpop.f32.mrf.mxu0
        %4186 = vmatprep.mubr.f32.mxu0 0.0
        %4187 = vmatmul.mubr.f32.gmra.mxu0 %v3973
        %v4188 = vpop.f32.mrf.mxu0
        %v4189 = vadd.f32 0.0, %v4188
        %v4190 = vpop.f32.mrf.mxu0
        %4191 = vmatprep.mubr.f32.mxu0 0.0
        %4192 = vmatmul.mubr.f32.gmra.mxu0 %v3976
        %v4193 = vpop.f32.mrf.mxu0
        %v4194 = vadd.f32 0.0, %v4193
        %v4195 = vpop.f32.mrf.mxu0
        %4196 = vmatprep.mubr.f32.mxu0 0.0
        %4197 = vmatmul.mubr.f32.gmra.mxu0 %v3979
        %v4198 = vpop.f32.mrf.mxu0
        %v4199 = vadd.f32 0.0, %v4198
        %v4200 = vpop.f32.mrf.mxu0
        %4201 = vmatprep.mubr.f32.mxu0 0.0
        %4202 = vmatmul.mubr.f32.gmra.mxu0 %v3982
        %v4203 = vpop.f32.mrf.mxu0
        %v4204 = vadd.f32 0.0, %v4203
        %v4205 = vpop.f32.mrf.mxu0
        %4206 = vmatprep.mubr.f32.mxu0 0.0
        %4207 = vmatmul.mubr.f32.gmra.mxu0 %v3985
        %v4208 = vpop.f32.mrf.mxu0
        %v4209 = vadd.f32 0.0, %v4208
        %v4210 = vpop.f32.mrf.mxu0
        %4211 = vdwg.mxu0
        %v4212 = vadd.f32 %v3825, %v4054
        %v4213 = vadd.f32 %v3826, %v4059
        %v4214 = vadd.f32 %v3827, %v4064
        %v4215 = vadd.f32 %v3828, %v4069
        %v4216 = vadd.f32 %v3829, %v4074
        %v4217 = vadd.f32 %v3830, %v4079
        %v4218 = vadd.f32 %v3831, %v4084
        %v4219 = vadd.f32 %v3832, %v4089
        %v4220 = vadd.f32 %v3833, %v4094
        %v4221 = vadd.f32 %v3834, %v4099
        %v4222 = vadd.f32 %v3835, %v4104
        %v4223 = vadd.f32 %v3836, %v4109
        %v4224 = vadd.f32 %v3837, %v4114
        %v4225 = vadd.f32 %v3838, %v4119
        %v4226 = vadd.f32 %v3839, %v4124
        %v4227 = vadd.f32 %v3840, %v4129
        %v4228 = vadd.f32 %v3841, %v4134
        %v4229 = vadd.f32 %v3842, %v4139
        %v4230 = vadd.f32 %v3843, %v4144
        %v4231 = vadd.f32 %v3844, %v4149
        %v4232 = vadd.f32 %v3845, %v4154
        %v4233 = vadd.f32 %v3846, %v4159
        %v4234 = vadd.f32 %v3847, %v4164
        %v4235 = vadd.f32 %v3848, %v4169
        %v4236 = vadd.f32 %v3849, %v4174
        %v4237 = vadd.f32 %v3850, %v4179
        %v4238 = vadd.f32 %v3851, %v4184
        %v4239 = vadd.f32 %v3852, %v4189
        %v4240 = vadd.f32 %v3853, %v4194
        %v4241 = vadd.f32 %v3854, %v4199
        %v4242 = vadd.f32 %v3855, %v4204
        %v4243 = vadd.f32 %v3856, %v4209
        %v4244 = vld [vmem:[%s5] sm:$0x1]
        %v4246 = vlaneseq
        %v4247 = vshrl.u32 %v4246, 7
        %v4248 = vsub.s32 0, %v4247
        %v4249 = vrot.slane %v4244, %v4248
        %v4251 = vadd.f32 %v4212, %v4249
        %v4252 = vadd.f32 %v4213, %v4249
        %v4253 = vadd.f32 %v4214, %v4249
        %v4254 = vadd.f32 %v4215, %v4249
        %v4255 = vadd.f32 %v4216, %v4249
        %v4256 = vadd.f32 %v4217, %v4249
        %v4257 = vadd.f32 %v4218, %v4249
        %v4258 = vadd.f32 %v4219, %v4249
        %v4259 = vadd.f32 %v4220, %v4249
        %v4260 = vadd.f32 %v4221, %v4249
        %v4261 = vadd.f32 %v4222, %v4249
        %v4262 = vadd.f32 %v4223, %v4249
        %v4263 = vadd.f32 %v4224, %v4249
        %v4264 = vadd.f32 %v4225, %v4249
        %v4265 = vadd.f32 %v4226, %v4249
        %v4266 = vadd.f32 %v4227, %v4249
        %v4267 = vadd.f32 %v4228, %v4249
        %v4268 = vadd.f32 %v4229, %v4249
        %v4269 = vadd.f32 %v4230, %v4249
        %v4270 = vadd.f32 %v4231, %v4249
        %v4271 = vadd.f32 %v4232, %v4249
        %v4272 = vadd.f32 %v4233, %v4249
        %v4273 = vadd.f32 %v4234, %v4249
        %v4274 = vadd.f32 %v4235, %v4249
        %v4275 = vadd.f32 %v4236, %v4249
        %v4276 = vadd.f32 %v4237, %v4249
        %v4277 = vadd.f32 %v4238, %v4249
        %v4278 = vadd.f32 %v4239, %v4249
        %v4279 = vadd.f32 %v4240, %v4249
        %v4280 = vadd.f32 %v4241, %v4249
        %v4281 = vadd.f32 %v4242, %v4249
        %v4282 = vadd.f32 %v4243, %v4249
        %v4283 = vld [vmem:[%s1] sm:$0xff]
        %v4284 = vld [vmem:[%s1 + $0x8] sm:$0xff]
        %v4285 = vld [vmem:[%s1 + $0x10] sm:$0xff]
        %v4286 = vld [vmem:[%s1 + $0x18] sm:$0xff]
        %v4287 = vld [vmem:[%s1 + $0x20] sm:$0xff]
        %v4288 = vld [vmem:[%s1 + $0x28] sm:$0xff]
        %v4289 = vld [vmem:[%s1 + $0x30] sm:$0xff]
        %v4290 = vld [vmem:[%s1 + $0x38] sm:$0xff]
        %v4291 = vld [vmem:[%s1 + $0x40] sm:$0xff]
        %v4292 = vld [vmem:[%s1 + $0x48] sm:$0xff]
        %v4293 = vld [vmem:[%s1 + $0x50] sm:$0xff]
        %v4294 = vld [vmem:[%s1 + $0x58] sm:$0xff]
        %v4295 = vld [vmem:[%s1 + $0x60] sm:$0xff]
        %v4296 = vld [vmem:[%s1 + $0x68] sm:$0xff]
        %v4297 = vld [vmem:[%s1 + $0x70] sm:$0xff]
        %v4298 = vld [vmem:[%s1 + $0x78] sm:$0xff]
        %4299 = vmatprep.subr.mxu0 0.0
        %4300 = vmatpush1.msra.mxu0 %v4266
        %4301 = vmatprep.subr.mxu0 0.0
        %4302 = vmatpush1.msra.mxu0 %v4265
        %4303 = vmatprep.subr.mxu0 0.0
        %4304 = vmatpush1.msra.mxu0 %v4264
        %4305 = vmatprep.subr.mxu0 0.0
        %4306 = vmatpush1.msra.mxu0 %v4263
        %4307 = vmatprep.subr.mxu0 0.0
        %4308 = vmatpush1.msra.mxu0 %v4262
        %4309 = vmatprep.subr.mxu0 0.0
        %4310 = vmatpush1.msra.mxu0 %v4261
        %4311 = vmatprep.subr.mxu0 0.0
        %4312 = vmatpush1.msra.mxu0 %v4260
        %4313 = vmatprep.subr.mxu0 0.0
        %4314 = vmatpush1.msra.mxu0 %v4259
        %4315 = vmatprep.subr.mxu0 0.0
        %4316 = vmatpush1.msra.mxu0 %v4258
        %4317 = vmatprep.subr.mxu0 0.0
        %4318 = vmatpush1.msra.mxu0 %v4257
        %4319 = vmatprep.subr.mxu0 0.0
        %4320 = vmatpush1.msra.mxu0 %v4256
        %4321 = vmatprep.subr.mxu0 0.0
        %4322 = vmatpush1.msra.mxu0 %v4255
        %4323 = vmatprep.subr.mxu0 0.0
        %4324 = vmatpush1.msra.mxu0 %v4254
        %4325 = vmatprep.subr.mxu0 0.0
        %4326 = vmatpush1.msra.mxu0 %v4253
        %4327 = vmatprep.subr.mxu0 0.0
        %4328 = vmatpush1.msra.mxu0 %v4252
        %4329 = vmatprep.subr.mxu0 0.0
        %4330 = vmatpush1.msra.mxu0 %v4251
        %4331 = vmatprep.subr.mxu0 0.0
        %4332 = vmatpush2.msra.mxu0 %v4282
        %4333 = vmatprep.subr.mxu0 0.0
        %4334 = vmatpush2.msra.mxu0 %v4281
        %4335 = vmatprep.subr.mxu0 0.0
        %4336 = vmatpush2.msra.mxu0 %v4280
        %4337 = vmatprep.subr.mxu0 0.0
        %4338 = vmatpush2.msra.mxu0 %v4279
        %4339 = vmatprep.subr.mxu0 0.0
        %4340 = vmatpush2.msra.mxu0 %v4278
        %4341 = vmatprep.subr.mxu0 0.0
        %4342 = vmatpush2.msra.mxu0 %v4277
        %4343 = vmatprep.subr.mxu0 0.0
        %4344 = vmatpush2.msra.mxu0 %v4276
        %4345 = vmatprep.subr.mxu0 0.0
        %4346 = vmatpush2.msra.mxu0 %v4275
        %4347 = vmatprep.subr.mxu0 0.0
        %4348 = vmatpush2.msra.mxu0 %v4274
        %4349 = vmatprep.subr.mxu0 0.0
        %4350 = vmatpush2.msra.mxu0 %v4273
        %4351 = vmatprep.subr.mxu0 0.0
        %4352 = vmatpush2.msra.mxu0 %v4272
        %4353 = vmatprep.subr.mxu0 0.0
        %4354 = vmatpush2.msra.mxu0 %v4271
        %4355 = vmatprep.subr.mxu0 0.0
        %4356 = vmatpush2.msra.mxu0 %v4270
        %4357 = vmatprep.subr.mxu0 0.0
        %4358 = vmatpush2.msra.mxu0 %v4269
        %4359 = vmatprep.subr.mxu0 0.0
        %4360 = vmatpush2.msra.mxu0 %v4268
        %4361 = vmatprep.subr.mxu0 0.0
        %4362 = vmatpush2.msra.mxu0 %v4267
        %4363 = vmatprep.mubr.f32.mxu0 %v4284
        %4364 = vmatmul.mubr.f32.gmra.mxu0 %v4283
        %v4365 = vpop.f32.mrf.mxu0
        %v4366 = vadd.f32 0.0, %v4365
        %v4367 = vpop.f32.mrf.mxu0
        %4368 = vmatprep.mubr.f32.mxu0 %v4286
        %4369 = vmatmul.mubr.f32.gmra.mxu0 %v4285
        %v4370 = vpop.f32.mrf.mxu0
        %v4371 = vadd.f32 0.0, %v4370
        %v4372 = vpop.f32.mrf.mxu0
        %4373 = vmatprep.mubr.f32.mxu0 %v4288
        %4374 = vmatmul.mubr.f32.gmra.mxu0 %v4287
        %v4375 = vpop.f32.mrf.mxu0
        %v4376 = vadd.f32 0.0, %v4375
        %v4377 = vpop.f32.mrf.mxu0
        %4378 = vmatprep.mubr.f32.mxu0 %v4290
        %4379 = vmatmul.mubr.f32.gmra.mxu0 %v4289
        %v4380 = vpop.f32.mrf.mxu0
        %v4381 = vadd.f32 0.0, %v4380
        %v4382 = vpop.f32.mrf.mxu0
        %4383 = vmatprep.mubr.f32.mxu0 %v4292
        %4384 = vmatmul.mubr.f32.gmra.mxu0 %v4291
        %v4385 = vpop.f32.mrf.mxu0
        %v4386 = vadd.f32 0.0, %v4385
        %v4387 = vpop.f32.mrf.mxu0
        %4388 = vmatprep.mubr.f32.mxu0 %v4294
        %4389 = vmatmul.mubr.f32.gmra.mxu0 %v4293
        %v4390 = vpop.f32.mrf.mxu0
        %v4391 = vadd.f32 0.0, %v4390
        %v4392 = vpop.f32.mrf.mxu0
        %4393 = vmatprep.mubr.f32.mxu0 %v4296
        %4394 = vmatmul.mubr.f32.gmra.mxu0 %v4295
        %v4395 = vpop.f32.mrf.mxu0
        %v4396 = vadd.f32 0.0, %v4395
        %v4397 = vpop.f32.mrf.mxu0
        %4398 = vmatprep.mubr.f32.mxu0 %v4298
        %4399 = vmatmul.mubr.f32.gmra.mxu0 %v4297
        %v4400 = vpop.f32.mrf.mxu0
        %v4401 = vadd.f32 0.0, %v4400
        %v4402 = vpop.f32.mrf.mxu0
        %4403 = vdwg.mxu0
        %4404 = vmatprep.subr.mxu0 0.0
        %4405 = vmatpush1.msra.mxu0 %v373
        %4406 = vmatprep.subr.mxu0 0.0
        %4407 = vmatpush1.msra.mxu0 %v372
        %4408 = vmatprep.subr.mxu0 0.0
        %4409 = vmatpush1.msra.mxu0 %v371
        %4410 = vmatprep.subr.mxu0 0.0
        %4411 = vmatpush1.msra.mxu0 %v370
        %4412 = vmatprep.subr.mxu0 0.0
        %4413 = vmatpush1.msra.mxu0 %v369
        %4414 = vmatprep.subr.mxu0 0.0
        %4415 = vmatpush1.msra.mxu0 %v368
        %4416 = vmatprep.subr.mxu0 0.0
        %4417 = vmatpush1.msra.mxu0 %v367
        %4418 = vmatprep.subr.mxu0 0.0
        %4419 = vmatpush1.msra.mxu0 %v366
        %4420 = vmatprep.subr.mxu0 0.0
        %4421 = vmatpush1.msra.mxu0 %v365
        %4422 = vmatprep.subr.mxu0 0.0
        %4423 = vmatpush1.msra.mxu0 %v364
        %4424 = vmatprep.subr.mxu0 0.0
        %4425 = vmatpush1.msra.mxu0 %v363
        %4426 = vmatprep.subr.mxu0 0.0
        %4427 = vmatpush1.msra.mxu0 %v362
        %4428 = vmatprep.subr.mxu0 0.0
        %4429 = vmatpush1.msra.mxu0 %v361
        %4430 = vmatprep.subr.mxu0 0.0
        %4431 = vmatpush1.msra.mxu0 %v360
        %4432 = vmatprep.subr.mxu0 0.0
        %4433 = vmatpush1.msra.mxu0 %v359
        %4434 = vmatprep.subr.mxu0 0.0
        %4435 = vmatpush1.msra.mxu0 %v358
        %4436 = vmatprep.subr.mxu0 0.0
        %4437 = vmatpush2.msra.mxu0 %v389
        %4438 = vmatprep.subr.mxu0 0.0
        %4439 = vmatpush2.msra.mxu0 %v388
        %4440 = vmatprep.subr.mxu0 0.0
        %4441 = vmatpush2.msra.mxu0 %v387
        %4442 = vmatprep.subr.mxu0 0.0
        %4443 = vmatpush2.msra.mxu0 %v386
        %4444 = vmatprep.subr.mxu0 0.0
        %4445 = vmatpush2.msra.mxu0 %v385
        %4446 = vmatprep.subr.mxu0 0.0
        %4447 = vmatpush2.msra.mxu0 %v384
        %4448 = vmatprep.subr.mxu0 0.0
        %4449 = vmatpush2.msra.mxu0 %v383
        %4450 = vmatprep.subr.mxu0 0.0
        %4451 = vmatpush2.msra.mxu0 %v382
        %4452 = vmatprep.subr.mxu0 0.0
        %4453 = vmatpush2.msra.mxu0 %v381
        %4454 = vmatprep.subr.mxu0 0.0
        %4455 = vmatpush2.msra.mxu0 %v380
        %4456 = vmatprep.subr.mxu0 0.0
        %4457 = vmatpush2.msra.mxu0 %v379
        %4458 = vmatprep.subr.mxu0 0.0
        %4459 = vmatpush2.msra.mxu0 %v378
        %4460 = vmatprep.subr.mxu0 0.0
        %4461 = vmatpush2.msra.mxu0 %v377
        %4462 = vmatprep.subr.mxu0 0.0
        %4463 = vmatpush2.msra.mxu0 %v376
        %4464 = vmatprep.subr.mxu0 0.0
        %4465 = vmatpush2.msra.mxu0 %v375
        %4466 = vmatprep.subr.mxu0 0.0
        %4467 = vmatpush2.msra.mxu0 %v374
        %4468 = vmatprep.mubr.f32.mxu0 %v4284
        %4469 = vmatmul.mubr.f32.gmra.mxu0 %v4283
        %v4470 = vpop.f32.mrf.mxu0
        %v4471 = vadd.f32 0.0, %v4470
        %v4472 = vpop.f32.mrf.mxu0
        %4473 = vmatprep.mubr.f32.mxu0 %v4286
        %4474 = vmatmul.mubr.f32.gmra.mxu0 %v4285
        %v4475 = vpop.f32.mrf.mxu0
        %v4476 = vadd.f32 0.0, %v4475
        %v4477 = vpop.f32.mrf.mxu0
        %4478 = vmatprep.mubr.f32.mxu0 %v4288
        %4479 = vmatmul.mubr.f32.gmra.mxu0 %v4287
        %v4480 = vpop.f32.mrf.mxu0
        %v4481 = vadd.f32 0.0, %v4480
        %v4482 = vpop.f32.mrf.mxu0
        %4483 = vmatprep.mubr.f32.mxu0 %v4290
        %4484 = vmatmul.mubr.f32.gmra.mxu0 %v4289
        %v4485 = vpop.f32.mrf.mxu0
        %v4486 = vadd.f32 0.0, %v4485
        %v4487 = vpop.f32.mrf.mxu0
        %4488 = vmatprep.mubr.f32.mxu0 %v4292
        %4489 = vmatmul.mubr.f32.gmra.mxu0 %v4291
        %v4490 = vpop.f32.mrf.mxu0
        %v4491 = vadd.f32 0.0, %v4490
        %v4492 = vpop.f32.mrf.mxu0
        %4493 = vmatprep.mubr.f32.mxu0 %v4294
        %4494 = vmatmul.mubr.f32.gmra.mxu0 %v4293
        %v4495 = vpop.f32.mrf.mxu0
        %v4496 = vadd.f32 0.0, %v4495
        %v4497 = vpop.f32.mrf.mxu0
        %4498 = vmatprep.mubr.f32.mxu0 %v4296
        %4499 = vmatmul.mubr.f32.gmra.mxu0 %v4295
        %v4500 = vpop.f32.mrf.mxu0
        %v4501 = vadd.f32 0.0, %v4500
        %v4502 = vpop.f32.mrf.mxu0
        %4503 = vmatprep.mubr.f32.mxu0 %v4298
        %4504 = vmatmul.mubr.f32.gmra.mxu0 %v4297
        %v4505 = vpop.f32.mrf.mxu0
        %v4506 = vadd.f32 0.0, %v4505
        %v4507 = vpop.f32.mrf.mxu0
        %4508 = vdwg.mxu0
        %v4509 = vld [vmem:[%s6] sm:$0xff]
        %v4510 = vld [vmem:[%s7] sm:$0x1]
        %v4512 = vlaneseq
        %v4513 = vshrl.u32 %v4512, 7
        %v4514 = vsub.s32 0, %v4513
        %v4515 = vrot.slane %v4510, %v4514
        %v4518 = vsel %vm398, %v4366, 0
        %v4521 = vsel %vm398, %v4371, 0
        %v4524 = vsel %vm398, %v4376, 0
        %v4527 = vsel %vm398, %v4381, 0
        %v4530 = vsel %vm398, %v4386, 0
        %v4533 = vsel %vm398, %v4391, 0
        %v4536 = vsel %vm398, %v4396, 0
        %v4539 = vsel %vm398, %v4401, 0
        %4541 = vmatprep.subr.mxu0 0.0
        %4542 = vmatpush1.msra.mxu0 0.0
        %4543 = vmatprep.subr.mxu0 0.0
        %4544 = vmatpush1.msra.mxu0 0.0
        %4545 = vmatprep.subr.mxu0 0.0
        %4546 = vmatpush1.msra.mxu0 0.0
        %4547 = vmatprep.subr.mxu0 0.0
        %4548 = vmatpush1.msra.mxu0 0.0
        %4549 = vmatprep.subr.mxu0 0.0
        %4550 = vmatpush1.msra.mxu0 0.0
        %4551 = vmatprep.subr.mxu0 0.0
        %4552 = vmatpush1.msra.mxu0 0.0
        %4553 = vmatprep.subr.mxu0 0.0
        %4554 = vmatpush1.msra.mxu0 0.0
        %4555 = vmatprep.subr.mxu0 0.0
        %4556 = vmatpush1.msra.mxu0 0.0
        %4557 = vmatprep.subr.mxu0 0.0
        %4558 = vmatpush1.msra.mxu0 0.0
        %4559 = vmatprep.subr.mxu0 0.0
        %4560 = vmatpush1.msra.mxu0 0.0
        %4561 = vmatprep.subr.mxu0 0.0
        %4562 = vmatpush1.msra.mxu0 0.0
        %4563 = vmatprep.subr.mxu0 0.0
        %4564 = vmatpush1.msra.mxu0 0.0
        %4565 = vmatprep.subr.mxu0 0.0
        %4566 = vmatpush1.msra.mxu0 0.0
        %4567 = vmatprep.subr.mxu0 0.0
        %4568 = vmatpush1.msra.mxu0 0.0
        %4569 = vmatprep.subr.mxu0 0.0
        %4570 = vmatpush1.msra.mxu0 0.0
        %4571 = vmatprep.subr.mxu0 0.0
        %4572 = vmatpush1.msra.mxu0 %v4509
        %4573 = vmatprep.subr.mxu0 0.0
        %4574 = vmatpush2.msra.mxu0 0.0
        %4575 = vmatprep.subr.mxu0 0.0
        %4576 = vmatpush2.msra.mxu0 0.0
        %4577 = vmatprep.subr.mxu0 0.0
        %4578 = vmatpush2.msra.mxu0 0.0
        %4579 = vmatprep.subr.mxu0 0.0
        %4580 = vmatpush2.msra.mxu0 0.0
        %4581 = vmatprep.subr.mxu0 0.0
        %4582 = vmatpush2.msra.mxu0 0.0
        %4583 = vmatprep.subr.mxu0 0.0
        %4584 = vmatpush2.msra.mxu0 0.0
        %4585 = vmatprep.subr.mxu0 0.0
        %4586 = vmatpush2.msra.mxu0 0.0
        %4587 = vmatprep.subr.mxu0 0.0
        %4588 = vmatpush2.msra.mxu0 0.0
        %4589 = vmatprep.subr.mxu0 0.0
        %4590 = vmatpush2.msra.mxu0 0.0
        %4591 = vmatprep.subr.mxu0 0.0
        %4592 = vmatpush2.msra.mxu0 0.0
        %4593 = vmatprep.subr.mxu0 0.0
        %4594 = vmatpush2.msra.mxu0 0.0
        %4595 = vmatprep.subr.mxu0 0.0
        %4596 = vmatpush2.msra.mxu0 0.0
        %4597 = vmatprep.subr.mxu0 0.0
        %4598 = vmatpush2.msra.mxu0 0.0
        %4599 = vmatprep.subr.mxu0 0.0
        %4600 = vmatpush2.msra.mxu0 0.0
        %4601 = vmatprep.subr.mxu0 0.0
        %4602 = vmatpush2.msra.mxu0 0.0
        %4603 = vmatprep.subr.mxu0 0.0
        %4604 = vmatpush2.msra.mxu0 0.0
        %4605 = vmatprep.mubr.f32.mxu0 0.0
        %4606 = vmatmul.mubr.f32.gmra.mxu0 %v4518
        %v4607 = vpop.f32.mrf.mxu0
        %v4608 = vadd.f32 %v4515, %v4607
        %v4609 = vpop.f32.mrf.mxu0
        %4610 = vmatprep.mubr.f32.mxu0 0.0
        %4611 = vmatmul.mubr.f32.gmra.mxu0 %v4521
        %v4612 = vpop.f32.mrf.mxu0
        %v4613 = vadd.f32 %v4515, %v4612
        %v4614 = vpop.f32.mrf.mxu0
        %4615 = vmatprep.mubr.f32.mxu0 0.0
        %4616 = vmatmul.mubr.f32.gmra.mxu0 %v4524
        %v4617 = vpop.f32.mrf.mxu0
        %v4618 = vadd.f32 %v4515, %v4617
        %v4619 = vpop.f32.mrf.mxu0
        %4620 = vmatprep.mubr.f32.mxu0 0.0
        %4621 = vmatmul.mubr.f32.gmra.mxu0 %v4527
        %v4622 = vpop.f32.mrf.mxu0
        %v4623 = vadd.f32 %v4515, %v4622
        %v4624 = vpop.f32.mrf.mxu0
        %4625 = vmatprep.mubr.f32.mxu0 0.0
        %4626 = vmatmul.mubr.f32.gmra.mxu0 %v4530
        %v4627 = vpop.f32.mrf.mxu0
        %v4628 = vadd.f32 %v4515, %v4627
        %v4629 = vpop.f32.mrf.mxu0
        %4630 = vmatprep.mubr.f32.mxu0 0.0
        %4631 = vmatmul.mubr.f32.gmra.mxu0 %v4533
        %v4632 = vpop.f32.mrf.mxu0
        %v4633 = vadd.f32 %v4515, %v4632
        %v4634 = vpop.f32.mrf.mxu0
        %4635 = vmatprep.mubr.f32.mxu0 0.0
        %4636 = vmatmul.mubr.f32.gmra.mxu0 %v4536
        %v4637 = vpop.f32.mrf.mxu0
        %v4638 = vadd.f32 %v4515, %v4637
        %v4639 = vpop.f32.mrf.mxu0
        %4640 = vmatprep.mubr.f32.mxu0 0.0
        %4641 = vmatmul.mubr.f32.gmra.mxu0 %v4539
        %v4642 = vpop.f32.mrf.mxu0
        %v4643 = vadd.f32 %v4515, %v4642
        %v4644 = vpop.f32.mrf.mxu0
        %4645 = vdwg.mxu0
        %v4646 = vld [vmem:[%s8] sm:$0xff]
        %v4647 = vld [vmem:[%s9] sm:$0x1]
        %v4649 = vlaneseq
        %v4650 = vshrl.u32 %v4649, 7
        %v4651 = vsub.s32 0, %v4650
        %v4652 = vrot.slane %v4647, %v4651
        %v4655 = vsel %vm398, %v4471, 0
        %v4658 = vsel %vm398, %v4476, 0
        %v4661 = vsel %vm398, %v4481, 0
        %v4664 = vsel %vm398, %v4486, 0
        %v4667 = vsel %vm398, %v4491, 0
        %v4670 = vsel %vm398, %v4496, 0
        %v4673 = vsel %vm398, %v4501, 0
        %v4676 = vsel %vm398, %v4506, 0
        %4678 = vmatprep.subr.mxu0 0.0
        %4679 = vmatpush1.msra.mxu0 0.0
        %4680 = vmatprep.subr.mxu0 0.0
        %4681 = vmatpush1.msra.mxu0 0.0
        %4682 = vmatprep.subr.mxu0 0.0
        %4683 = vmatpush1.msra.mxu0 0.0
        %4684 = vmatprep.subr.mxu0 0.0
        %4685 = vmatpush1.msra.mxu0 0.0
        %4686 = vmatprep.subr.mxu0 0.0
        %4687 = vmatpush1.msra.mxu0 0.0
        %4688 = vmatprep.subr.mxu0 0.0
        %4689 = vmatpush1.msra.mxu0 0.0
        %4690 = vmatprep.subr.mxu0 0.0
        %4691 = vmatpush1.msra.mxu0 0.0
        %4692 = vmatprep.subr.mxu0 0.0
        %4693 = vmatpush1.msra.mxu0 0.0
        %4694 = vmatprep.subr.mxu0 0.0
        %4695 = vmatpush1.msra.mxu0 0.0
        %4696 = vmatprep.subr.mxu0 0.0
        %4697 = vmatpush1.msra.mxu0 0.0
        %4698 = vmatprep.subr.mxu0 0.0
        %4699 = vmatpush1.msra.mxu0 0.0
        %4700 = vmatprep.subr.mxu0 0.0
        %4701 = vmatpush1.msra.mxu0 0.0
        %4702 = vmatprep.subr.mxu0 0.0
        %4703 = vmatpush1.msra.mxu0 0.0
        %4704 = vmatprep.subr.mxu0 0.0
        %4705 = vmatpush1.msra.mxu0 0.0
        %4706 = vmatprep.subr.mxu0 0.0
        %4707 = vmatpush1.msra.mxu0 0.0
        %4708 = vmatprep.subr.mxu0 0.0
        %4709 = vmatpush1.msra.mxu0 %v4646
        %4710 = vmatprep.subr.mxu0 0.0
        %4711 = vmatpush2.msra.mxu0 0.0
        %4712 = vmatprep.subr.mxu0 0.0
        %4713 = vmatpush2.msra.mxu0 0.0
        %4714 = vmatprep.subr.mxu0 0.0
        %4715 = vmatpush2.msra.mxu0 0.0
        %4716 = vmatprep.subr.mxu0 0.0
        %4717 = vmatpush2.msra.mxu0 0.0
        %4718 = vmatprep.subr.mxu0 0.0
        %4719 = vmatpush2.msra.mxu0 0.0
        %4720 = vmatprep.subr.mxu0 0.0
        %4721 = vmatpush2.msra.mxu0 0.0
        %4722 = vmatprep.subr.mxu0 0.0
        %4723 = vmatpush2.msra.mxu0 0.0
        %4724 = vmatprep.subr.mxu0 0.0
        %4725 = vmatpush2.msra.mxu0 0.0
        %4726 = vmatprep.subr.mxu0 0.0
        %4727 = vmatpush2.msra.mxu0 0.0
        %4728 = vmatprep.subr.mxu0 0.0
        %4729 = vmatpush2.msra.mxu0 0.0
        %4730 = vmatprep.subr.mxu0 0.0
        %4731 = vmatpush2.msra.mxu0 0.0
        %4732 = vmatprep.subr.mxu0 0.0
        %4733 = vmatpush2.msra.mxu0 0.0
        %4734 = vmatprep.subr.mxu0 0.0
        %4735 = vmatpush2.msra.mxu0 0.0
        %4736 = vmatprep.subr.mxu0 0.0
        %4737 = vmatpush2.msra.mxu0 0.0
        %4738 = vmatprep.subr.mxu0 0.0
        %4739 = vmatpush2.msra.mxu0 0.0
        %4740 = vmatprep.subr.mxu0 0.0
        %4741 = vmatpush2.msra.mxu0 0.0
        %4742 = vmatprep.mubr.f32.mxu0 0.0
        %4743 = vmatmul.mubr.f32.gmra.mxu0 %v4655
        %v4744 = vpop.f32.mrf.mxu0
        %v4745 = vadd.f32 %v4652, %v4744
        %v4746 = vpop.f32.mrf.mxu0
        %4747 = vmatprep.mubr.f32.mxu0 0.0
        %4748 = vmatmul.mubr.f32.gmra.mxu0 %v4658
        %v4749 = vpop.f32.mrf.mxu0
        %v4750 = vadd.f32 %v4652, %v4749
        %v4751 = vpop.f32.mrf.mxu0
        %4752 = vmatprep.mubr.f32.mxu0 0.0
        %4753 = vmatmul.mubr.f32.gmra.mxu0 %v4661
        %v4754 = vpop.f32.mrf.mxu0
        %v4755 = vadd.f32 %v4652, %v4754
        %v4756 = vpop.f32.mrf.mxu0
        %4757 = vmatprep.mubr.f32.mxu0 0.0
        %4758 = vmatmul.mubr.f32.gmra.mxu0 %v4664
        %v4759 = vpop.f32.mrf.mxu0
        %v4760 = vadd.f32 %v4652, %v4759
        %v4761 = vpop.f32.mrf.mxu0
        %4762 = vmatprep.mubr.f32.mxu0 0.0
        %4763 = vmatmul.mubr.f32.gmra.mxu0 %v4667
        %v4764 = vpop.f32.mrf.mxu0
        %v4765 = vadd.f32 %v4652, %v4764
        %v4766 = vpop.f32.mrf.mxu0
        %4767 = vmatprep.mubr.f32.mxu0 0.0
        %4768 = vmatmul.mubr.f32.gmra.mxu0 %v4670
        %v4769 = vpop.f32.mrf.mxu0
        %v4770 = vadd.f32 %v4652, %v4769
        %v4771 = vpop.f32.mrf.mxu0
        %4772 = vmatprep.mubr.f32.mxu0 0.0
        %4773 = vmatmul.mubr.f32.gmra.mxu0 %v4673
        %v4774 = vpop.f32.mrf.mxu0
        %v4775 = vadd.f32 %v4652, %v4774
        %v4776 = vpop.f32.mrf.mxu0
        %4777 = vmatprep.mubr.f32.mxu0 0.0
        %4778 = vmatmul.mubr.f32.gmra.mxu0 %v4676
        %v4779 = vpop.f32.mrf.mxu0
        %v4780 = vadd.f32 %v4652, %v4779
        %v4781 = vpop.f32.mrf.mxu0
        %4782 = vdwg.mxu0
        %v4783 = vadd.f32 %v4608, %v4745
        %v4784 = vadd.f32 %v4613, %v4750
        %v4785 = vadd.f32 %v4618, %v4755
        %v4786 = vadd.f32 %v4623, %v4760
        %v4787 = vadd.f32 %v4628, %v4765
        %v4788 = vadd.f32 %v4633, %v4770
        %v4789 = vadd.f32 %v4638, %v4775
        %v4790 = vadd.f32 %v4643, %v4780
        %v4791 = vmax.f32 %v4783, 0.0
        %v4792 = vmax.f32 %v4784, 0.0
        %v4793 = vmax.f32 %v4785, 0.0
        %v4794 = vmax.f32 %v4786, 0.0
        %v4795 = vmax.f32 %v4787, 0.0
        %v4796 = vmax.f32 %v4788, 0.0
        %v4797 = vmax.f32 %v4789, 0.0
        %v4798 = vmax.f32 %v4790, 0.0
        %vm4799 = vcmask 261120
        %4800 = vst.msk [vmem:[%s352] sm:$0xff] %vm4799, %v4791
        %4801 = vst.msk [vmem:[%s352 + $0x8] sm:$0xff] %vm4799, %v4792
        %4802 = vst.msk [vmem:[%s352 + $0x10] sm:$0xff] %vm4799, %v4793
        %4803 = vst.msk [vmem:[%s352 + $0x18] sm:$0xff] %vm4799, %v4794
        %4804 = vst.msk [vmem:[%s352 + $0x20] sm:$0xff] %vm4799, %v4795
        %4805 = vst.msk [vmem:[%s352 + $0x28] sm:$0xff] %vm4799, %v4796
        %4806 = vst.msk [vmem:[%s352 + $0x30] sm:$0xff] %vm4799, %v4797
        %4807 = vst.msk [vmem:[%s352 + $0x38] sm:$0xff] %vm4799, %v4798
        %s4808 = sand.u32 %s247, 1
        %s4809 = scalar_lea.sflag [#allocation4], %s4808
        %s4810 = sand.u32 %s247, 1
        %s4811 = smul.addr %s4810, 64
        %s4812 = scalar_lea.vmem [#allocation3], %s4811
        // Predicated region
        $region61: #{residual_block_forward.1} parent=59 // pred_check
          %p4813 = pneg %p257
        $region62: #{residual_block_forward.1} parent=59 // pred_check_branch
          %4815 = sbr.rel (%p4813) target = $region64
        $region63: #{residual_block_forward.1} parent=59 // pred_region
          %s4817 = ssub.s32 1024, 1024
          %4818 = vsyncadd %s4809, %s4817
          %s4819 = smul.addr %s24, 8
          %s4820 = smul.addr %s4819, 128
          %s4821 = scalar_lea.hbm %s10, %s4820
          %s4822 = sshll.u32 %s4812, 4
          %s4823 = int_to_ptr.vmem [resolvable:$true] %s4822
          %4828 = dma.vmem_to_hbm [thread:$0]  %s4823, 1024, %s4821, %s4809, 128, 128, 8
        $region64: #{residual_block_forward.1} parent=59 // pred_fallthru
          _
      $region60: #{residual_block_forward.1} parent=5 // pred_fallthru
        _
      %p4829 = scmp.le.s32.totalorder 2, %s19
      // Predicated region
      $region65: #{residual_block_forward.1} parent=5 // pred_check
        %p4830 = pneg %p4829
      $region66: #{residual_block_forward.1} parent=5 // pred_check_branch
        %4832 = sbr.rel (%p4830) target = $region68
      $region67: #{residual_block_forward.1} parent=5 // pred_region
        %s4833 = ssub.s32 %s19, 2
        // Predicated region
        $region69: #{residual_block_forward.1} parent=67 // pred_check
          %p4834 = pneg %p263
        $region70: #{residual_block_forward.1} parent=67 // pred_check_branch
          %4836 = sbr.rel (%p4834) target = $region72
        $region71: #{residual_block_forward.1} parent=67 // pred_region
          %s4837 = sand.u32 %s248, 1
          %s4838 = scalar_lea.sflag [#allocation4], %s4837
          %s4839 = sand.u32 %s248, 1
          %s4840 = smul.addr %s4839, 64
          %s4841 = scalar_lea.vmem [#allocation3], %s4840
          %4842 = dma.done %s4838, 1024
        $region72: #{residual_block_forward.1} parent=67 // pred_fallthru
          _
      $region68: #{residual_block_forward.1} parent=5 // pred_fallthru
        _
    $region6: #{residual_block_forward.1} parent=1 // loop_footer
      %s23 = sadd.s32 1, %s19
    $region7: #{residual_block_forward.1} parent=1 // loop_footer_branch
      %18 = sbr.rel target = $region3
    $region8: #{residual_block_forward.1} parent=1 // loop_exit
      _
    %4843 = vsyncpa [#allocation4], 1
    %s4844 = scalar_lea.sflag [#allocation4], 1
    %4845 = vsyncpa %s4844, 1

</llo_original>
